<compile_context>
chip_gen: v7x
topology: tpu7x:2x2x1
jax: 0.10.0
libtpu: 0.0.40
codegen_flags: <defaults>
</compile_context>

<pallas_src>
import functools

import jax
import jax.numpy as jnp
from jax import lax
from jax.experimental import pallas as pl
from jax.experimental.pallas import tpu as pltpu

# ----------------------------- config ---------------------------------------
BATCH = 2
SEQ = 8
D_MODEL = 32
N_HEADS = 4
HEAD_DIM = D_MODEL // N_HEADS
FFN_DIM = 64
VOCAB = 64
VOCAB_PAD = 128          # lane-dense lm_head output; padded logits sliced off outside
N_LAYERS = 2
PARAM_DTYPE = jnp.bfloat16
NEG_INF = -1e30


# ----------------------------- kernel ---------------------------------------
def _rmsnorm(x_f32, w):
    """RMSNorm on an f32 residual stream; returns bf16 (matmul input dtype)."""
    var = jnp.mean(x_f32 * x_f32, axis=-1, keepdims=True)
    inv = lax.rsqrt(var + 1e-6)
    return (x_f32 * inv * w.astype(jnp.float32)).astype(PARAM_DTYPE)


def _fwd_kernel(ids_ref, pos_ref, bias_ref, tok_emb_ref,
                ln1_ref, wq_ref, wk_ref, wv_ref, wo_ref,
                ln2_ref, w13_ref, w2_ref, lnf_ref, lmhead_ref,
                logits_ref, *, n_layers, n_heads, ffn_dim):
    """Whole decoder stack in one invocation: embed -> L layers -> norm -> lm_head."""
    m = ids_ref.shape[0]
    vocab = tok_emb_ref.shape[0]

    # ---- fused embedding: one-hot gather on the MXU + positional add -------
    vocab_iota = lax.broadcasted_iota(jnp.int32, (m, vocab), 1)
    onehot = (ids_ref[...] == vocab_iota).astype(PARAM_DTYPE)          # [M, V]
    h = jnp.dot(onehot, tok_emb_ref[...],
                preferred_element_type=jnp.float32)                    # [M, D] f32
    h = h + pos_ref[...].astype(jnp.float32)          # residual stream stays f32

    bias = bias_ref[...]                              # [M, M] additive causal mask

    for l in range(n_layers):          # static unroll; all weights resident in VMEM
        # ---------------- attention (all heads batched) ----------------------
        x = _rmsnorm(h, ln1_ref[l])                                    # [M, D] bf16
        xb = jnp.broadcast_to(x, (n_heads,) + x.shape)                 # [H, M, D]
        q = jnp.einsum("hmd,hdk->hmk", xb, wq_ref[l],
                       preferred_element_type=jnp.float32).astype(PARAM_DTYPE)
        k = jnp.einsum("hmd,hdk->hmk", xb, wk_ref[l],
                       preferred_element_type=jnp.float32).astype(PARAM_DTYPE)
        v = jnp.einsum("hmd,hdk->hmk", xb, wv_ref[l],
                       preferred_element_type=jnp.float32).astype(PARAM_DTYPE)
        # 1/sqrt(head_dim) folded into wq at init; contract last dims (no k.T).
        s = jnp.einsum("hmd,hnd->hmn", q, k,
                       preferred_element_type=jnp.float32)             # [H, M, M]
        s = s + bias                                   # block-diag causal mask (add)
        s_max = jnp.max(s, axis=-1, keepdims=True)
        p = jnp.exp(s - s_max)
        denom = jnp.sum(p, axis=-1, keepdims=True)
        p = p * pl.reciprocal(denom, approx=True)      # EUP, not VPU divide
        o = jnp.einsum("hmn,hnd->hmd", p.astype(PARAM_DTYPE), v,
                       preferred_element_type=jnp.float32).astype(PARAM_DTYPE)
        # per-head output projection, summed over heads == attn @ Wo
        proj = jnp.einsum("hmd,hdk->hmk", o, wo_ref[l],
                          preferred_element_type=jnp.float32)          # [H, M, D]
        h = h + jnp.sum(proj, axis=0)

        # ---------------- SwiGLU MLP (fused gate/up, 128-lane output) --------
        x = _rmsnorm(h, ln2_ref[l])
        h13 = jnp.dot(x, w13_ref[l], preferred_element_type=jnp.float32)  # [M, 2F]
        g = h13[:, :ffn_dim]
        u = h13[:, ffn_dim:]
        act = (g * jax.nn.sigmoid(g) * u).astype(PARAM_DTYPE)
        h = h + jnp.dot(act, w2_ref[l], preferred_element_type=jnp.float32)

    # ---- final RMSNorm + lane-dense (128-wide) lm_head ----------------------
    hf = _rmsnorm(h, lnf_ref[...])
    logits = jnp.dot(hf, lmhead_ref[...], preferred_element_type=jnp.float32)
    logits_ref[...] = logits.astype(logits_ref.dtype)


# ----------------------------- wrapper ---------------------------------------
def _decoder_call(ids2d, pos_full, bias, params):
    """Single pallas_call for the whole forward. Returns padded logits [M, 128]."""
    M = ids2d.shape[0]
    VP = params["lm_head"].shape[1]

    kernel = functools.partial(_fwd_kernel, n_layers=N_LAYERS,
                               n_heads=N_HEADS, ffn_dim=FFN_DIM)

    def full_block(arr):
        ndim = arr.ndim
        return pl.BlockSpec(arr.shape, lambda i, _n=ndim: (0,) * _n)

    inputs = (ids2d, pos_full, bias, params["tok_emb"],
              params["ln1"], params["wq"], params["wk"], params["wv"],
              params["wo"], params["ln2"], params["w13"], params["w2"],
              params["ln_f"], params["lm_head"])

    return pl.pallas_call(
        kernel,
        out_shape=jax.ShapeDtypeStruct((M, VP), PARAM_DTYPE),
        grid=(1,),                                    # single step: no per-layer grid
        in_specs=[full_block(a) for a in inputs],
        out_specs=pl.BlockSpec((M, VP), lambda i: (0, 0)),
        compiler_params=pltpu.CompilerParams(
            dimension_semantics=("arbitrary",),
            vmem_limit_bytes=32 * 1024 * 1024),       # explicit: v7x has 64 MiB VMEM
    )(*inputs)


# --------------------------- parameter init ----------------------------------
def init_params(key):
    def nrm(k, shape, scale=0.02):
        return scale * jax.random.normal(k, shape, dtype=jnp.float32)

    keys = jax.random.split(key, 3 + N_LAYERS)
    attn_scale = 1.0 / (HEAD_DIM ** 0.5)

    ln1, ln2, wq, wk, wv, wo, w13, w2 = ([] for _ in range(8))
    for l in range(N_LAYERS):
        lk = jax.random.split(keys[3 + l], 7)
        # Per-head weight layout [H, D, Dh] / [H, Dh, D] so the kernel needs no
        # activation reshapes; 1/sqrt(head_dim) folded into wq.
        Wq = nrm(lk[0], (D_MODEL, D_MODEL)) * attn_scale
        Wk = nrm(lk[1], (D_MODEL, D_MODEL))
        Wv = nrm(lk[2], (D_MODEL, D_MODEL))
        Wo = nrm(lk[3], (D_MODEL, D_MODEL))
        to_hddh = lambda W: W.reshape(D_MODEL, N_HEADS, HEAD_DIM).transpose(1, 0, 2)
        wq.append(to_hddh(Wq).astype(PARAM_DTYPE))
        wk.append(to_hddh(Wk).astype(PARAM_DTYPE))
        wv.append(to_hddh(Wv).astype(PARAM_DTYPE))
        wo.append(Wo.reshape(N_HEADS, HEAD_DIM, D_MODEL).astype(PARAM_DTYPE))
        w1 = nrm(lk[4], (D_MODEL, FFN_DIM))
        w3 = nrm(lk[5], (D_MODEL, FFN_DIM))
        w13.append(jnp.concatenate([w1, w3], axis=1).astype(PARAM_DTYPE))  # [D, 2F]
        w2.append(nrm(lk[6], (FFN_DIM, D_MODEL)).astype(PARAM_DTYPE))
        ln1.append(jnp.ones((1, D_MODEL), PARAM_DTYPE))
        ln2.append(jnp.ones((1, D_MODEL), PARAM_DTYPE))

    lm_head = nrm(keys[2], (D_MODEL, VOCAB)).astype(PARAM_DTYPE)
    lm_head_padded = jnp.zeros((D_MODEL, VOCAB_PAD), PARAM_DTYPE).at[:, :VOCAB].set(lm_head)

    return {
        "tok_emb": nrm(keys[0], (VOCAB, D_MODEL)).astype(PARAM_DTYPE),
        "pos_emb": nrm(keys[1], (SEQ, D_MODEL)).astype(PARAM_DTYPE),
        "ln1": jnp.stack(ln1), "ln2": jnp.stack(ln2),
        "wq": jnp.stack(wq), "wk": jnp.stack(wk), "wv": jnp.stack(wv),
        "wo": jnp.stack(wo),
        "w13": jnp.stack(w13), "w2": jnp.stack(w2),
        "ln_f": jnp.ones((1, D_MODEL), PARAM_DTYPE),
        "lm_head": lm_head_padded,
    }


# ------------------------------ forward --------------------------------------
@jax.jit
def hf_wrapper_forward(input_ids, params):
    """Equivalent of HfWrapper.forward: returns (logits, None, None)."""
    B, S = input_ids.shape
    M = B * S

    ids2d = input_ids.reshape(M, 1).astype(jnp.int32)
    pos_full = jnp.tile(params["pos_emb"][:S], (B, 1))               # [M, D]

    # Block-diagonal causal additive bias over the flattened [B*S] token axis:
    # a query attends only to keys in the same batch element at <= its position.
    row = jnp.arange(M)[:, None]
    col = jnp.arange(M)[None, :]
    allowed = (row // S == col // S) & (col <= row)
    bias = jnp.where(allowed, 0.0, NEG_INF).astype(jnp.float32)      # [M, M]

    logits_padded = _decoder_call(ids2d, pos_full, bias, params)     # [M, 128]
    logits = logits_padded[:, :VOCAB].reshape(B, S, VOCAB)
    return logits, None, None


# -------------------------------- main ---------------------------------------
if __name__ == "__main__":
    key = jax.random.PRNGKey(0)
    pkey, ikey = jax.random.split(key)
    params = init_params(pkey)
    input_ids = jax.random.randint(ikey, (BATCH, SEQ), 0, VOCAB, dtype=jnp.int32)

    logits, _, _ = hf_wrapper_forward(input_ids, params)
    logits = jax.block_until_ready(logits)

    assert logits.shape == (BATCH, SEQ, VOCAB), logits.shape
    assert logits.dtype == PARAM_DTYPE, logits.dtype
    assert bool(jnp.all(jnp.isfinite(logits.astype(jnp.float32))))
    print("KERNEL_OK")
</pallas_src>

<mosaic_0001>
module attributes {stable_mosaic.version = 11 : i64} {
  func.func @_fwd_kernel(%arg0: i32, %arg1: memref<16x1xi32, #tpu.memory_space<vmem>>, %arg2: memref<16x32xbf16, #tpu.memory_space<vmem>>, %arg3: memref<16x16xf32, #tpu.memory_space<vmem>>, %arg4: memref<64x32xbf16, #tpu.memory_space<vmem>>, %arg5: memref<2x1x32xbf16, #tpu.memory_space<vmem>>, %arg6: memref<2x4x32x8xbf16, #tpu.memory_space<vmem>>, %arg7: memref<2x4x32x8xbf16, #tpu.memory_space<vmem>>, %arg8: memref<2x4x32x8xbf16, #tpu.memory_space<vmem>>, %arg9: memref<2x4x8x32xbf16, #tpu.memory_space<vmem>>, %arg10: memref<2x1x32xbf16, #tpu.memory_space<vmem>>, %arg11: memref<2x32x128xbf16, #tpu.memory_space<vmem>>, %arg12: memref<2x64x32xbf16, #tpu.memory_space<vmem>>, %arg13: memref<1x32xbf16, #tpu.memory_space<vmem>>, %arg14: memref<32x128xbf16, #tpu.memory_space<vmem>>, %arg15: memref<16x128xbf16, #tpu.memory_space<vmem>>) attributes {dimension_semantics = [#tpu.dimension_semantics<arbitrary>], iteration_bounds = array<i64: 1>, scalar_prefetch = 0 : i64, scratch_operands = 0 : i64, tpu.core_type = #tpu.core_type<tc>, window_params = [{pipeline_mode = #tpu.pipeline_mode<synchronous>, transform_indices = @transform_0, window_bounds = array<i64: 16, 1>}, {pipeline_mode = #tpu.pipeline_mode<synchronous>, transform_indices = @transform_1, window_bounds = array<i64: 16, 32>}, {pipeline_mode = #tpu.pipeline_mode<synchronous>, transform_indices = @transform_2, window_bounds = array<i64: 16, 16>}, {pipeline_mode = #tpu.pipeline_mode<synchronous>, transform_indices = @transform_3, window_bounds = array<i64: 64, 32>}, {pipeline_mode = #tpu.pipeline_mode<synchronous>, transform_indices = @transform_4, window_bounds = array<i64: 2, 1, 32>}, {pipeline_mode = #tpu.pipeline_mode<synchronous>, transform_indices = @transform_5, window_bounds = array<i64: 2, 4, 32, 8>}, {pipeline_mode = #tpu.pipeline_mode<synchronous>, transform_indices = @transform_6, window_bounds = array<i64: 2, 4, 32, 8>}, {pipeline_mode = #tpu.pipeline_mode<synchronous>, transform_indices = @transform_7, window_bounds = array<i64: 2, 4, 32, 8>}, {pipeline_mode = #tpu.pipeline_mode<synchronous>, transform_indices = @transform_8, window_bounds = array<i64: 2, 4, 8, 32>}, {pipeline_mode = #tpu.pipeline_mode<synchronous>, transform_indices = @transform_9, window_bounds = array<i64: 2, 1, 32>}, {pipeline_mode = #tpu.pipeline_mode<synchronous>, transform_indices = @transform_10, window_bounds = array<i64: 2, 32, 128>}, {pipeline_mode = #tpu.pipeline_mode<synchronous>, transform_indices = @transform_11, window_bounds = array<i64: 2, 64, 32>}, {pipeline_mode = #tpu.pipeline_mode<synchronous>, transform_indices = @transform_12, window_bounds = array<i64: 1, 32>}, {pipeline_mode = #tpu.pipeline_mode<synchronous>, transform_indices = @transform_13, window_bounds = array<i64: 32, 128>}, {pipeline_mode = #tpu.pipeline_mode<synchronous>, transform_indices = @transform_14, window_bounds = array<i64: 16, 128>}]} {
    %0 = tpu.iota {dimensions = array<i32: 1>} : vector<16x64xi32>
    %c0 = arith.constant 0 : index
    %c0_0 = arith.constant 0 : index
    %1 = vector.load %arg1[%c0, %c0_0] : memref<16x1xi32, #tpu.memory_space<vmem>>, vector<16x1xi32>
    %2 = vector.broadcast %1 : vector<16x1xi32> to vector<16x64xi32>
    %3 = arith.cmpi eq, %2, %0 : vector<16x64xi32>
    %4 = arith.extui %3 : vector<16x64xi1> to vector<16x64xi32>
    %5 = arith.sitofp %4 : vector<16x64xi32> to vector<16x64xf32>
    %6 = arith.truncf %5 : vector<16x64xf32> to vector<16x64xbf16>
    %c0_1 = arith.constant 0 : index
    %c0_2 = arith.constant 0 : index
    %7 = vector.load %arg4[%c0_1, %c0_2] : memref<64x32xbf16, #tpu.memory_space<vmem>>, vector<64x32xbf16>
    %cst = arith.constant dense<0.000000e+00> : vector<16x32xf32>
    %8 = tpu.matmul %6, %7, %cst {dimension_numbers = #tpu.dot_dimension_numbers<[1], [0], [0], [1], [0, 0, 1, 1], [], []>} : vector<16x64xbf16>, vector<64x32xbf16>, vector<16x32xf32> -> vector<16x32xf32>
    %c0_3 = arith.constant 0 : index
    %c0_4 = arith.constant 0 : index
    %9 = vector.load %arg2[%c0_3, %c0_4] : memref<16x32xbf16, #tpu.memory_space<vmem>>, vector<16x32xbf16>
    %10 = arith.extf %9 : vector<16x32xbf16> to vector<16x32xf32>
    %11 = arith.addf %8, %10 : vector<16x32xf32>
    %c0_5 = arith.constant 0 : index
    %c0_6 = arith.constant 0 : index
    %12 = vector.load %arg3[%c0_5, %c0_6] : memref<16x16xf32, #tpu.memory_space<vmem>>, vector<16x16xf32>
    %c0_7 = arith.constant 0 : index
    %c0_8 = arith.constant 0 : index
    %c0_9 = arith.constant 0 : index
    %13 = vector.load %arg5[%c0_7, %c0_8, %c0_9] : memref<2x1x32xbf16, #tpu.memory_space<vmem>>, vector<1x1x32xbf16>
    %14 = vector.shape_cast %13 : vector<1x1x32xbf16> to vector<1x32xbf16>
    %15 = arith.mulf %11, %11 : vector<16x32xf32>
    %cst_10 = arith.constant dense<0.000000e+00> : vector<16xf32>
    %16 = vector.multi_reduction <add>, %15, %cst_10 [1] : vector<16x32xf32> to vector<16xf32>
    %17 = vector.shape_cast %16 : vector<16xf32> to vector<16x1xf32>
    %cst_11 = arith.constant 3.200000e+01 : f32
    %18 = vector.broadcast %cst_11 : f32 to vector<16x1xf32>
    %19 = arith.divf %17, %18 : vector<16x1xf32>
    %cst_12 = arith.constant 9.99999997E-7 : f32
    %20 = vector.broadcast %cst_12 : f32 to vector<16x1xf32>
    %21 = arith.addf %19, %20 : vector<16x1xf32>
    %22 = math.rsqrt %21 : vector<16x1xf32>
    %23 = vector.broadcast %22 : vector<16x1xf32> to vector<16x32xf32>
    %24 = arith.mulf %11, %23 : vector<16x32xf32>
    %25 = arith.extf %14 : vector<1x32xbf16> to vector<1x32xf32>
    %26 = vector.broadcast %25 : vector<1x32xf32> to vector<16x32xf32>
    %27 = arith.mulf %24, %26 : vector<16x32xf32>
    %28 = arith.truncf %27 : vector<16x32xf32> to vector<16x32xbf16>
    %29 = vector.shape_cast %28 : vector<16x32xbf16> to vector<1x16x32xbf16>
    %30 = vector.broadcast %29 : vector<1x16x32xbf16> to vector<4x16x32xbf16>
    %c0_13 = arith.constant 0 : index
    %c0_14 = arith.constant 0 : index
    %c0_15 = arith.constant 0 : index
    %c0_16 = arith.constant 0 : index
    %31 = vector.load %arg6[%c0_13, %c0_14, %c0_15, %c0_16] : memref<2x4x32x8xbf16, #tpu.memory_space<vmem>>, vector<1x4x32x8xbf16>
    %32 = vector.shape_cast %31 : vector<1x4x32x8xbf16> to vector<4x32x8xbf16>
    "tpu.trace_start"() <{level = 10 : i32, message = "hmd,hdk->hmk"}> : () -> ()
    %cst_17 = arith.constant dense<0.000000e+00> : vector<4x16x8xf32>
    %33 = tpu.matmul %30, %32, %cst_17 {dimension_numbers = #tpu.dot_dimension_numbers<[2], [1], [1], [2], [0, 0, 0, 1, 1, 2], [0], [0]>} : vector<4x16x32xbf16>, vector<4x32x8xbf16>, vector<4x16x8xf32> -> vector<4x16x8xf32>
    "tpu.trace_stop"() : () -> ()
    %34 = arith.truncf %33 : vector<4x16x8xf32> to vector<4x16x8xbf16>
    %c0_18 = arith.constant 0 : index
    %c0_19 = arith.constant 0 : index
    %c0_20 = arith.constant 0 : index
    %c0_21 = arith.constant 0 : index
    %35 = vector.load %arg7[%c0_18, %c0_19, %c0_20, %c0_21] : memref<2x4x32x8xbf16, #tpu.memory_space<vmem>>, vector<1x4x32x8xbf16>
    %36 = vector.shape_cast %35 : vector<1x4x32x8xbf16> to vector<4x32x8xbf16>
    "tpu.trace_start"() <{level = 10 : i32, message = "hmd,hdk->hmk"}> : () -> ()
    %cst_22 = arith.constant dense<0.000000e+00> : vector<4x16x8xf32>
    %37 = tpu.matmul %30, %36, %cst_22 {dimension_numbers = #tpu.dot_dimension_numbers<[2], [1], [1], [2], [0, 0, 0, 1, 1, 2], [0], [0]>} : vector<4x16x32xbf16>, vector<4x32x8xbf16>, vector<4x16x8xf32> -> vector<4x16x8xf32>
    "tpu.trace_stop"() : () -> ()
    %38 = arith.truncf %37 : vector<4x16x8xf32> to vector<4x16x8xbf16>
    %c0_23 = arith.constant 0 : index
    %c0_24 = arith.constant 0 : index
    %c0_25 = arith.constant 0 : index
    %c0_26 = arith.constant 0 : index
    %39 = vector.load %arg8[%c0_23, %c0_24, %c0_25, %c0_26] : memref<2x4x32x8xbf16, #tpu.memory_space<vmem>>, vector<1x4x32x8xbf16>
    %40 = vector.shape_cast %39 : vector<1x4x32x8xbf16> to vector<4x32x8xbf16>
    "tpu.trace_start"() <{level = 10 : i32, message = "hmd,hdk->hmk"}> : () -> ()
    %cst_27 = arith.constant dense<0.000000e+00> : vector<4x16x8xf32>
    %41 = tpu.matmul %30, %40, %cst_27 {dimension_numbers = #tpu.dot_dimension_numbers<[2], [1], [1], [2], [0, 0, 0, 1, 1, 2], [0], [0]>} : vector<4x16x32xbf16>, vector<4x32x8xbf16>, vector<4x16x8xf32> -> vector<4x16x8xf32>
    "tpu.trace_stop"() : () -> ()
    %42 = arith.truncf %41 : vector<4x16x8xf32> to vector<4x16x8xbf16>
    "tpu.trace_start"() <{level = 10 : i32, message = "hmd,hnd->hmn"}> : () -> ()
    %cst_28 = arith.constant dense<0.000000e+00> : vector<4x16x16xf32>
    %43 = tpu.matmul %34, %38, %cst_28 {dimension_numbers = #tpu.dot_dimension_numbers<[2], [2], [1], [1], [0, 0, 0, 1, 1, 1], [0], [0]>} : vector<4x16x8xbf16>, vector<4x16x8xbf16>, vector<4x16x16xf32> -> vector<4x16x16xf32>
    "tpu.trace_stop"() : () -> ()
    %44 = vector.shape_cast %12 : vector<16x16xf32> to vector<1x16x16xf32>
    %45 = vector.broadcast %44 : vector<1x16x16xf32> to vector<4x16x16xf32>
    %46 = arith.addf %43, %45 : vector<4x16x16xf32>
    %cst_29 = arith.constant dense<0xFF800000> : vector<4x16xf32>
    %47 = vector.multi_reduction <maximumf>, %46, %cst_29 [2] : vector<4x16x16xf32> to vector<4x16xf32>
    %48 = vector.shape_cast %47 : vector<4x16xf32> to vector<4x16x1xf32>
    %49 = vector.broadcast %48 : vector<4x16x1xf32> to vector<4x16x16xf32>
    %50 = arith.subf %46, %49 : vector<4x16x16xf32>
    %51 = math.exp %50 : vector<4x16x16xf32>
    %cst_30 = arith.constant dense<0.000000e+00> : vector<4x16xf32>
    %52 = vector.multi_reduction <add>, %51, %cst_30 [2] : vector<4x16x16xf32> to vector<4x16xf32>
    %53 = vector.shape_cast %52 : vector<4x16xf32> to vector<4x16x1xf32>
    %54 = tpu.reciprocal %53 {approx = true} : vector<4x16x1xf32> -> vector<4x16x1xf32>
    %55 = vector.broadcast %54 : vector<4x16x1xf32> to vector<4x16x16xf32>
    %56 = arith.mulf %51, %55 : vector<4x16x16xf32>
    %57 = arith.truncf %56 : vector<4x16x16xf32> to vector<4x16x16xbf16>
    "tpu.trace_start"() <{level = 10 : i32, message = "hmn,hnd->hmd"}> : () -> ()
    %cst_31 = arith.constant dense<0.000000e+00> : vector<4x16x8xf32>
    %58 = tpu.matmul %57, %42, %cst_31 {dimension_numbers = #tpu.dot_dimension_numbers<[2], [1], [1], [2], [0, 0, 0, 1, 1, 2], [0], [0]>} : vector<4x16x16xbf16>, vector<4x16x8xbf16>, vector<4x16x8xf32> -> vector<4x16x8xf32>
    "tpu.trace_stop"() : () -> ()
    %59 = arith.truncf %58 : vector<4x16x8xf32> to vector<4x16x8xbf16>
    %c0_32 = arith.constant 0 : index
    %c0_33 = arith.constant 0 : index
    %c0_34 = arith.constant 0 : index
    %c0_35 = arith.constant 0 : index
    %60 = vector.load %arg9[%c0_32, %c0_33, %c0_34, %c0_35] : memref<2x4x8x32xbf16, #tpu.memory_space<vmem>>, vector<1x4x8x32xbf16>
    %61 = vector.shape_cast %60 : vector<1x4x8x32xbf16> to vector<4x8x32xbf16>
    "tpu.trace_start"() <{level = 10 : i32, message = "hmd,hdk->hmk"}> : () -> ()
    %cst_36 = arith.constant dense<0.000000e+00> : vector<4x16x32xf32>
    %62 = tpu.matmul %59, %61, %cst_36 {dimension_numbers = #tpu.dot_dimension_numbers<[2], [1], [1], [2], [0, 0, 0, 1, 1, 2], [0], [0]>} : vector<4x16x8xbf16>, vector<4x8x32xbf16>, vector<4x16x32xf32> -> vector<4x16x32xf32>
    "tpu.trace_stop"() : () -> ()
    %cst_37 = arith.constant dense<0.000000e+00> : vector<16x32xf32>
    %63 = vector.multi_reduction <add>, %62, %cst_37 [0] : vector<4x16x32xf32> to vector<16x32xf32>
    %64 = arith.addf %11, %63 : vector<16x32xf32>
    %c0_38 = arith.constant 0 : index
    %c0_39 = arith.constant 0 : index
    %c0_40 = arith.constant 0 : index
    %65 = vector.load %arg10[%c0_38, %c0_39, %c0_40] : memref<2x1x32xbf16, #tpu.memory_space<vmem>>, vector<1x1x32xbf16>
    %66 = vector.shape_cast %65 : vector<1x1x32xbf16> to vector<1x32xbf16>
    %67 = arith.mulf %64, %64 : vector<16x32xf32>
    %cst_41 = arith.constant dense<0.000000e+00> : vector<16xf32>
    %68 = vector.multi_reduction <add>, %67, %cst_41 [1] : vector<16x32xf32> to vector<16xf32>
    %69 = vector.shape_cast %68 : vector<16xf32> to vector<16x1xf32>
    %cst_42 = arith.constant 3.200000e+01 : f32
    %70 = vector.broadcast %cst_42 : f32 to vector<16x1xf32>
    %71 = arith.divf %69, %70 : vector<16x1xf32>
    %cst_43 = arith.constant 9.99999997E-7 : f32
    %72 = vector.broadcast %cst_43 : f32 to vector<16x1xf32>
    %73 = arith.addf %71, %72 : vector<16x1xf32>
    %74 = math.rsqrt %73 : vector<16x1xf32>
    %75 = vector.broadcast %74 : vector<16x1xf32> to vector<16x32xf32>
    %76 = arith.mulf %64, %75 : vector<16x32xf32>
    %77 = arith.extf %66 : vector<1x32xbf16> to vector<1x32xf32>
    %78 = vector.broadcast %77 : vector<1x32xf32> to vector<16x32xf32>
    %79 = arith.mulf %76, %78 : vector<16x32xf32>
    %80 = arith.truncf %79 : vector<16x32xf32> to vector<16x32xbf16>
    %c0_44 = arith.constant 0 : index
    %c0_45 = arith.constant 0 : index
    %c0_46 = arith.constant 0 : index
    %81 = vector.load %arg11[%c0_44, %c0_45, %c0_46] : memref<2x32x128xbf16, #tpu.memory_space<vmem>>, vector<1x32x128xbf16>
    %82 = vector.shape_cast %81 : vector<1x32x128xbf16> to vector<32x128xbf16>
    %cst_47 = arith.constant dense<0.000000e+00> : vector<16x128xf32>
    %83 = tpu.matmul %80, %82, %cst_47 {dimension_numbers = #tpu.dot_dimension_numbers<[1], [0], [0], [1], [0, 0, 1, 1], [], []>} : vector<16x32xbf16>, vector<32x128xbf16>, vector<16x128xf32> -> vector<16x128xf32>
    %84 = vector.extract_strided_slice %83 {offsets = [0, 0], sizes = [16, 64], strides = [1, 1]} : vector<16x128xf32> to vector<16x64xf32>
    %85 = vector.extract_strided_slice %83 {offsets = [0, 64], sizes = [16, 64], strides = [1, 1]} : vector<16x128xf32> to vector<16x64xf32>
    %86 = arith.negf %84 : vector<16x64xf32>
    %87 = math.exp %86 : vector<16x64xf32>
    %cst_48 = arith.constant 1.000000e+00 : f32
    %88 = vector.broadcast %cst_48 : f32 to vector<16x64xf32>
    %89 = arith.addf %88, %87 : vector<16x64xf32>
    %90 = arith.divf %88, %89 : vector<16x64xf32>
    %91 = arith.mulf %84, %90 : vector<16x64xf32>
    %92 = arith.mulf %91, %85 : vector<16x64xf32>
    %93 = arith.truncf %92 : vector<16x64xf32> to vector<16x64xbf16>
    %c0_49 = arith.constant 0 : index
    %c0_50 = arith.constant 0 : index
    %c0_51 = arith.constant 0 : index
    %94 = vector.load %arg12[%c0_49, %c0_50, %c0_51] : memref<2x64x32xbf16, #tpu.memory_space<vmem>>, vector<1x64x32xbf16>
    %95 = vector.shape_cast %94 : vector<1x64x32xbf16> to vector<64x32xbf16>
    %cst_52 = arith.constant dense<0.000000e+00> : vector<16x32xf32>
    %96 = tpu.matmul %93, %95, %cst_52 {dimension_numbers = #tpu.dot_dimension_numbers<[1], [0], [0], [1], [0, 0, 1, 1], [], []>} : vector<16x64xbf16>, vector<64x32xbf16>, vector<16x32xf32> -> vector<16x32xf32>
    %97 = arith.addf %64, %96 : vector<16x32xf32>
    %c1 = arith.constant 1 : index
    %c0_53 = arith.constant 0 : index
    %c0_54 = arith.constant 0 : index
    %98 = vector.load %arg5[%c1, %c0_53, %c0_54] : memref<2x1x32xbf16, #tpu.memory_space<vmem>>, vector<1x1x32xbf16>
    %99 = vector.shape_cast %98 : vector<1x1x32xbf16> to vector<1x32xbf16>
    %100 = arith.mulf %97, %97 : vector<16x32xf32>
    %cst_55 = arith.constant dense<0.000000e+00> : vector<16xf32>
    %101 = vector.multi_reduction <add>, %100, %cst_55 [1] : vector<16x32xf32> to vector<16xf32>
    %102 = vector.shape_cast %101 : vector<16xf32> to vector<16x1xf32>
    %cst_56 = arith.constant 3.200000e+01 : f32
    %103 = vector.broadcast %cst_56 : f32 to vector<16x1xf32>
    %104 = arith.divf %102, %103 : vector<16x1xf32>
    %cst_57 = arith.constant 9.99999997E-7 : f32
    %105 = vector.broadcast %cst_57 : f32 to vector<16x1xf32>
    %106 = arith.addf %104, %105 : vector<16x1xf32>
    %107 = math.rsqrt %106 : vector<16x1xf32>
    %108 = vector.broadcast %107 : vector<16x1xf32> to vector<16x32xf32>
    %109 = arith.mulf %97, %108 : vector<16x32xf32>
    %110 = arith.extf %99 : vector<1x32xbf16> to vector<1x32xf32>
    %111 = vector.broadcast %110 : vector<1x32xf32> to vector<16x32xf32>
    %112 = arith.mulf %109, %111 : vector<16x32xf32>
    %113 = arith.truncf %112 : vector<16x32xf32> to vector<16x32xbf16>
    %114 = vector.shape_cast %113 : vector<16x32xbf16> to vector<1x16x32xbf16>
    %115 = vector.broadcast %114 : vector<1x16x32xbf16> to vector<4x16x32xbf16>
    %c1_58 = arith.constant 1 : index
    %c0_59 = arith.constant 0 : index
    %c0_60 = arith.constant 0 : index
    %c0_61 = arith.constant 0 : index
    %116 = vector.load %arg6[%c1_58, %c0_59, %c0_60, %c0_61] : memref<2x4x32x8xbf16, #tpu.memory_space<vmem>>, vector<1x4x32x8xbf16>
    %117 = vector.shape_cast %116 : vector<1x4x32x8xbf16> to vector<4x32x8xbf16>
    "tpu.trace_start"() <{level = 10 : i32, message = "hmd,hdk->hmk"}> : () -> ()
    %cst_62 = arith.constant dense<0.000000e+00> : vector<4x16x8xf32>
    %118 = tpu.matmul %115, %117, %cst_62 {dimension_numbers = #tpu.dot_dimension_numbers<[2], [1], [1], [2], [0, 0, 0, 1, 1, 2], [0], [0]>} : vector<4x16x32xbf16>, vector<4x32x8xbf16>, vector<4x16x8xf32> -> vector<4x16x8xf32>
    "tpu.trace_stop"() : () -> ()
    %119 = arith.truncf %118 : vector<4x16x8xf32> to vector<4x16x8xbf16>
    %c1_63 = arith.constant 1 : index
    %c0_64 = arith.constant 0 : index
    %c0_65 = arith.constant 0 : index
    %c0_66 = arith.constant 0 : index
    %120 = vector.load %arg7[%c1_63, %c0_64, %c0_65, %c0_66] : memref<2x4x32x8xbf16, #tpu.memory_space<vmem>>, vector<1x4x32x8xbf16>
    %121 = vector.shape_cast %120 : vector<1x4x32x8xbf16> to vector<4x32x8xbf16>
    "tpu.trace_start"() <{level = 10 : i32, message = "hmd,hdk->hmk"}> : () -> ()
    %cst_67 = arith.constant dense<0.000000e+00> : vector<4x16x8xf32>
    %122 = tpu.matmul %115, %121, %cst_67 {dimension_numbers = #tpu.dot_dimension_numbers<[2], [1], [1], [2], [0, 0, 0, 1, 1, 2], [0], [0]>} : vector<4x16x32xbf16>, vector<4x32x8xbf16>, vector<4x16x8xf32> -> vector<4x16x8xf32>
    "tpu.trace_stop"() : () -> ()
    %123 = arith.truncf %122 : vector<4x16x8xf32> to vector<4x16x8xbf16>
    %c1_68 = arith.constant 1 : index
    %c0_69 = arith.constant 0 : index
    %c0_70 = arith.constant 0 : index
    %c0_71 = arith.constant 0 : index
    %124 = vector.load %arg8[%c1_68, %c0_69, %c0_70, %c0_71] : memref<2x4x32x8xbf16, #tpu.memory_space<vmem>>, vector<1x4x32x8xbf16>
    %125 = vector.shape_cast %124 : vector<1x4x32x8xbf16> to vector<4x32x8xbf16>
    "tpu.trace_start"() <{level = 10 : i32, message = "hmd,hdk->hmk"}> : () -> ()
    %cst_72 = arith.constant dense<0.000000e+00> : vector<4x16x8xf32>
    %126 = tpu.matmul %115, %125, %cst_72 {dimension_numbers = #tpu.dot_dimension_numbers<[2], [1], [1], [2], [0, 0, 0, 1, 1, 2], [0], [0]>} : vector<4x16x32xbf16>, vector<4x32x8xbf16>, vector<4x16x8xf32> -> vector<4x16x8xf32>
    "tpu.trace_stop"() : () -> ()
    %127 = arith.truncf %126 : vector<4x16x8xf32> to vector<4x16x8xbf16>
    "tpu.trace_start"() <{level = 10 : i32, message = "hmd,hnd->hmn"}> : () -> ()
    %cst_73 = arith.constant dense<0.000000e+00> : vector<4x16x16xf32>
    %128 = tpu.matmul %119, %123, %cst_73 {dimension_numbers = #tpu.dot_dimension_numbers<[2], [2], [1], [1], [0, 0, 0, 1, 1, 1], [0], [0]>} : vector<4x16x8xbf16>, vector<4x16x8xbf16>, vector<4x16x16xf32> -> vector<4x16x16xf32>
    "tpu.trace_stop"() : () -> ()
    %129 = vector.shape_cast %12 : vector<16x16xf32> to vector<1x16x16xf32>
    %130 = vector.broadcast %129 : vector<1x16x16xf32> to vector<4x16x16xf32>
    %131 = arith.addf %128, %130 : vector<4x16x16xf32>
    %cst_74 = arith.constant dense<0xFF800000> : vector<4x16xf32>
    %132 = vector.multi_reduction <maximumf>, %131, %cst_74 [2] : vector<4x16x16xf32> to vector<4x16xf32>
    %133 = vector.shape_cast %132 : vector<4x16xf32> to vector<4x16x1xf32>
    %134 = vector.broadcast %133 : vector<4x16x1xf32> to vector<4x16x16xf32>
    %135 = arith.subf %131, %134 : vector<4x16x16xf32>
    %136 = math.exp %135 : vector<4x16x16xf32>
    %cst_75 = arith.constant dense<0.000000e+00> : vector<4x16xf32>
    %137 = vector.multi_reduction <add>, %136, %cst_75 [2] : vector<4x16x16xf32> to vector<4x16xf32>
    %138 = vector.shape_cast %137 : vector<4x16xf32> to vector<4x16x1xf32>
    %139 = tpu.reciprocal %138 {approx = true} : vector<4x16x1xf32> -> vector<4x16x1xf32>
    %140 = vector.broadcast %139 : vector<4x16x1xf32> to vector<4x16x16xf32>
    %141 = arith.mulf %136, %140 : vector<4x16x16xf32>
    %142 = arith.truncf %141 : vector<4x16x16xf32> to vector<4x16x16xbf16>
    "tpu.trace_start"() <{level = 10 : i32, message = "hmn,hnd->hmd"}> : () -> ()
    %cst_76 = arith.constant dense<0.000000e+00> : vector<4x16x8xf32>
    %143 = tpu.matmul %142, %127, %cst_76 {dimension_numbers = #tpu.dot_dimension_numbers<[2], [1], [1], [2], [0, 0, 0, 1, 1, 2], [0], [0]>} : vector<4x16x16xbf16>, vector<4x16x8xbf16>, vector<4x16x8xf32> -> vector<4x16x8xf32>
    "tpu.trace_stop"() : () -> ()
    %144 = arith.truncf %143 : vector<4x16x8xf32> to vector<4x16x8xbf16>
    %c1_77 = arith.constant 1 : index
    %c0_78 = arith.constant 0 : index
    %c0_79 = arith.constant 0 : index
    %c0_80 = arith.constant 0 : index
    %145 = vector.load %arg9[%c1_77, %c0_78, %c0_79, %c0_80] : memref<2x4x8x32xbf16, #tpu.memory_space<vmem>>, vector<1x4x8x32xbf16>
    %146 = vector.shape_cast %145 : vector<1x4x8x32xbf16> to vector<4x8x32xbf16>
    "tpu.trace_start"() <{level = 10 : i32, message = "hmd,hdk->hmk"}> : () -> ()
    %cst_81 = arith.constant dense<0.000000e+00> : vector<4x16x32xf32>
    %147 = tpu.matmul %144, %146, %cst_81 {dimension_numbers = #tpu.dot_dimension_numbers<[2], [1], [1], [2], [0, 0, 0, 1, 1, 2], [0], [0]>} : vector<4x16x8xbf16>, vector<4x8x32xbf16>, vector<4x16x32xf32> -> vector<4x16x32xf32>
    "tpu.trace_stop"() : () -> ()
    %cst_82 = arith.constant dense<0.000000e+00> : vector<16x32xf32>
    %148 = vector.multi_reduction <add>, %147, %cst_82 [0] : vector<4x16x32xf32> to vector<16x32xf32>
    %149 = arith.addf %97, %148 : vector<16x32xf32>
    %c1_83 = arith.constant 1 : index
    %c0_84 = arith.constant 0 : index
    %c0_85 = arith.constant 0 : index
    %150 = vector.load %arg10[%c1_83, %c0_84, %c0_85] : memref<2x1x32xbf16, #tpu.memory_space<vmem>>, vector<1x1x32xbf16>
    %151 = vector.shape_cast %150 : vector<1x1x32xbf16> to vector<1x32xbf16>
    %152 = arith.mulf %149, %149 : vector<16x32xf32>
    %cst_86 = arith.constant dense<0.000000e+00> : vector<16xf32>
    %153 = vector.multi_reduction <add>, %152, %cst_86 [1] : vector<16x32xf32> to vector<16xf32>
    %154 = vector.shape_cast %153 : vector<16xf32> to vector<16x1xf32>
    %cst_87 = arith.constant 3.200000e+01 : f32
    %155 = vector.broadcast %cst_87 : f32 to vector<16x1xf32>
    %156 = arith.divf %154, %155 : vector<16x1xf32>
    %cst_88 = arith.constant 9.99999997E-7 : f32
    %157 = vector.broadcast %cst_88 : f32 to vector<16x1xf32>
    %158 = arith.addf %156, %157 : vector<16x1xf32>
    %159 = math.rsqrt %158 : vector<16x1xf32>
    %160 = vector.broadcast %159 : vector<16x1xf32> to vector<16x32xf32>
    %161 = arith.mulf %149, %160 : vector<16x32xf32>
    %162 = arith.extf %151 : vector<1x32xbf16> to vector<1x32xf32>
    %163 = vector.broadcast %162 : vector<1x32xf32> to vector<16x32xf32>
    %164 = arith.mulf %161, %163 : vector<16x32xf32>
    %165 = arith.truncf %164 : vector<16x32xf32> to vector<16x32xbf16>
    %c1_89 = arith.constant 1 : index
    %c0_90 = arith.constant 0 : index
    %c0_91 = arith.constant 0 : index
    %166 = vector.load %arg11[%c1_89, %c0_90, %c0_91] : memref<2x32x128xbf16, #tpu.memory_space<vmem>>, vector<1x32x128xbf16>
    %167 = vector.shape_cast %166 : vector<1x32x128xbf16> to vector<32x128xbf16>
    %cst_92 = arith.constant dense<0.000000e+00> : vector<16x128xf32>
    %168 = tpu.matmul %165, %167, %cst_92 {dimension_numbers = #tpu.dot_dimension_numbers<[1], [0], [0], [1], [0, 0, 1, 1], [], []>} : vector<16x32xbf16>, vector<32x128xbf16>, vector<16x128xf32> -> vector<16x128xf32>
    %169 = vector.extract_strided_slice %168 {offsets = [0, 0], sizes = [16, 64], strides = [1, 1]} : vector<16x128xf32> to vector<16x64xf32>
    %170 = vector.extract_strided_slice %168 {offsets = [0, 64], sizes = [16, 64], strides = [1, 1]} : vector<16x128xf32> to vector<16x64xf32>
    %171 = arith.negf %169 : vector<16x64xf32>
    %172 = math.exp %171 : vector<16x64xf32>
    %cst_93 = arith.constant 1.000000e+00 : f32
    %173 = vector.broadcast %cst_93 : f32 to vector<16x64xf32>
    %174 = arith.addf %173, %172 : vector<16x64xf32>
    %175 = arith.divf %173, %174 : vector<16x64xf32>
    %176 = arith.mulf %169, %175 : vector<16x64xf32>
    %177 = arith.mulf %176, %170 : vector<16x64xf32>
    %178 = arith.truncf %177 : vector<16x64xf32> to vector<16x64xbf16>
    %c1_94 = arith.constant 1 : index
    %c0_95 = arith.constant 0 : index
    %c0_96 = arith.constant 0 : index
    %179 = vector.load %arg12[%c1_94, %c0_95, %c0_96] : memref<2x64x32xbf16, #tpu.memory_space<vmem>>, vector<1x64x32xbf16>
    %180 = vector.shape_cast %179 : vector<1x64x32xbf16> to vector<64x32xbf16>
    %cst_97 = arith.constant dense<0.000000e+00> : vector<16x32xf32>
    %181 = tpu.matmul %178, %180, %cst_97 {dimension_numbers = #tpu.dot_dimension_numbers<[1], [0], [0], [1], [0, 0, 1, 1], [], []>} : vector<16x64xbf16>, vector<64x32xbf16>, vector<16x32xf32> -> vector<16x32xf32>
    %182 = arith.addf %149, %181 : vector<16x32xf32>
    %c0_98 = arith.constant 0 : index
    %c0_99 = arith.constant 0 : index
    %183 = vector.load %arg13[%c0_98, %c0_99] : memref<1x32xbf16, #tpu.memory_space<vmem>>, vector<1x32xbf16>
    %184 = arith.mulf %182, %182 : vector<16x32xf32>
    %cst_100 = arith.constant dense<0.000000e+00> : vector<16xf32>
    %185 = vector.multi_reduction <add>, %184, %cst_100 [1] : vector<16x32xf32> to vector<16xf32>
    %186 = vector.shape_cast %185 : vector<16xf32> to vector<16x1xf32>
    %cst_101 = arith.constant 3.200000e+01 : f32
    %187 = vector.broadcast %cst_101 : f32 to vector<16x1xf32>
    %188 = arith.divf %186, %187 : vector<16x1xf32>
    %cst_102 = arith.constant 9.99999997E-7 : f32
    %189 = vector.broadcast %cst_102 : f32 to vector<16x1xf32>
    %190 = arith.addf %188, %189 : vector<16x1xf32>
    %191 = math.rsqrt %190 : vector<16x1xf32>
    %192 = vector.broadcast %191 : vector<16x1xf32> to vector<16x32xf32>
    %193 = arith.mulf %182, %192 : vector<16x32xf32>
    %194 = arith.extf %183 : vector<1x32xbf16> to vector<1x32xf32>
    %195 = vector.broadcast %194 : vector<1x32xf32> to vector<16x32xf32>
    %196 = arith.mulf %193, %195 : vector<16x32xf32>
    %197 = arith.truncf %196 : vector<16x32xf32> to vector<16x32xbf16>
    %c0_103 = arith.constant 0 : index
    %c0_104 = arith.constant 0 : index
    %198 = vector.load %arg14[%c0_103, %c0_104] : memref<32x128xbf16, #tpu.memory_space<vmem>>, vector<32x128xbf16>
    %cst_105 = arith.constant dense<0.000000e+00> : vector<16x128xf32>
    %199 = tpu.matmul %197, %198, %cst_105 {dimension_numbers = #tpu.dot_dimension_numbers<[1], [0], [0], [1], [0, 0, 1, 1], [], []>} : vector<16x32xbf16>, vector<32x128xbf16>, vector<16x128xf32> -> vector<16x128xf32>
    %200 = arith.truncf %199 : vector<16x128xf32> to vector<16x128xbf16>
    %c0_106 = arith.constant 0 : index
    %c0_107 = arith.constant 0 : index
    %201 = vector.load %arg15[%c0_106, %c0_107] : memref<16x128xbf16, #tpu.memory_space<vmem>>, vector<16x128xbf16>
    tpu.vector_store %arg15[%c0_106, %c0_107], %200 {strides = array<i32>} : memref<16x128xbf16, #tpu.memory_space<vmem>>, vector<16x128xbf16>,
    return
  }
  func.func @transform_0(%arg0: i32) -> (i32, i32) {
    %c0_i32 = arith.constant 0 : i32
    %c0_i32_0 = arith.constant 0 : i32
    %c0_i32_1 = arith.constant 0 : i32
    return %c0_i32, %c0_i32_0 : i32, i32
  }
  func.func @transform_1(%arg0: i32) -> (i32, i32) {
    %c0_i32 = arith.constant 0 : i32
    %c0_i32_0 = arith.constant 0 : i32
    %c0_i32_1 = arith.constant 0 : i32
    return %c0_i32, %c0_i32_0 : i32, i32
  }
  func.func @transform_2(%arg0: i32) -> (i32, i32) {
    %c0_i32 = arith.constant 0 : i32
    %c0_i32_0 = arith.constant 0 : i32
    %c0_i32_1 = arith.constant 0 : i32
    return %c0_i32, %c0_i32_0 : i32, i32
  }
  func.func @transform_3(%arg0: i32) -> (i32, i32) {
    %c0_i32 = arith.constant 0 : i32
    %c0_i32_0 = arith.constant 0 : i32
    %c0_i32_1 = arith.constant 0 : i32
    return %c0_i32, %c0_i32_0 : i32, i32
  }
  func.func @transform_4(%arg0: i32) -> (i32, i32, i32) {
    %c0_i32 = arith.constant 0 : i32
    %c0_i32_0 = arith.constant 0 : i32
    %c0_i32_1 = arith.constant 0 : i32
    %c0_i32_2 = arith.constant 0 : i32
    return %c0_i32, %c0_i32_0, %c0_i32_1 : i32, i32, i32
  }
  func.func @transform_5(%arg0: i32) -> (i32, i32, i32, i32) {
    %c0_i32 = arith.constant 0 : i32
    %c0_i32_0 = arith.constant 0 : i32
    %c0_i32_1 = arith.constant 0 : i32
    %c0_i32_2 = arith.constant 0 : i32
    %c0_i32_3 = arith.constant 0 : i32
    return %c0_i32, %c0_i32_0, %c0_i32_1, %c0_i32_2 : i32, i32, i32, i32
  }
  func.func @transform_6(%arg0: i32) -> (i32, i32, i32, i32) {
    %c0_i32 = arith.constant 0 : i32
    %c0_i32_0 = arith.constant 0 : i32
    %c0_i32_1 = arith.constant 0 : i32
    %c0_i32_2 = arith.constant 0 : i32
    %c0_i32_3 = arith.constant 0 : i32
    return %c0_i32, %c0_i32_0, %c0_i32_1, %c0_i32_2 : i32, i32, i32, i32
  }
  func.func @transform_7(%arg0: i32) -> (i32, i32, i32, i32) {
    %c0_i32 = arith.constant 0 : i32
    %c0_i32_0 = arith.constant 0 : i32
    %c0_i32_1 = arith.constant 0 : i32
    %c0_i32_2 = arith.constant 0 : i32
    %c0_i32_3 = arith.constant 0 : i32
    return %c0_i32, %c0_i32_0, %c0_i32_1, %c0_i32_2 : i32, i32, i32, i32
  }
  func.func @transform_8(%arg0: i32) -> (i32, i32, i32, i32) {
    %c0_i32 = arith.constant 0 : i32
    %c0_i32_0 = arith.constant 0 : i32
    %c0_i32_1 = arith.constant 0 : i32
    %c0_i32_2 = arith.constant 0 : i32
    %c0_i32_3 = arith.constant 0 : i32
    return %c0_i32, %c0_i32_0, %c0_i32_1, %c0_i32_2 : i32, i32, i32, i32
  }
  func.func @transform_9(%arg0: i32) -> (i32, i32, i32) {
    %c0_i32 = arith.constant 0 : i32
    %c0_i32_0 = arith.constant 0 : i32
    %c0_i32_1 = arith.constant 0 : i32
    %c0_i32_2 = arith.constant 0 : i32
    return %c0_i32, %c0_i32_0, %c0_i32_1 : i32, i32, i32
  }
  func.func @transform_10(%arg0: i32) -> (i32, i32, i32) {
    %c0_i32 = arith.constant 0 : i32
    %c0_i32_0 = arith.constant 0 : i32
    %c0_i32_1 = arith.constant 0 : i32
    %c0_i32_2 = arith.constant 0 : i32
    return %c0_i32, %c0_i32_0, %c0_i32_1 : i32, i32, i32
  }
  func.func @transform_11(%arg0: i32) -> (i32, i32, i32) {
    %c0_i32 = arith.constant 0 : i32
    %c0_i32_0 = arith.constant 0 : i32
    %c0_i32_1 = arith.constant 0 : i32
    %c0_i32_2 = arith.constant 0 : i32
    return %c0_i32, %c0_i32_0, %c0_i32_1 : i32, i32, i32
  }
  func.func @transform_12(%arg0: i32) -> (i32, i32) {
    %c0_i32 = arith.constant 0 : i32
    %c0_i32_0 = arith.constant 0 : i32
    %c0_i32_1 = arith.constant 0 : i32
    return %c0_i32, %c0_i32_0 : i32, i32
  }
  func.func @transform_13(%arg0: i32) -> (i32, i32) {
    %c0_i32 = arith.constant 0 : i32
    %c0_i32_0 = arith.constant 0 : i32
    %c0_i32_1 = arith.constant 0 : i32
    return %c0_i32, %c0_i32_0 : i32, i32
  }
  func.func @transform_14(%arg0: i32) -> (i32, i32) {
    %c0_i32 = arith.constant 0 : i32
    %c0_i32_0 = arith.constant 0 : i32
    %c0_i32_1 = arith.constant 0 : i32
    return %c0_i32, %c0_i32_0 : i32, i32
  }
}

</mosaic_0001>

<llo_original>
// kernel: hf_wrapper_forward.1
$region0: #{hf_wrapper_forward.1}
  #allocation0 [shape = 'u32[]', space=smem, size = 0x4, offset = 0x4, fixed_abs, tag = 'smem constant byte address 0x4 - core index']
  #allocation1 [shape = 'u32[144,128]{1,0:T(1,128)}', space=vmem, size = 0x12000, scoped, tag = 'internal scratch']
  %s0 = inlined_call_operand.vmem [shape: s32[16,1], index: 0, kind: input, shape index: {}]
  %s1 = inlined_call_operand.vmem [shape: bf16[16,32], index: 1, kind: input, shape index: {}]
  %s2 = inlined_call_operand.vmem [shape: f32[16,16], index: 2, kind: input, shape index: {}]
  %s3 = inlined_call_operand.vmem [shape: bf16[64,32], index: 3, kind: input, shape index: {}]
  %s4 = inlined_call_operand.vmem [shape: bf16[2,1,32], index: 4, kind: input, shape index: {}]
  %s5 = inlined_call_operand.vmem [shape: bf16[2,4,32,8], index: 5, kind: input, shape index: {}]
  %s6 = inlined_call_operand.vmem [shape: bf16[2,4,32,8], index: 6, kind: input, shape index: {}]
  %s7 = inlined_call_operand.vmem [shape: bf16[2,4,32,8], index: 7, kind: input, shape index: {}]
  %s8 = inlined_call_operand.vmem [shape: bf16[2,4,8,32], index: 8, kind: input, shape index: {}]
  %s9 = inlined_call_operand.vmem [shape: bf16[2,1,32], index: 9, kind: input, shape index: {}]
  %s10 = inlined_call_operand.vmem [shape: bf16[2,32,128], index: 10, kind: input, shape index: {}]
  %s11 = inlined_call_operand.vmem [shape: bf16[2,64,32], index: 11, kind: input, shape index: {}]
  %s12 = inlined_call_operand.vmem [shape: bf16[1,32], index: 12, kind: input, shape index: {}]
  %s13 = inlined_call_operand.vmem [shape: bf16[32,128], index: 13, kind: input, shape index: {}]
  %s14 = inlined_call_operand.vmem [shape: bf16[16,128], index: 14, kind: output, shape index: {}]
  %s15 = sld [smem:[#allocation0]]
  $region66: #{hf_wrapper_forward.1} parent=0
    _
  %s17 = ssub.s32 1, %s15
  %s18 = scalar_select 0, %s17, %s15
  // Predicated region
  $region2: #{hf_wrapper_forward.1} parent=0 // pred_check
    _
  $region3: #{hf_wrapper_forward.1} parent=0 // pred_check_branch
    %20 = sbr.rel (0) target = $region5
  $region4: #{hf_wrapper_forward.1} parent=0 // pred_region
    _
  $region5: #{hf_wrapper_forward.1} parent=0 // pred_fallthru
    _
  // Predicated region
  $region6: #{hf_wrapper_forward.1} parent=0 // pred_check
    _
  $region7: #{hf_wrapper_forward.1} parent=0 // pred_check_branch
    %22 = sbr.rel (0) target = $region9
  $region8: #{hf_wrapper_forward.1} parent=0 // pred_region
    _
  $region9: #{hf_wrapper_forward.1} parent=0 // pred_fallthru
    _
  // Predicated region
  $region10: #{hf_wrapper_forward.1} parent=0 // pred_check
    _
  $region11: #{hf_wrapper_forward.1} parent=0 // pred_check_branch
    %24 = sbr.rel (0) target = $region13
  $region12: #{hf_wrapper_forward.1} parent=0 // pred_region
    _
  $region13: #{hf_wrapper_forward.1} parent=0 // pred_fallthru
    _
  // Predicated region
  $region14: #{hf_wrapper_forward.1} parent=0 // pred_check
    _
  $region15: #{hf_wrapper_forward.1} parent=0 // pred_check_branch
    %26 = sbr.rel (0) target = $region17
  $region16: #{hf_wrapper_forward.1} parent=0 // pred_region
    _
  $region17: #{hf_wrapper_forward.1} parent=0 // pred_fallthru
    _
  // Predicated region
  $region18: #{hf_wrapper_forward.1} parent=0 // pred_check
    _
  $region19: #{hf_wrapper_forward.1} parent=0 // pred_check_branch
    %28 = sbr.rel (0) target = $region21
  $region20: #{hf_wrapper_forward.1} parent=0 // pred_region
    _
  $region21: #{hf_wrapper_forward.1} parent=0 // pred_fallthru
    _
  // Predicated region
  $region22: #{hf_wrapper_forward.1} parent=0 // pred_check
    _
  $region23: #{hf_wrapper_forward.1} parent=0 // pred_check_branch
    %30 = sbr.rel (0) target = $region25
  $region24: #{hf_wrapper_forward.1} parent=0 // pred_region
    _
  $region25: #{hf_wrapper_forward.1} parent=0 // pred_fallthru
    _
  // Predicated region
  $region26: #{hf_wrapper_forward.1} parent=0 // pred_check
    _
  $region27: #{hf_wrapper_forward.1} parent=0 // pred_check_branch
    %32 = sbr.rel (0) target = $region29
  $region28: #{hf_wrapper_forward.1} parent=0 // pred_region
    _
  $region29: #{hf_wrapper_forward.1} parent=0 // pred_fallthru
    _
  // Predicated region
  $region30: #{hf_wrapper_forward.1} parent=0 // pred_check
    _
  $region31: #{hf_wrapper_forward.1} parent=0 // pred_check_branch
    %34 = sbr.rel (0) target = $region33
  $region32: #{hf_wrapper_forward.1} parent=0 // pred_region
    _
  $region33: #{hf_wrapper_forward.1} parent=0 // pred_fallthru
    _
  // Predicated region
  $region34: #{hf_wrapper_forward.1} parent=0 // pred_check
    _
  $region35: #{hf_wrapper_forward.1} parent=0 // pred_check_branch
    %36 = sbr.rel (0) target = $region37
  $region36: #{hf_wrapper_forward.1} parent=0 // pred_region
    _
  $region37: #{hf_wrapper_forward.1} parent=0 // pred_fallthru
    _
  // Predicated region
  $region38: #{hf_wrapper_forward.1} parent=0 // pred_check
    _
  $region39: #{hf_wrapper_forward.1} parent=0 // pred_check_branch
    %38 = sbr.rel (0) target = $region41
  $region40: #{hf_wrapper_forward.1} parent=0 // pred_region
    _
  $region41: #{hf_wrapper_forward.1} parent=0 // pred_fallthru
    _
  // Predicated region
  $region42: #{hf_wrapper_forward.1} parent=0 // pred_check
    _
  $region43: #{hf_wrapper_forward.1} parent=0 // pred_check_branch
    %40 = sbr.rel (0) target = $region45
  $region44: #{hf_wrapper_forward.1} parent=0 // pred_region
    _
  $region45: #{hf_wrapper_forward.1} parent=0 // pred_fallthru
    _
  // Predicated region
  $region46: #{hf_wrapper_forward.1} parent=0 // pred_check
    _
  $region47: #{hf_wrapper_forward.1} parent=0 // pred_check_branch
    %42 = sbr.rel (0) target = $region49
  $region48: #{hf_wrapper_forward.1} parent=0 // pred_region
    _
  $region49: #{hf_wrapper_forward.1} parent=0 // pred_fallthru
    _
  // Predicated region
  $region50: #{hf_wrapper_forward.1} parent=0 // pred_check
    _
  $region51: #{hf_wrapper_forward.1} parent=0 // pred_check_branch
    %44 = sbr.rel (0) target = $region53
  $region52: #{hf_wrapper_forward.1} parent=0 // pred_region
    _
  $region53: #{hf_wrapper_forward.1} parent=0 // pred_fallthru
    _
  // Predicated region
  $region54: #{hf_wrapper_forward.1} parent=0 // pred_check
    _
  $region55: #{hf_wrapper_forward.1} parent=0 // pred_check_branch
    %46 = sbr.rel (0) target = $region57
  $region56: #{hf_wrapper_forward.1} parent=0 // pred_region
    _
  $region57: #{hf_wrapper_forward.1} parent=0 // pred_fallthru
    _
  %v48 = vlaneseq
  %v49 = vand.u32 %v48, 127
  %v50 = vld [vmem:[%s0] sm:$0xff]
  %v51 = vld [vmem:[%s0 + $0x8] sm:$0xff]
  %52 = vset.pattern.permute.xlu0 0
  %53 = vperm.xlu0 %52, %v50
  %v54 = vpop.permute.xlu0 %53
  %55 = vset.pattern.permute.xlu0 0
  %56 = vperm.xlu0 %55, %v51
  %v57 = vpop.permute.xlu0 %56
  %vm58 = vcmp.eq.s32.totalorder %v54, %v49
  %vm59 = vcmp.eq.s32.totalorder %v57, %v49
  %v60 = vsel %vm58, 1, 0
  %v61 = vsel %vm59, 1, 0
  %v62 = vcvt.s32.f32 %v60
  %v63 = vcvt.s32.f32 %v61
  %v64 = vpack.c.bf16 %v63, %v62
  %v65 = vld [vmem:[%s3] sm:$0xf]
  %v66 = vld [vmem:[%s3 + $0x4] sm:$0xf]
  %v67 = vld [vmem:[%s3 + $0x8] sm:$0xf]
  %v68 = vld [vmem:[%s3 + $0xc] sm:$0xf]
  %v69 = vld [vmem:[%s3 + $0x10] sm:$0xf]
  %v70 = vld [vmem:[%s3 + $0x14] sm:$0xf]
  %v71 = vld [vmem:[%s3 + $0x18] sm:$0xf]
  %v72 = vld [vmem:[%s3 + $0x1c] sm:$0xf]
  %v73 = vld [vmem:[%s1] sm:$0xf]
  %v74 = vld [vmem:[%s1 + $0x4] sm:$0xf]
  %v75 = vunpack.c.l.bf16 %v73
  %v76 = vunpack.c.l.bf16 %v74
  %v85 = vunpack.c.l.b16 %v65
  %v86 = vunpack.c.l.b16 %v66
  %v87 = vunpack.c.l.b16 %v67
  %v88 = vunpack.c.l.b16 %v68
  %v89 = vunpack.c.l.b16 %v69
  %v90 = vunpack.c.l.b16 %v70
  %v91 = vunpack.c.l.b16 %v71
  %v92 = vunpack.c.l.b16 %v72
  %v93 = vpack.c.b16 %v86, %v85
  %v94 = vpack.c.b16 %v88, %v87
  %v95 = vpack.c.b16 %v90, %v89
  %v96 = vpack.c.b16 %v92, %v91
  %vm101 = vcmask 523264
  %v103 = vsel %vm101, %v64, 0
  %105 = vmatprep.subr.bf16.mxu0 0
  %106 = vmatpush1.bf16.msra.mxu0 %v93
  %107 = vmatprep.subr.bf16.mxu0 0
  %108 = vmatpush1.bf16.msra.mxu0 %v94
  %109 = vmatprep.subr.bf16.mxu0 0
  %110 = vmatpush1.bf16.msra.mxu0 %v95
  %111 = vmatprep.subr.bf16.mxu0 0
  %112 = vmatpush1.bf16.msra.mxu0 %v96
  %113 = vmatprep.subr.bf16.mxu0 0
  %114 = vmatpush1.bf16.msra.mxu0 0
  %115 = vmatprep.subr.bf16.mxu0 0
  %116 = vmatpush1.bf16.msra.mxu0 0
  %117 = vmatprep.subr.bf16.mxu0 0
  %118 = vmatpush1.bf16.msra.mxu0 0
  %119 = vmatprep.subr.bf16.mxu0 0
  %120 = vmatpush1.bf16.msra.mxu0 0
  %121 = vmatprep.subr.bf16.mxu0 0
  %122 = vmatpush1.bf16.msra.mxu0 0
  %123 = vmatprep.subr.bf16.mxu0 0
  %124 = vmatpush1.bf16.msra.mxu0 0
  %125 = vmatprep.subr.bf16.mxu0 0
  %126 = vmatpush1.bf16.msra.mxu0 0
  %127 = vmatprep.subr.bf16.mxu0 0
  %128 = vmatpush1.bf16.msra.mxu0 0
  %129 = vmatprep.subr.bf16.mxu0 0
  %130 = vmatpush1.bf16.msra.mxu0 0
  %131 = vmatprep.subr.bf16.mxu0 0
  %132 = vmatpush1.bf16.msra.mxu0 0
  %133 = vmatprep.subr.bf16.mxu0 0
  %134 = vmatpush1.bf16.msra.mxu0 0
  %135 = vmatprep.subr.bf16.mxu0 0
  %136 = vmatpush1.bf16.msra.mxu0 0
  %137 = vmatprep.mubr.bf16.mxu0 0
  %138 = vmatmul.mubr.bf16.gmra.mrb[0].mxu0 %v103
  %v139 = vpop.f32.mrb[0].mxu0
  %v140 = vadd.f32 %v75, %v139
  %v141 = vpop.f32.mrb[0].mxu0
  %v142 = vpop.f32.mrb[0].mxu0
  %v143 = vadd.f32 %v76, %v142
  %v144 = vpop.f32.mrb[0].mxu0
  %145 = vdwg.mxu0
  %v146 = vld [vmem:[%s2] sm:$0xff]
  %v147 = vld [vmem:[%s2 + $0x8] sm:$0xff]
  %v148 = vld [vmem:[%s4] sm:$0x1]
  %v149 = vmul.f32 %v140, %v140
  %v150 = vmul.f32 %v143, %v143
  %vm151 = vcmask 261120
  %v152 = vsel %vm151, %v149, 0.0
  %153 = vadd.xlane.f32.xlu0 %v152
  %v154 = vpop.xlane.xlu0 %153
  %v155 = vsel %vm151, %v150, 0.0
  %156 = vadd.xlane.f32.xlu0 %v155
  %v157 = vpop.xlane.xlu0 %156
  %v158 = vrcp.pop 32.0
  %v159 = vmul.f32 %v154, %v158
  %v160 = vmul.f32 %v157, %v158
  %v161 = vadd.f32 %v159, 1e-06
  %v162 = vadd.f32 %v160, 1e-06
  %v163 = vrsqrt.pop %v161
  %v164 = vrsqrt.pop %v162
  %v165 = vmul.f32 %v140, %v163
  %v166 = vmul.f32 %v143, %v164
  %v167 = vunpack.c.l.bf16 %v148
  %v168 = vlaneseq
  %v169 = vshrl.u32 %v168, 7
  %v170 = vsub.s32 0, %v169
  %v171 = vrot.slane %v167, %v170
  %v172 = vmul.f32 %v165, %v171
  %v173 = vmul.f32 %v166, %v171
  %v174 = vpack.c.bf16 %v173, %v172
  %v175 = vld [vmem:[%s5] sm:$0xf]
  %v176 = vld [vmem:[%s5 + $0x4] sm:$0xf]
  %v177 = vld [vmem:[%s5 + $0x8] sm:$0xf]
  %v178 = vld [vmem:[%s5 + $0xc] sm:$0xf]
  %v179 = vld [vmem:[%s5 + $0x10] sm:$0xf]
  %v180 = vld [vmem:[%s5 + $0x14] sm:$0xf]
  %v181 = vld [vmem:[%s5 + $0x18] sm:$0xf]
  %v182 = vld [vmem:[%s5 + $0x1c] sm:$0xf]
  %v183 = vld [vmem:[%s5 + $0x20] sm:$0xf]
  %v184 = vld [vmem:[%s5 + $0x24] sm:$0xf]
  %v185 = vld [vmem:[%s5 + $0x28] sm:$0xf]
  %v186 = vld [vmem:[%s5 + $0x2c] sm:$0xf]
  %v187 = vld [vmem:[%s5 + $0x30] sm:$0xf]
  %v188 = vld [vmem:[%s5 + $0x34] sm:$0xf]
  %v189 = vld [vmem:[%s5 + $0x38] sm:$0xf]
  %v190 = vld [vmem:[%s5 + $0x3c] sm:$0xf]
  %v195 = vunpack.c.l.b16 %v175
  %v196 = vunpack.c.l.b16 %v176
  %v197 = vunpack.c.l.b16 %v177
  %v198 = vunpack.c.l.b16 %v178
  %v199 = vpack.c.b16 %v196, %v195
  %v200 = vpack.c.b16 %v198, %v197
  %v204 = vsel %vm151, %v174, 0
  %206 = vmatprep.subr.bf16.mxu0 0
  %207 = vmatpush1.bf16.msra.mxu0 %v199
  %208 = vmatprep.subr.bf16.mxu0 0
  %209 = vmatpush1.bf16.msra.mxu0 %v200
  %210 = vmatprep.subr.bf16.mxu0 0
  %211 = vmatpush1.bf16.msra.mxu0 0
  %212 = vmatprep.subr.bf16.mxu0 0
  %213 = vmatpush1.bf16.msra.mxu0 0
  %214 = vmatprep.subr.bf16.mxu0 0
  %215 = vmatpush1.bf16.msra.mxu0 0
  %216 = vmatprep.subr.bf16.mxu0 0
  %217 = vmatpush1.bf16.msra.mxu0 0
  %218 = vmatprep.subr.bf16.mxu0 0
  %219 = vmatpush1.bf16.msra.mxu0 0
  %220 = vmatprep.subr.bf16.mxu0 0
  %221 = vmatpush1.bf16.msra.mxu0 0
  %222 = vmatprep.subr.bf16.mxu0 0
  %223 = vmatpush1.bf16.msra.mxu0 0
  %224 = vmatprep.subr.bf16.mxu0 0
  %225 = vmatpush1.bf16.msra.mxu0 0
  %226 = vmatprep.subr.bf16.mxu0 0
  %227 = vmatpush1.bf16.msra.mxu0 0
  %228 = vmatprep.subr.bf16.mxu0 0
  %229 = vmatpush1.bf16.msra.mxu0 0
  %230 = vmatprep.subr.bf16.mxu0 0
  %231 = vmatpush1.bf16.msra.mxu0 0
  %232 = vmatprep.subr.bf16.mxu0 0
  %233 = vmatpush1.bf16.msra.mxu0 0
  %234 = vmatprep.subr.bf16.mxu0 0
  %235 = vmatpush1.bf16.msra.mxu0 0
  %236 = vmatprep.subr.bf16.mxu0 0
  %237 = vmatpush1.bf16.msra.mxu0 0
  %238 = vmatprep.mubr.bf16.mxu0 0
  %239 = vmatmul.mubr.bf16.gmra.mrb[0].mxu0 %v204
  %v240 = vpop.f32.mrb[0].mxu0
  %v241 = vadd.f32 0.0, %v240
  %v242 = vpop.f32.mrb[0].mxu0
  %v243 = vpop.f32.mrb[0].mxu0
  %v244 = vadd.f32 0.0, %v243
  %v245 = vpop.f32.mrb[0].mxu0
  %246 = vdwg.mxu0
  %v251 = vunpack.c.l.b16 %v179
  %v252 = vunpack.c.l.b16 %v180
  %v253 = vunpack.c.l.b16 %v181
  %v254 = vunpack.c.l.b16 %v182
  %v255 = vpack.c.b16 %v252, %v251
  %v256 = vpack.c.b16 %v254, %v253
  %259 = vmatprep.subr.bf16.mxu0 0
  %260 = vmatpush1.bf16.msra.mxu0 %v255
  %261 = vmatprep.subr.bf16.mxu0 0
  %262 = vmatpush1.bf16.msra.mxu0 %v256
  %263 = vmatprep.subr.bf16.mxu0 0
  %264 = vmatpush1.bf16.msra.mxu0 0
  %265 = vmatprep.subr.bf16.mxu0 0
  %266 = vmatpush1.bf16.msra.mxu0 0
  %267 = vmatprep.subr.bf16.mxu0 0
  %268 = vmatpush1.bf16.msra.mxu0 0
  %269 = vmatprep.subr.bf16.mxu0 0
  %270 = vmatpush1.bf16.msra.mxu0 0
  %271 = vmatprep.subr.bf16.mxu0 0
  %272 = vmatpush1.bf16.msra.mxu0 0
  %273 = vmatprep.subr.bf16.mxu0 0
  %274 = vmatpush1.bf16.msra.mxu0 0
  %275 = vmatprep.subr.bf16.mxu0 0
  %276 = vmatpush1.bf16.msra.mxu0 0
  %277 = vmatprep.subr.bf16.mxu0 0
  %278 = vmatpush1.bf16.msra.mxu0 0
  %279 = vmatprep.subr.bf16.mxu0 0
  %280 = vmatpush1.bf16.msra.mxu0 0
  %281 = vmatprep.subr.bf16.mxu0 0
  %282 = vmatpush1.bf16.msra.mxu0 0
  %283 = vmatprep.subr.bf16.mxu0 0
  %284 = vmatpush1.bf16.msra.mxu0 0
  %285 = vmatprep.subr.bf16.mxu0 0
  %286 = vmatpush1.bf16.msra.mxu0 0
  %287 = vmatprep.subr.bf16.mxu0 0
  %288 = vmatpush1.bf16.msra.mxu0 0
  %289 = vmatprep.subr.bf16.mxu0 0
  %290 = vmatpush1.bf16.msra.mxu0 0
  %291 = vmatprep.mubr.bf16.mxu0 0
  %292 = vmatmul.mubr.bf16.gmra.mrb[0].mxu0 %v204
  %v293 = vpop.f32.mrb[0].mxu0
  %v294 = vadd.f32 0.0, %v293
  %v295 = vpop.f32.mrb[0].mxu0
  %v296 = vpop.f32.mrb[0].mxu0
  %v297 = vadd.f32 0.0, %v296
  %v298 = vpop.f32.mrb[0].mxu0
  %299 = vdwg.mxu0
  %v304 = vunpack.c.l.b16 %v183
  %v305 = vunpack.c.l.b16 %v184
  %v306 = vunpack.c.l.b16 %v185
  %v307 = vunpack.c.l.b16 %v186
  %v308 = vpack.c.b16 %v305, %v304
  %v309 = vpack.c.b16 %v307, %v306
  %312 = vmatprep.subr.bf16.mxu0 0
  %313 = vmatpush1.bf16.msra.mxu0 %v308
  %314 = vmatprep.subr.bf16.mxu0 0
  %315 = vmatpush1.bf16.msra.mxu0 %v309
  %316 = vmatprep.subr.bf16.mxu0 0
  %317 = vmatpush1.bf16.msra.mxu0 0
  %318 = vmatprep.subr.bf16.mxu0 0
  %319 = vmatpush1.bf16.msra.mxu0 0
  %320 = vmatprep.subr.bf16.mxu0 0
  %321 = vmatpush1.bf16.msra.mxu0 0
  %322 = vmatprep.subr.bf16.mxu0 0
  %323 = vmatpush1.bf16.msra.mxu0 0
  %324 = vmatprep.subr.bf16.mxu0 0
  %325 = vmatpush1.bf16.msra.mxu0 0
  %326 = vmatprep.subr.bf16.mxu0 0
  %327 = vmatpush1.bf16.msra.mxu0 0
  %328 = vmatprep.subr.bf16.mxu0 0
  %329 = vmatpush1.bf16.msra.mxu0 0
  %330 = vmatprep.subr.bf16.mxu0 0
  %331 = vmatpush1.bf16.msra.mxu0 0
  %332 = vmatprep.subr.bf16.mxu0 0
  %333 = vmatpush1.bf16.msra.mxu0 0
  %334 = vmatprep.subr.bf16.mxu0 0
  %335 = vmatpush1.bf16.msra.mxu0 0
  %336 = vmatprep.subr.bf16.mxu0 0
  %337 = vmatpush1.bf16.msra.mxu0 0
  %338 = vmatprep.subr.bf16.mxu0 0
  %339 = vmatpush1.bf16.msra.mxu0 0
  %340 = vmatprep.subr.bf16.mxu0 0
  %341 = vmatpush1.bf16.msra.mxu0 0
  %342 = vmatprep.subr.bf16.mxu0 0
  %343 = vmatpush1.bf16.msra.mxu0 0
  %344 = vmatprep.mubr.bf16.mxu0 0
  %345 = vmatmul.mubr.bf16.gmra.mrb[0].mxu0 %v204
  %v346 = vpop.f32.mrb[0].mxu0
  %v347 = vadd.f32 0.0, %v346
  %v348 = vpop.f32.mrb[0].mxu0
  %v349 = vpop.f32.mrb[0].mxu0
  %v350 = vadd.f32 0.0, %v349
  %v351 = vpop.f32.mrb[0].mxu0
  %352 = vdwg.mxu0
  %v357 = vunpack.c.l.b16 %v187
  %v358 = vunpack.c.l.b16 %v188
  %v359 = vunpack.c.l.b16 %v189
  %v360 = vunpack.c.l.b16 %v190
  %v361 = vpack.c.b16 %v358, %v357
  %v362 = vpack.c.b16 %v360, %v359
  %365 = vmatprep.subr.bf16.mxu0 0
  %366 = vmatpush1.bf16.msra.mxu0 %v361
  %367 = vmatprep.subr.bf16.mxu0 0
  %368 = vmatpush1.bf16.msra.mxu0 %v362
  %369 = vmatprep.subr.bf16.mxu0 0
  %370 = vmatpush1.bf16.msra.mxu0 0
  %371 = vmatprep.subr.bf16.mxu0 0
  %372 = vmatpush1.bf16.msra.mxu0 0
  %373 = vmatprep.subr.bf16.mxu0 0
  %374 = vmatpush1.bf16.msra.mxu0 0
  %375 = vmatprep.subr.bf16.mxu0 0
  %376 = vmatpush1.bf16.msra.mxu0 0
  %377 = vmatprep.subr.bf16.mxu0 0
  %378 = vmatpush1.bf16.msra.mxu0 0
  %379 = vmatprep.subr.bf16.mxu0 0
  %380 = vmatpush1.bf16.msra.mxu0 0
  %381 = vmatprep.subr.bf16.mxu0 0
  %382 = vmatpush1.bf16.msra.mxu0 0
  %383 = vmatprep.subr.bf16.mxu0 0
  %384 = vmatpush1.bf16.msra.mxu0 0
  %385 = vmatprep.subr.bf16.mxu0 0
  %386 = vmatpush1.bf16.msra.mxu0 0
  %387 = vmatprep.subr.bf16.mxu0 0
  %388 = vmatpush1.bf16.msra.mxu0 0
  %389 = vmatprep.subr.bf16.mxu0 0
  %390 = vmatpush1.bf16.msra.mxu0 0
  %391 = vmatprep.subr.bf16.mxu0 0
  %392 = vmatpush1.bf16.msra.mxu0 0
  %393 = vmatprep.subr.bf16.mxu0 0
  %394 = vmatpush1.bf16.msra.mxu0 0
  %395 = vmatprep.subr.bf16.mxu0 0
  %396 = vmatpush1.bf16.msra.mxu0 0
  %397 = vmatprep.mubr.bf16.mxu0 0
  %398 = vmatmul.mubr.bf16.gmra.mrb[0].mxu0 %v204
  %v399 = vpop.f32.mrb[0].mxu0
  %v400 = vadd.f32 0.0, %v399
  %v401 = vpop.f32.mrb[0].mxu0
  %v402 = vpop.f32.mrb[0].mxu0
  %v403 = vadd.f32 0.0, %v402
  %v404 = vpop.f32.mrb[0].mxu0
  %405 = vdwg.mxu0
  %v406 = vpack.c.bf16 %v244, %v241
  %v407 = vpack.c.bf16 %v297, %v294
  %v408 = vpack.c.bf16 %v350, %v347
  %v409 = vpack.c.bf16 %v403, %v400
  %v410 = vld [vmem:[%s6] sm:$0xf]
  %v411 = vld [vmem:[%s6 + $0x4] sm:$0xf]
  %v412 = vld [vmem:[%s6 + $0x8] sm:$0xf]
  %v413 = vld [vmem:[%s6 + $0xc] sm:$0xf]
  %v414 = vld [vmem:[%s6 + $0x10] sm:$0xf]
  %v415 = vld [vmem:[%s6 + $0x14] sm:$0xf]
  %v416 = vld [vmem:[%s6 + $0x18] sm:$0xf]
  %v417 = vld [vmem:[%s6 + $0x1c] sm:$0xf]
  %v418 = vld [vmem:[%s6 + $0x20] sm:$0xf]
  %v419 = vld [vmem:[%s6 + $0x24] sm:$0xf]
  %v420 = vld [vmem:[%s6 + $0x28] sm:$0xf]
  %v421 = vld [vmem:[%s6 + $0x2c] sm:$0xf]
  %v422 = vld [vmem:[%s6 + $0x30] sm:$0xf]
  %v423 = vld [vmem:[%s6 + $0x34] sm:$0xf]
  %v424 = vld [vmem:[%s6 + $0x38] sm:$0xf]
  %v425 = vld [vmem:[%s6 + $0x3c] sm:$0xf]
  %v430 = vunpack.c.l.b16 %v410
  %v431 = vunpack.c.l.b16 %v411
  %v432 = vunpack.c.l.b16 %v412
  %v433 = vunpack.c.l.b16 %v413
  %v434 = vpack.c.b16 %v431, %v430
  %v435 = vpack.c.b16 %v433, %v432
  %438 = vmatprep.subr.bf16.mxu0 0
  %439 = vmatpush1.bf16.msra.mxu0 %v434
  %440 = vmatprep.subr.bf16.mxu0 0
  %441 = vmatpush1.bf16.msra.mxu0 %v435
  %442 = vmatprep.subr.bf16.mxu0 0
  %443 = vmatpush1.bf16.msra.mxu0 0
  %444 = vmatprep.subr.bf16.mxu0 0
  %445 = vmatpush1.bf16.msra.mxu0 0
  %446 = vmatprep.subr.bf16.mxu0 0
  %447 = vmatpush1.bf16.msra.mxu0 0
  %448 = vmatprep.subr.bf16.mxu0 0
  %449 = vmatpush1.bf16.msra.mxu0 0
  %450 = vmatprep.subr.bf16.mxu0 0
  %451 = vmatpush1.bf16.msra.mxu0 0
  %452 = vmatprep.subr.bf16.mxu0 0
  %453 = vmatpush1.bf16.msra.mxu0 0
  %454 = vmatprep.subr.bf16.mxu0 0
  %455 = vmatpush1.bf16.msra.mxu0 0
  %456 = vmatprep.subr.bf16.mxu0 0
  %457 = vmatpush1.bf16.msra.mxu0 0
  %458 = vmatprep.subr.bf16.mxu0 0
  %459 = vmatpush1.bf16.msra.mxu0 0
  %460 = vmatprep.subr.bf16.mxu0 0
  %461 = vmatpush1.bf16.msra.mxu0 0
  %462 = vmatprep.subr.bf16.mxu0 0
  %463 = vmatpush1.bf16.msra.mxu0 0
  %464 = vmatprep.subr.bf16.mxu0 0
  %465 = vmatpush1.bf16.msra.mxu0 0
  %466 = vmatprep.subr.bf16.mxu0 0
  %467 = vmatpush1.bf16.msra.mxu0 0
  %468 = vmatprep.subr.bf16.mxu0 0
  %469 = vmatpush1.bf16.msra.mxu0 0
  %470 = vmatprep.mubr.bf16.mxu0 0
  %471 = vmatmul.mubr.bf16.gmra.mrb[0].mxu0 %v204
  %v472 = vpop.f32.mrb[0].mxu0
  %v473 = vadd.f32 0.0, %v472
  %v474 = vpop.f32.mrb[0].mxu0
  %v475 = vpop.f32.mrb[0].mxu0
  %v476 = vadd.f32 0.0, %v475
  %v477 = vpop.f32.mrb[0].mxu0
  %478 = vdwg.mxu0
  %v483 = vunpack.c.l.b16 %v414
  %v484 = vunpack.c.l.b16 %v415
  %v485 = vunpack.c.l.b16 %v416
  %v486 = vunpack.c.l.b16 %v417
  %v487 = vpack.c.b16 %v484, %v483
  %v488 = vpack.c.b16 %v486, %v485
  %491 = vmatprep.subr.bf16.mxu0 0
  %492 = vmatpush1.bf16.msra.mxu0 %v487
  %493 = vmatprep.subr.bf16.mxu0 0
  %494 = vmatpush1.bf16.msra.mxu0 %v488
  %495 = vmatprep.subr.bf16.mxu0 0
  %496 = vmatpush1.bf16.msra.mxu0 0
  %497 = vmatprep.subr.bf16.mxu0 0
  %498 = vmatpush1.bf16.msra.mxu0 0
  %499 = vmatprep.subr.bf16.mxu0 0
  %500 = vmatpush1.bf16.msra.mxu0 0
  %501 = vmatprep.subr.bf16.mxu0 0
  %502 = vmatpush1.bf16.msra.mxu0 0
  %503 = vmatprep.subr.bf16.mxu0 0
  %504 = vmatpush1.bf16.msra.mxu0 0
  %505 = vmatprep.subr.bf16.mxu0 0
  %506 = vmatpush1.bf16.msra.mxu0 0
  %507 = vmatprep.subr.bf16.mxu0 0
  %508 = vmatpush1.bf16.msra.mxu0 0
  %509 = vmatprep.subr.bf16.mxu0 0
  %510 = vmatpush1.bf16.msra.mxu0 0
  %511 = vmatprep.subr.bf16.mxu0 0
  %512 = vmatpush1.bf16.msra.mxu0 0
  %513 = vmatprep.subr.bf16.mxu0 0
  %514 = vmatpush1.bf16.msra.mxu0 0
  %515 = vmatprep.subr.bf16.mxu0 0
  %516 = vmatpush1.bf16.msra.mxu0 0
  %517 = vmatprep.subr.bf16.mxu0 0
  %518 = vmatpush1.bf16.msra.mxu0 0
  %519 = vmatprep.subr.bf16.mxu0 0
  %520 = vmatpush1.bf16.msra.mxu0 0
  %521 = vmatprep.subr.bf16.mxu0 0
  %522 = vmatpush1.bf16.msra.mxu0 0
  %523 = vmatprep.mubr.bf16.mxu0 0
  %524 = vmatmul.mubr.bf16.gmra.mrb[0].mxu0 %v204
  %v525 = vpop.f32.mrb[0].mxu0
  %v526 = vadd.f32 0.0, %v525
  %v527 = vpop.f32.mrb[0].mxu0
  %v528 = vpop.f32.mrb[0].mxu0
  %v529 = vadd.f32 0.0, %v528
  %v530 = vpop.f32.mrb[0].mxu0
  %531 = vdwg.mxu0
  %v536 = vunpack.c.l.b16 %v418
  %v537 = vunpack.c.l.b16 %v419
  %v538 = vunpack.c.l.b16 %v420
  %v539 = vunpack.c.l.b16 %v421
  %v540 = vpack.c.b16 %v537, %v536
  %v541 = vpack.c.b16 %v539, %v538
  %544 = vmatprep.subr.bf16.mxu0 0
  %545 = vmatpush1.bf16.msra.mxu0 %v540
  %546 = vmatprep.subr.bf16.mxu0 0
  %547 = vmatpush1.bf16.msra.mxu0 %v541
  %548 = vmatprep.subr.bf16.mxu0 0
  %549 = vmatpush1.bf16.msra.mxu0 0
  %550 = vmatprep.subr.bf16.mxu0 0
  %551 = vmatpush1.bf16.msra.mxu0 0
  %552 = vmatprep.subr.bf16.mxu0 0
  %553 = vmatpush1.bf16.msra.mxu0 0
  %554 = vmatprep.subr.bf16.mxu0 0
  %555 = vmatpush1.bf16.msra.mxu0 0
  %556 = vmatprep.subr.bf16.mxu0 0
  %557 = vmatpush1.bf16.msra.mxu0 0
  %558 = vmatprep.subr.bf16.mxu0 0
  %559 = vmatpush1.bf16.msra.mxu0 0
  %560 = vmatprep.subr.bf16.mxu0 0
  %561 = vmatpush1.bf16.msra.mxu0 0
  %562 = vmatprep.subr.bf16.mxu0 0
  %563 = vmatpush1.bf16.msra.mxu0 0
  %564 = vmatprep.subr.bf16.mxu0 0
  %565 = vmatpush1.bf16.msra.mxu0 0
  %566 = vmatprep.subr.bf16.mxu0 0
  %567 = vmatpush1.bf16.msra.mxu0 0
  %568 = vmatprep.subr.bf16.mxu0 0
  %569 = vmatpush1.bf16.msra.mxu0 0
  %570 = vmatprep.subr.bf16.mxu0 0
  %571 = vmatpush1.bf16.msra.mxu0 0
  %572 = vmatprep.subr.bf16.mxu0 0
  %573 = vmatpush1.bf16.msra.mxu0 0
  %574 = vmatprep.subr.bf16.mxu0 0
  %575 = vmatpush1.bf16.msra.mxu0 0
  %576 = vmatprep.mubr.bf16.mxu0 0
  %577 = vmatmul.mubr.bf16.gmra.mrb[0].mxu0 %v204
  %v578 = vpop.f32.mrb[0].mxu0
  %v579 = vadd.f32 0.0, %v578
  %v580 = vpop.f32.mrb[0].mxu0
  %v581 = vpop.f32.mrb[0].mxu0
  %v582 = vadd.f32 0.0, %v581
  %v583 = vpop.f32.mrb[0].mxu0
  %584 = vdwg.mxu0
  %v589 = vunpack.c.l.b16 %v422
  %v590 = vunpack.c.l.b16 %v423
  %v591 = vunpack.c.l.b16 %v424
  %v592 = vunpack.c.l.b16 %v425
  %v593 = vpack.c.b16 %v590, %v589
  %v594 = vpack.c.b16 %v592, %v591
  %597 = vmatprep.subr.bf16.mxu0 0
  %598 = vmatpush1.bf16.msra.mxu0 %v593
  %599 = vmatprep.subr.bf16.mxu0 0
  %600 = vmatpush1.bf16.msra.mxu0 %v594
  %601 = vmatprep.subr.bf16.mxu0 0
  %602 = vmatpush1.bf16.msra.mxu0 0
  %603 = vmatprep.subr.bf16.mxu0 0
  %604 = vmatpush1.bf16.msra.mxu0 0
  %605 = vmatprep.subr.bf16.mxu0 0
  %606 = vmatpush1.bf16.msra.mxu0 0
  %607 = vmatprep.subr.bf16.mxu0 0
  %608 = vmatpush1.bf16.msra.mxu0 0
  %609 = vmatprep.subr.bf16.mxu0 0
  %610 = vmatpush1.bf16.msra.mxu0 0
  %611 = vmatprep.subr.bf16.mxu0 0
  %612 = vmatpush1.bf16.msra.mxu0 0
  %613 = vmatprep.subr.bf16.mxu0 0
  %614 = vmatpush1.bf16.msra.mxu0 0
  %615 = vmatprep.subr.bf16.mxu0 0
  %616 = vmatpush1.bf16.msra.mxu0 0
  %617 = vmatprep.subr.bf16.mxu0 0
  %618 = vmatpush1.bf16.msra.mxu0 0
  %619 = vmatprep.subr.bf16.mxu0 0
  %620 = vmatpush1.bf16.msra.mxu0 0
  %621 = vmatprep.subr.bf16.mxu0 0
  %622 = vmatpush1.bf16.msra.mxu0 0
  %623 = vmatprep.subr.bf16.mxu0 0
  %624 = vmatpush1.bf16.msra.mxu0 0
  %625 = vmatprep.subr.bf16.mxu0 0
  %626 = vmatpush1.bf16.msra.mxu0 0
  %627 = vmatprep.subr.bf16.mxu0 0
  %628 = vmatpush1.bf16.msra.mxu0 0
  %629 = vmatprep.mubr.bf16.mxu0 0
  %630 = vmatmul.mubr.bf16.gmra.mrb[0].mxu0 %v204
  %v631 = vpop.f32.mrb[0].mxu0
  %v632 = vadd.f32 0.0, %v631
  %v633 = vpop.f32.mrb[0].mxu0
  %v634 = vpop.f32.mrb[0].mxu0
  %v635 = vadd.f32 0.0, %v634
  %v636 = vpop.f32.mrb[0].mxu0
  %637 = vdwg.mxu0
  %v638 = vpack.c.bf16 %v476, %v473
  %v639 = vpack.c.bf16 %v529, %v526
  %v640 = vpack.c.bf16 %v582, %v579
  %v641 = vpack.c.bf16 %v635, %v632
  %v642 = vld [vmem:[%s7] sm:$0xf]
  %v643 = vld [vmem:[%s7 + $0x4] sm:$0xf]
  %v644 = vld [vmem:[%s7 + $0x8] sm:$0xf]
  %v645 = vld [vmem:[%s7 + $0xc] sm:$0xf]
  %v646 = vld [vmem:[%s7 + $0x10] sm:$0xf]
  %v647 = vld [vmem:[%s7 + $0x14] sm:$0xf]
  %v648 = vld [vmem:[%s7 + $0x18] sm:$0xf]
  %v649 = vld [vmem:[%s7 + $0x1c] sm:$0xf]
  %v650 = vld [vmem:[%s7 + $0x20] sm:$0xf]
  %v651 = vld [vmem:[%s7 + $0x24] sm:$0xf]
  %v652 = vld [vmem:[%s7 + $0x28] sm:$0xf]
  %v653 = vld [vmem:[%s7 + $0x2c] sm:$0xf]
  %v654 = vld [vmem:[%s7 + $0x30] sm:$0xf]
  %v655 = vld [vmem:[%s7 + $0x34] sm:$0xf]
  %v656 = vld [vmem:[%s7 + $0x38] sm:$0xf]
  %v657 = vld [vmem:[%s7 + $0x3c] sm:$0xf]
  %v662 = vunpack.c.l.b16 %v642
  %v663 = vunpack.c.l.b16 %v643
  %v664 = vunpack.c.l.b16 %v644
  %v665 = vunpack.c.l.b16 %v645
  %v666 = vpack.c.b16 %v663, %v662
  %v667 = vpack.c.b16 %v665, %v664
  %670 = vmatprep.subr.bf16.mxu0 0
  %671 = vmatpush1.bf16.msra.mxu0 %v666
  %672 = vmatprep.subr.bf16.mxu0 0
  %673 = vmatpush1.bf16.msra.mxu0 %v667
  %674 = vmatprep.subr.bf16.mxu0 0
  %675 = vmatpush1.bf16.msra.mxu0 0
  %676 = vmatprep.subr.bf16.mxu0 0
  %677 = vmatpush1.bf16.msra.mxu0 0
  %678 = vmatprep.subr.bf16.mxu0 0
  %679 = vmatpush1.bf16.msra.mxu0 0
  %680 = vmatprep.subr.bf16.mxu0 0
  %681 = vmatpush1.bf16.msra.mxu0 0
  %682 = vmatprep.subr.bf16.mxu0 0
  %683 = vmatpush1.bf16.msra.mxu0 0
  %684 = vmatprep.subr.bf16.mxu0 0
  %685 = vmatpush1.bf16.msra.mxu0 0
  %686 = vmatprep.subr.bf16.mxu0 0
  %687 = vmatpush1.bf16.msra.mxu0 0
  %688 = vmatprep.subr.bf16.mxu0 0
  %689 = vmatpush1.bf16.msra.mxu0 0
  %690 = vmatprep.subr.bf16.mxu0 0
  %691 = vmatpush1.bf16.msra.mxu0 0
  %692 = vmatprep.subr.bf16.mxu0 0
  %693 = vmatpush1.bf16.msra.mxu0 0
  %694 = vmatprep.subr.bf16.mxu0 0
  %695 = vmatpush1.bf16.msra.mxu0 0
  %696 = vmatprep.subr.bf16.mxu0 0
  %697 = vmatpush1.bf16.msra.mxu0 0
  %698 = vmatprep.subr.bf16.mxu0 0
  %699 = vmatpush1.bf16.msra.mxu0 0
  %700 = vmatprep.subr.bf16.mxu0 0
  %701 = vmatpush1.bf16.msra.mxu0 0
  %702 = vmatprep.mubr.bf16.mxu0 0
  %703 = vmatmul.mubr.bf16.gmra.mrb[0].mxu0 %v204
  %v704 = vpop.f32.mrb[0].mxu0
  %v705 = vadd.f32 0.0, %v704
  %v706 = vpop.f32.mrb[0].mxu0
  %v707 = vpop.f32.mrb[0].mxu0
  %v708 = vadd.f32 0.0, %v707
  %v709 = vpop.f32.mrb[0].mxu0
  %710 = vdwg.mxu0
  %v715 = vunpack.c.l.b16 %v646
  %v716 = vunpack.c.l.b16 %v647
  %v717 = vunpack.c.l.b16 %v648
  %v718 = vunpack.c.l.b16 %v649
  %v719 = vpack.c.b16 %v716, %v715
  %v720 = vpack.c.b16 %v718, %v717
  %723 = vmatprep.subr.bf16.mxu0 0
  %724 = vmatpush1.bf16.msra.mxu0 %v719
  %725 = vmatprep.subr.bf16.mxu0 0
  %726 = vmatpush1.bf16.msra.mxu0 %v720
  %727 = vmatprep.subr.bf16.mxu0 0
  %728 = vmatpush1.bf16.msra.mxu0 0
  %729 = vmatprep.subr.bf16.mxu0 0
  %730 = vmatpush1.bf16.msra.mxu0 0
  %731 = vmatprep.subr.bf16.mxu0 0
  %732 = vmatpush1.bf16.msra.mxu0 0
  %733 = vmatprep.subr.bf16.mxu0 0
  %734 = vmatpush1.bf16.msra.mxu0 0
  %735 = vmatprep.subr.bf16.mxu0 0
  %736 = vmatpush1.bf16.msra.mxu0 0
  %737 = vmatprep.subr.bf16.mxu0 0
  %738 = vmatpush1.bf16.msra.mxu0 0
  %739 = vmatprep.subr.bf16.mxu0 0
  %740 = vmatpush1.bf16.msra.mxu0 0
  %741 = vmatprep.subr.bf16.mxu0 0
  %742 = vmatpush1.bf16.msra.mxu0 0
  %743 = vmatprep.subr.bf16.mxu0 0
  %744 = vmatpush1.bf16.msra.mxu0 0
  %745 = vmatprep.subr.bf16.mxu0 0
  %746 = vmatpush1.bf16.msra.mxu0 0
  %747 = vmatprep.subr.bf16.mxu0 0
  %748 = vmatpush1.bf16.msra.mxu0 0
  %749 = vmatprep.subr.bf16.mxu0 0
  %750 = vmatpush1.bf16.msra.mxu0 0
  %751 = vmatprep.subr.bf16.mxu0 0
  %752 = vmatpush1.bf16.msra.mxu0 0
  %753 = vmatprep.subr.bf16.mxu0 0
  %754 = vmatpush1.bf16.msra.mxu0 0
  %755 = vmatprep.mubr.bf16.mxu0 0
  %756 = vmatmul.mubr.bf16.gmra.mrb[0].mxu0 %v204
  %v757 = vpop.f32.mrb[0].mxu0
  %v758 = vadd.f32 0.0, %v757
  %v759 = vpop.f32.mrb[0].mxu0
  %v760 = vpop.f32.mrb[0].mxu0
  %v761 = vadd.f32 0.0, %v760
  %v762 = vpop.f32.mrb[0].mxu0
  %763 = vdwg.mxu0
  %v768 = vunpack.c.l.b16 %v650
  %v769 = vunpack.c.l.b16 %v651
  %v770 = vunpack.c.l.b16 %v652
  %v771 = vunpack.c.l.b16 %v653
  %v772 = vpack.c.b16 %v769, %v768
  %v773 = vpack.c.b16 %v771, %v770
  %776 = vmatprep.subr.bf16.mxu0 0
  %777 = vmatpush1.bf16.msra.mxu0 %v772
  %778 = vmatprep.subr.bf16.mxu0 0
  %779 = vmatpush1.bf16.msra.mxu0 %v773
  %780 = vmatprep.subr.bf16.mxu0 0
  %781 = vmatpush1.bf16.msra.mxu0 0
  %782 = vmatprep.subr.bf16.mxu0 0
  %783 = vmatpush1.bf16.msra.mxu0 0
  %784 = vmatprep.subr.bf16.mxu0 0
  %785 = vmatpush1.bf16.msra.mxu0 0
  %786 = vmatprep.subr.bf16.mxu0 0
  %787 = vmatpush1.bf16.msra.mxu0 0
  %788 = vmatprep.subr.bf16.mxu0 0
  %789 = vmatpush1.bf16.msra.mxu0 0
  %790 = vmatprep.subr.bf16.mxu0 0
  %791 = vmatpush1.bf16.msra.mxu0 0
  %792 = vmatprep.subr.bf16.mxu0 0
  %793 = vmatpush1.bf16.msra.mxu0 0
  %794 = vmatprep.subr.bf16.mxu0 0
  %795 = vmatpush1.bf16.msra.mxu0 0
  %796 = vmatprep.subr.bf16.mxu0 0
  %797 = vmatpush1.bf16.msra.mxu0 0
  %798 = vmatprep.subr.bf16.mxu0 0
  %799 = vmatpush1.bf16.msra.mxu0 0
  %800 = vmatprep.subr.bf16.mxu0 0
  %801 = vmatpush1.bf16.msra.mxu0 0
  %802 = vmatprep.subr.bf16.mxu0 0
  %803 = vmatpush1.bf16.msra.mxu0 0
  %804 = vmatprep.subr.bf16.mxu0 0
  %805 = vmatpush1.bf16.msra.mxu0 0
  %806 = vmatprep.subr.bf16.mxu0 0
  %807 = vmatpush1.bf16.msra.mxu0 0
  %808 = vmatprep.mubr.bf16.mxu0 0
  %809 = vmatmul.mubr.bf16.gmra.mrb[0].mxu0 %v204
  %v810 = vpop.f32.mrb[0].mxu0
  %v811 = vadd.f32 0.0, %v810
  %v812 = vpop.f32.mrb[0].mxu0
  %v813 = vpop.f32.mrb[0].mxu0
  %v814 = vadd.f32 0.0, %v813
  %v815 = vpop.f32.mrb[0].mxu0
  %816 = vdwg.mxu0
  %v821 = vunpack.c.l.b16 %v654
  %v822 = vunpack.c.l.b16 %v655
  %v823 = vunpack.c.l.b16 %v656
  %v824 = vunpack.c.l.b16 %v657
  %v825 = vpack.c.b16 %v822, %v821
  %v826 = vpack.c.b16 %v824, %v823
  %829 = vmatprep.subr.bf16.mxu0 0
  %830 = vmatpush1.bf16.msra.mxu0 %v825
  %831 = vmatprep.subr.bf16.mxu0 0
  %832 = vmatpush1.bf16.msra.mxu0 %v826
  %833 = vmatprep.subr.bf16.mxu0 0
  %834 = vmatpush1.bf16.msra.mxu0 0
  %835 = vmatprep.subr.bf16.mxu0 0
  %836 = vmatpush1.bf16.msra.mxu0 0
  %837 = vmatprep.subr.bf16.mxu0 0
  %838 = vmatpush1.bf16.msra.mxu0 0
  %839 = vmatprep.subr.bf16.mxu0 0
  %840 = vmatpush1.bf16.msra.mxu0 0
  %841 = vmatprep.subr.bf16.mxu0 0
  %842 = vmatpush1.bf16.msra.mxu0 0
  %843 = vmatprep.subr.bf16.mxu0 0
  %844 = vmatpush1.bf16.msra.mxu0 0
  %845 = vmatprep.subr.bf16.mxu0 0
  %846 = vmatpush1.bf16.msra.mxu0 0
  %847 = vmatprep.subr.bf16.mxu0 0
  %848 = vmatpush1.bf16.msra.mxu0 0
  %849 = vmatprep.subr.bf16.mxu0 0
  %850 = vmatpush1.bf16.msra.mxu0 0
  %851 = vmatprep.subr.bf16.mxu0 0
  %852 = vmatpush1.bf16.msra.mxu0 0
  %853 = vmatprep.subr.bf16.mxu0 0
  %854 = vmatpush1.bf16.msra.mxu0 0
  %855 = vmatprep.subr.bf16.mxu0 0
  %856 = vmatpush1.bf16.msra.mxu0 0
  %857 = vmatprep.subr.bf16.mxu0 0
  %858 = vmatpush1.bf16.msra.mxu0 0
  %859 = vmatprep.subr.bf16.mxu0 0
  %860 = vmatpush1.bf16.msra.mxu0 0
  %861 = vmatprep.mubr.bf16.mxu0 0
  %862 = vmatmul.mubr.bf16.gmra.mrb[0].mxu0 %v204
  %v863 = vpop.f32.mrb[0].mxu0
  %v864 = vadd.f32 0.0, %v863
  %v865 = vpop.f32.mrb[0].mxu0
  %v866 = vpop.f32.mrb[0].mxu0
  %v867 = vadd.f32 0.0, %v866
  %v868 = vpop.f32.mrb[0].mxu0
  %869 = vdwg.mxu0
  %v870 = vpack.c.bf16 %v708, %v705
  %v871 = vpack.c.bf16 %v761, %v758
  %v872 = vpack.c.bf16 %v814, %v811
  %v873 = vpack.c.bf16 %v867, %v864
  %vm874 = vcmask 64512
  %v876 = vsel %vm874, %v406, 0
  %v879 = vsel %vm874, %v638, 0
  %881 = vmatprep.subr.bf16.mxu0 0
  %882 = vmatpush1.bf16.xpose.msra.mxu0 %v879
  %883 = vmatprep.subr.bf16.mxu0 0
  %884 = vmatpush1.bf16.xpose.msra.mxu0 0
  %885 = vmatprep.subr.bf16.mxu0 0
  %886 = vmatpush1.bf16.xpose.msra.mxu0 0
  %887 = vmatprep.subr.bf16.mxu0 0
  %888 = vmatpush1.bf16.xpose.msra.mxu0 0
  %889 = vmatprep.subr.bf16.mxu0 0
  %890 = vmatpush1.bf16.xpose.msra.mxu0 0
  %891 = vmatprep.subr.bf16.mxu0 0
  %892 = vmatpush1.bf16.xpose.msra.mxu0 0
  %893 = vmatprep.subr.bf16.mxu0 0
  %894 = vmatpush1.bf16.xpose.msra.mxu0 0
  %895 = vmatprep.subr.bf16.mxu0 0
  %896 = vmatpush1.bf16.xpose.msra.mxu0 0
  %897 = vmatprep.subr.bf16.mxu0 0
  %898 = vmatpush1.bf16.xpose.msra.mxu0 0
  %899 = vmatprep.subr.bf16.mxu0 0
  %900 = vmatpush1.bf16.xpose.msra.mxu0 0
  %901 = vmatprep.subr.bf16.mxu0 0
  %902 = vmatpush1.bf16.xpose.msra.mxu0 0
  %903 = vmatprep.subr.bf16.mxu0 0
  %904 = vmatpush1.bf16.xpose.msra.mxu0 0
  %905 = vmatprep.subr.bf16.mxu0 0
  %906 = vmatpush1.bf16.xpose.msra.mxu0 0
  %907 = vmatprep.subr.bf16.mxu0 0
  %908 = vmatpush1.bf16.xpose.msra.mxu0 0
  %909 = vmatprep.subr.bf16.mxu0 0
  %910 = vmatpush1.bf16.xpose.msra.mxu0 0
  %911 = vmatprep.subr.bf16.mxu0 0
  %912 = vmatpush1.bf16.xpose.msra.mxu0 0
  %913 = vmatprep.mubr.bf16.mxu0 0
  %914 = vmatmul.mubr.bf16.gmra.mrb[0].mxu0 %v876
  %v915 = vpop.f32.mrb[0].mxu0
  %v916 = vadd.f32 %v146, %v915
  %v917 = vpop.f32.mrb[0].mxu0
  %v918 = vpop.f32.mrb[0].mxu0
  %v919 = vadd.f32 %v147, %v918
  %v920 = vpop.f32.mrb[0].mxu0
  %921 = vdwg.mxu0
  %v923 = vsel %vm874, %v407, 0
  %v926 = vsel %vm874, %v639, 0
  %928 = vmatprep.subr.bf16.mxu0 0
  %929 = vmatpush1.bf16.xpose.msra.mxu0 %v926
  %930 = vmatprep.subr.bf16.mxu0 0
  %931 = vmatpush1.bf16.xpose.msra.mxu0 0
  %932 = vmatprep.subr.bf16.mxu0 0
  %933 = vmatpush1.bf16.xpose.msra.mxu0 0
  %934 = vmatprep.subr.bf16.mxu0 0
  %935 = vmatpush1.bf16.xpose.msra.mxu0 0
  %936 = vmatprep.subr.bf16.mxu0 0
  %937 = vmatpush1.bf16.xpose.msra.mxu0 0
  %938 = vmatprep.subr.bf16.mxu0 0
  %939 = vmatpush1.bf16.xpose.msra.mxu0 0
  %940 = vmatprep.subr.bf16.mxu0 0
  %941 = vmatpush1.bf16.xpose.msra.mxu0 0
  %942 = vmatprep.subr.bf16.mxu0 0
  %943 = vmatpush1.bf16.xpose.msra.mxu0 0
  %944 = vmatprep.subr.bf16.mxu0 0
  %945 = vmatpush1.bf16.xpose.msra.mxu0 0
  %946 = vmatprep.subr.bf16.mxu0 0
  %947 = vmatpush1.bf16.xpose.msra.mxu0 0
  %948 = vmatprep.subr.bf16.mxu0 0
  %949 = vmatpush1.bf16.xpose.msra.mxu0 0
  %950 = vmatprep.subr.bf16.mxu0 0
  %951 = vmatpush1.bf16.xpose.msra.mxu0 0
  %952 = vmatprep.subr.bf16.mxu0 0
  %953 = vmatpush1.bf16.xpose.msra.mxu0 0
  %954 = vmatprep.subr.bf16.mxu0 0
  %955 = vmatpush1.bf16.xpose.msra.mxu0 0
  %956 = vmatprep.subr.bf16.mxu0 0
  %957 = vmatpush1.bf16.xpose.msra.mxu0 0
  %958 = vmatprep.subr.bf16.mxu0 0
  %959 = vmatpush1.bf16.xpose.msra.mxu0 0
  %960 = vmatprep.mubr.bf16.mxu0 0
  %961 = vmatmul.mubr.bf16.gmra.mrb[0].mxu0 %v923
  %v962 = vpop.f32.mrb[0].mxu0
  %v963 = vadd.f32 %v146, %v962
  %v964 = vpop.f32.mrb[0].mxu0
  %v965 = vpop.f32.mrb[0].mxu0
  %v966 = vadd.f32 %v147, %v965
  %v967 = vpop.f32.mrb[0].mxu0
  %968 = vdwg.mxu0
  %v970 = vsel %vm874, %v408, 0
  %v973 = vsel %vm874, %v640, 0
  %975 = vmatprep.subr.bf16.mxu0 0
  %976 = vmatpush1.bf16.xpose.msra.mxu0 %v973
  %977 = vmatprep.subr.bf16.mxu0 0
  %978 = vmatpush1.bf16.xpose.msra.mxu0 0
  %979 = vmatprep.subr.bf16.mxu0 0
  %980 = vmatpush1.bf16.xpose.msra.mxu0 0
  %981 = vmatprep.subr.bf16.mxu0 0
  %982 = vmatpush1.bf16.xpose.msra.mxu0 0
  %983 = vmatprep.subr.bf16.mxu0 0
  %984 = vmatpush1.bf16.xpose.msra.mxu0 0
  %985 = vmatprep.subr.bf16.mxu0 0
  %986 = vmatpush1.bf16.xpose.msra.mxu0 0
  %987 = vmatprep.subr.bf16.mxu0 0
  %988 = vmatpush1.bf16.xpose.msra.mxu0 0
  %989 = vmatprep.subr.bf16.mxu0 0
  %990 = vmatpush1.bf16.xpose.msra.mxu0 0
  %991 = vmatprep.subr.bf16.mxu0 0
  %992 = vmatpush1.bf16.xpose.msra.mxu0 0
  %993 = vmatprep.subr.bf16.mxu0 0
  %994 = vmatpush1.bf16.xpose.msra.mxu0 0
  %995 = vmatprep.subr.bf16.mxu0 0
  %996 = vmatpush1.bf16.xpose.msra.mxu0 0
  %997 = vmatprep.subr.bf16.mxu0 0
  %998 = vmatpush1.bf16.xpose.msra.mxu0 0
  %999 = vmatprep.subr.bf16.mxu0 0
  %1000 = vmatpush1.bf16.xpose.msra.mxu0 0
  %1001 = vmatprep.subr.bf16.mxu0 0
  %1002 = vmatpush1.bf16.xpose.msra.mxu0 0
  %1003 = vmatprep.subr.bf16.mxu0 0
  %1004 = vmatpush1.bf16.xpose.msra.mxu0 0
  %1005 = vmatprep.subr.bf16.mxu0 0
  %1006 = vmatpush1.bf16.xpose.msra.mxu0 0
  %1007 = vmatprep.mubr.bf16.mxu0 0
  %1008 = vmatmul.mubr.bf16.gmra.mrb[0].mxu0 %v970
  %v1009 = vpop.f32.mrb[0].mxu0
  %v1010 = vadd.f32 %v146, %v1009
  %v1011 = vpop.f32.mrb[0].mxu0
  %v1012 = vpop.f32.mrb[0].mxu0
  %v1013 = vadd.f32 %v147, %v1012
  %v1014 = vpop.f32.mrb[0].mxu0
  %1015 = vdwg.mxu0
  %v1017 = vsel %vm874, %v409, 0
  %v1020 = vsel %vm874, %v641, 0
  %1022 = vmatprep.subr.bf16.mxu0 0
  %1023 = vmatpush1.bf16.xpose.msra.mxu0 %v1020
  %1024 = vmatprep.subr.bf16.mxu0 0
  %1025 = vmatpush1.bf16.xpose.msra.mxu0 0
  %1026 = vmatprep.subr.bf16.mxu0 0
  %1027 = vmatpush1.bf16.xpose.msra.mxu0 0
  %1028 = vmatprep.subr.bf16.mxu0 0
  %1029 = vmatpush1.bf16.xpose.msra.mxu0 0
  %1030 = vmatprep.subr.bf16.mxu0 0
  %1031 = vmatpush1.bf16.xpose.msra.mxu0 0
  %1032 = vmatprep.subr.bf16.mxu0 0
  %1033 = vmatpush1.bf16.xpose.msra.mxu0 0
  %1034 = vmatprep.subr.bf16.mxu0 0
  %1035 = vmatpush1.bf16.xpose.msra.mxu0 0
  %1036 = vmatprep.subr.bf16.mxu0 0
  %1037 = vmatpush1.bf16.xpose.msra.mxu0 0
  %1038 = vmatprep.subr.bf16.mxu0 0
  %1039 = vmatpush1.bf16.xpose.msra.mxu0 0
  %1040 = vmatprep.subr.bf16.mxu0 0
  %1041 = vmatpush1.bf16.xpose.msra.mxu0 0
  %1042 = vmatprep.subr.bf16.mxu0 0
  %1043 = vmatpush1.bf16.xpose.msra.mxu0 0
  %1044 = vmatprep.subr.bf16.mxu0 0
  %1045 = vmatpush1.bf16.xpose.msra.mxu0 0
  %1046 = vmatprep.subr.bf16.mxu0 0
  %1047 = vmatpush1.bf16.xpose.msra.mxu0 0
  %1048 = vmatprep.subr.bf16.mxu0 0
  %1049 = vmatpush1.bf16.xpose.msra.mxu0 0
  %1050 = vmatprep.subr.bf16.mxu0 0
  %1051 = vmatpush1.bf16.xpose.msra.mxu0 0
  %1052 = vmatprep.subr.bf16.mxu0 0
  %1053 = vmatpush1.bf16.xpose.msra.mxu0 0
  %1054 = vmatprep.mubr.bf16.mxu0 0
  %1055 = vmatmul.mubr.bf16.gmra.mrb[0].mxu0 %v1017
  %v1056 = vpop.f32.mrb[0].mxu0
  %v1057 = vadd.f32 %v146, %v1056
  %v1058 = vpop.f32.mrb[0].mxu0
  %v1059 = vpop.f32.mrb[0].mxu0
  %v1060 = vadd.f32 %v147, %v1059
  %v1061 = vpop.f32.mrb[0].mxu0
  %1062 = vdwg.mxu0
  %vm1063 = vcmask 130048
  %v1064 = vsel %vm1063, %v916, -inf
  %1065 = vmax.xlane.f32.xlu0 %v1064
  %v1066 = vpop.xlane.xlu0 %1065
  %v1067 = vsel %vm1063, %v919, -inf
  %1068 = vmax.xlane.f32.xlu0 %v1067
  %v1069 = vpop.xlane.xlu0 %1068
  %v1070 = vsel %vm1063, %v963, -inf
  %1071 = vmax.xlane.f32.xlu0 %v1070
  %v1072 = vpop.xlane.xlu0 %1071
  %v1073 = vsel %vm1063, %v966, -inf
  %1074 = vmax.xlane.f32.xlu0 %v1073
  %v1075 = vpop.xlane.xlu0 %1074
  %v1076 = vsel %vm1063, %v1010, -inf
  %1077 = vmax.xlane.f32.xlu0 %v1076
  %v1078 = vpop.xlane.xlu0 %1077
  %v1079 = vsel %vm1063, %v1013, -inf
  %1080 = vmax.xlane.f32.xlu0 %v1079
  %v1081 = vpop.xlane.xlu0 %1080
  %v1082 = vsel %vm1063, %v1057, -inf
  %1083 = vmax.xlane.f32.xlu0 %v1082
  %v1084 = vpop.xlane.xlu0 %1083
  %v1085 = vsel %vm1063, %v1060, -inf
  %1086 = vmax.xlane.f32.xlu0 %v1085
  %v1087 = vpop.xlane.xlu0 %1086
  %v1088 = vsub.f32 %v916, %v1066
  %v1089 = vsub.f32 %v919, %v1069
  %v1090 = vsub.f32 %v963, %v1072
  %v1091 = vsub.f32 %v966, %v1075
  %v1092 = vsub.f32 %v1010, %v1078
  %v1093 = vsub.f32 %v1013, %v1081
  %v1094 = vsub.f32 %v1057, %v1084
  %v1095 = vsub.f32 %v1060, %v1087
  %v1096 = vmul.f32 %v1088, 1.442695
  %v1097 = vpow.pop %v1096
  %v1098 = vmul.f32 %v1089, 1.442695
  %v1099 = vpow.pop %v1098
  %v1100 = vmul.f32 %v1090, 1.442695
  %v1101 = vpow.pop %v1100
  %v1102 = vmul.f32 %v1091, 1.442695
  %v1103 = vpow.pop %v1102
  %v1104 = vmul.f32 %v1092, 1.442695
  %v1105 = vpow.pop %v1104
  %v1106 = vmul.f32 %v1093, 1.442695
  %v1107 = vpow.pop %v1106
  %v1108 = vmul.f32 %v1094, 1.442695
  %v1109 = vpow.pop %v1108
  %v1110 = vmul.f32 %v1095, 1.442695
  %v1111 = vpow.pop %v1110
  %v1112 = vsel %vm1063, %v1097, 0.0
  %1113 = vadd.xlane.f32.xlu0 %v1112
  %v1114 = vpop.xlane.xlu0 %1113
  %v1115 = vsel %vm1063, %v1099, 0.0
  %1116 = vadd.xlane.f32.xlu0 %v1115
  %v1117 = vpop.xlane.xlu0 %1116
  %v1118 = vsel %vm1063, %v1101, 0.0
  %1119 = vadd.xlane.f32.xlu0 %v1118
  %v1120 = vpop.xlane.xlu0 %1119
  %v1121 = vsel %vm1063, %v1103, 0.0
  %1122 = vadd.xlane.f32.xlu0 %v1121
  %v1123 = vpop.xlane.xlu0 %1122
  %v1124 = vsel %vm1063, %v1105, 0.0
  %1125 = vadd.xlane.f32.xlu0 %v1124
  %v1126 = vpop.xlane.xlu0 %1125
  %v1127 = vsel %vm1063, %v1107, 0.0
  %1128 = vadd.xlane.f32.xlu0 %v1127
  %v1129 = vpop.xlane.xlu0 %1128
  %v1130 = vsel %vm1063, %v1109, 0.0
  %1131 = vadd.xlane.f32.xlu0 %v1130
  %v1132 = vpop.xlane.xlu0 %1131
  %v1133 = vsel %vm1063, %v1111, 0.0
  %1134 = vadd.xlane.f32.xlu0 %v1133
  %v1135 = vpop.xlane.xlu0 %1134
  %v1136 = vrcp.pop %v1114
  %v1137 = vrcp.pop %v1117
  %v1138 = vrcp.pop %v1120
  %v1139 = vrcp.pop %v1123
  %v1140 = vrcp.pop %v1126
  %v1141 = vrcp.pop %v1129
  %v1142 = vrcp.pop %v1132
  %v1143 = vrcp.pop %v1135
  %v1144 = vmul.f32 %v1097, %v1136
  %v1145 = vmul.f32 %v1099, %v1137
  %v1146 = vmul.f32 %v1101, %v1138
  %v1147 = vmul.f32 %v1103, %v1139
  %v1148 = vmul.f32 %v1105, %v1140
  %v1149 = vmul.f32 %v1107, %v1141
  %v1150 = vmul.f32 %v1109, %v1142
  %v1151 = vmul.f32 %v1111, %v1143
  %v1152 = vpack.c.bf16 %v1145, %v1144
  %v1153 = vpack.c.bf16 %v1147, %v1146
  %v1154 = vpack.c.bf16 %v1149, %v1148
  %v1155 = vpack.c.bf16 %v1151, %v1150
  %v1157 = vsel %vm1063, %v1152, 0
  %1159 = vmatprep.subr.bf16.mxu0 0
  %1160 = vmatpush1.bf16.msra.mxu0 %v870
  %1161 = vmatprep.subr.bf16.mxu0 0
  %1162 = vmatpush1.bf16.msra.mxu0 0
  %1163 = vmatprep.subr.bf16.mxu0 0
  %1164 = vmatpush1.bf16.msra.mxu0 0
  %1165 = vmatprep.subr.bf16.mxu0 0
  %1166 = vmatpush1.bf16.msra.mxu0 0
  %1167 = vmatprep.subr.bf16.mxu0 0
  %1168 = vmatpush1.bf16.msra.mxu0 0
  %1169 = vmatprep.subr.bf16.mxu0 0
  %1170 = vmatpush1.bf16.msra.mxu0 0
  %1171 = vmatprep.subr.bf16.mxu0 0
  %1172 = vmatpush1.bf16.msra.mxu0 0
  %1173 = vmatprep.subr.bf16.mxu0 0
  %1174 = vmatpush1.bf16.msra.mxu0 0
  %1175 = vmatprep.subr.bf16.mxu0 0
  %1176 = vmatpush1.bf16.msra.mxu0 0
  %1177 = vmatprep.subr.bf16.mxu0 0
  %1178 = vmatpush1.bf16.msra.mxu0 0
  %1179 = vmatprep.subr.bf16.mxu0 0
  %1180 = vmatpush1.bf16.msra.mxu0 0
  %1181 = vmatprep.subr.bf16.mxu0 0
  %1182 = vmatpush1.bf16.msra.mxu0 0
  %1183 = vmatprep.subr.bf16.mxu0 0
  %1184 = vmatpush1.bf16.msra.mxu0 0
  %1185 = vmatprep.subr.bf16.mxu0 0
  %1186 = vmatpush1.bf16.msra.mxu0 0
  %1187 = vmatprep.subr.bf16.mxu0 0
  %1188 = vmatpush1.bf16.msra.mxu0 0
  %1189 = vmatprep.subr.bf16.mxu0 0
  %1190 = vmatpush1.bf16.msra.mxu0 0
  %1191 = vmatprep.mubr.bf16.mxu0 0
  %1192 = vmatmul.mubr.bf16.gmra.mrb[0].mxu0 %v1157
  %v1193 = vpop.f32.mrb[0].mxu0
  %v1194 = vadd.f32 0.0, %v1193
  %v1195 = vpop.f32.mrb[0].mxu0
  %v1196 = vpop.f32.mrb[0].mxu0
  %v1197 = vadd.f32 0.0, %v1196
  %v1198 = vpop.f32.mrb[0].mxu0
  %1199 = vdwg.mxu0
  %v1201 = vsel %vm1063, %v1153, 0
  %1203 = vmatprep.subr.bf16.mxu0 0
  %1204 = vmatpush1.bf16.msra.mxu0 %v871
  %1205 = vmatprep.subr.bf16.mxu0 0
  %1206 = vmatpush1.bf16.msra.mxu0 0
  %1207 = vmatprep.subr.bf16.mxu0 0
  %1208 = vmatpush1.bf16.msra.mxu0 0
  %1209 = vmatprep.subr.bf16.mxu0 0
  %1210 = vmatpush1.bf16.msra.mxu0 0
  %1211 = vmatprep.subr.bf16.mxu0 0
  %1212 = vmatpush1.bf16.msra.mxu0 0
  %1213 = vmatprep.subr.bf16.mxu0 0
  %1214 = vmatpush1.bf16.msra.mxu0 0
  %1215 = vmatprep.subr.bf16.mxu0 0
  %1216 = vmatpush1.bf16.msra.mxu0 0
  %1217 = vmatprep.subr.bf16.mxu0 0
  %1218 = vmatpush1.bf16.msra.mxu0 0
  %1219 = vmatprep.subr.bf16.mxu0 0
  %1220 = vmatpush1.bf16.msra.mxu0 0
  %1221 = vmatprep.subr.bf16.mxu0 0
  %1222 = vmatpush1.bf16.msra.mxu0 0
  %1223 = vmatprep.subr.bf16.mxu0 0
  %1224 = vmatpush1.bf16.msra.mxu0 0
  %1225 = vmatprep.subr.bf16.mxu0 0
  %1226 = vmatpush1.bf16.msra.mxu0 0
  %1227 = vmatprep.subr.bf16.mxu0 0
  %1228 = vmatpush1.bf16.msra.mxu0 0
  %1229 = vmatprep.subr.bf16.mxu0 0
  %1230 = vmatpush1.bf16.msra.mxu0 0
  %1231 = vmatprep.subr.bf16.mxu0 0
  %1232 = vmatpush1.bf16.msra.mxu0 0
  %1233 = vmatprep.subr.bf16.mxu0 0
  %1234 = vmatpush1.bf16.msra.mxu0 0
  %1235 = vmatprep.mubr.bf16.mxu0 0
  %1236 = vmatmul.mubr.bf16.gmra.mrb[0].mxu0 %v1201
  %v1237 = vpop.f32.mrb[0].mxu0
  %v1238 = vadd.f32 0.0, %v1237
  %v1239 = vpop.f32.mrb[0].mxu0
  %v1240 = vpop.f32.mrb[0].mxu0
  %v1241 = vadd.f32 0.0, %v1240
  %v1242 = vpop.f32.mrb[0].mxu0
  %1243 = vdwg.mxu0
  %v1245 = vsel %vm1063, %v1154, 0
  %1247 = vmatprep.subr.bf16.mxu0 0
  %1248 = vmatpush1.bf16.msra.mxu0 %v872
  %1249 = vmatprep.subr.bf16.mxu0 0
  %1250 = vmatpush1.bf16.msra.mxu0 0
  %1251 = vmatprep.subr.bf16.mxu0 0
  %1252 = vmatpush1.bf16.msra.mxu0 0
  %1253 = vmatprep.subr.bf16.mxu0 0
  %1254 = vmatpush1.bf16.msra.mxu0 0
  %1255 = vmatprep.subr.bf16.mxu0 0
  %1256 = vmatpush1.bf16.msra.mxu0 0
  %1257 = vmatprep.subr.bf16.mxu0 0
  %1258 = vmatpush1.bf16.msra.mxu0 0
  %1259 = vmatprep.subr.bf16.mxu0 0
  %1260 = vmatpush1.bf16.msra.mxu0 0
  %1261 = vmatprep.subr.bf16.mxu0 0
  %1262 = vmatpush1.bf16.msra.mxu0 0
  %1263 = vmatprep.subr.bf16.mxu0 0
  %1264 = vmatpush1.bf16.msra.mxu0 0
  %1265 = vmatprep.subr.bf16.mxu0 0
  %1266 = vmatpush1.bf16.msra.mxu0 0
  %1267 = vmatprep.subr.bf16.mxu0 0
  %1268 = vmatpush1.bf16.msra.mxu0 0
  %1269 = vmatprep.subr.bf16.mxu0 0
  %1270 = vmatpush1.bf16.msra.mxu0 0
  %1271 = vmatprep.subr.bf16.mxu0 0
  %1272 = vmatpush1.bf16.msra.mxu0 0
  %1273 = vmatprep.subr.bf16.mxu0 0
  %1274 = vmatpush1.bf16.msra.mxu0 0
  %1275 = vmatprep.subr.bf16.mxu0 0
  %1276 = vmatpush1.bf16.msra.mxu0 0
  %1277 = vmatprep.subr.bf16.mxu0 0
  %1278 = vmatpush1.bf16.msra.mxu0 0
  %1279 = vmatprep.mubr.bf16.mxu0 0
  %1280 = vmatmul.mubr.bf16.gmra.mrb[0].mxu0 %v1245
  %v1281 = vpop.f32.mrb[0].mxu0
  %v1282 = vadd.f32 0.0, %v1281
  %v1283 = vpop.f32.mrb[0].mxu0
  %v1284 = vpop.f32.mrb[0].mxu0
  %v1285 = vadd.f32 0.0, %v1284
  %v1286 = vpop.f32.mrb[0].mxu0
  %1287 = vdwg.mxu0
  %v1289 = vsel %vm1063, %v1155, 0
  %1291 = vmatprep.subr.bf16.mxu0 0
  %1292 = vmatpush1.bf16.msra.mxu0 %v873
  %1293 = vmatprep.subr.bf16.mxu0 0
  %1294 = vmatpush1.bf16.msra.mxu0 0
  %1295 = vmatprep.subr.bf16.mxu0 0
  %1296 = vmatpush1.bf16.msra.mxu0 0
  %1297 = vmatprep.subr.bf16.mxu0 0
  %1298 = vmatpush1.bf16.msra.mxu0 0
  %1299 = vmatprep.subr.bf16.mxu0 0
  %1300 = vmatpush1.bf16.msra.mxu0 0
  %1301 = vmatprep.subr.bf16.mxu0 0
  %1302 = vmatpush1.bf16.msra.mxu0 0
  %1303 = vmatprep.subr.bf16.mxu0 0
  %1304 = vmatpush1.bf16.msra.mxu0 0
  %1305 = vmatprep.subr.bf16.mxu0 0
  %1306 = vmatpush1.bf16.msra.mxu0 0
  %1307 = vmatprep.subr.bf16.mxu0 0
  %1308 = vmatpush1.bf16.msra.mxu0 0
  %1309 = vmatprep.subr.bf16.mxu0 0
  %1310 = vmatpush1.bf16.msra.mxu0 0
  %1311 = vmatprep.subr.bf16.mxu0 0
  %1312 = vmatpush1.bf16.msra.mxu0 0
  %1313 = vmatprep.subr.bf16.mxu0 0
  %1314 = vmatpush1.bf16.msra.mxu0 0
  %1315 = vmatprep.subr.bf16.mxu0 0
  %1316 = vmatpush1.bf16.msra.mxu0 0
  %1317 = vmatprep.subr.bf16.mxu0 0
  %1318 = vmatpush1.bf16.msra.mxu0 0
  %1319 = vmatprep.subr.bf16.mxu0 0
  %1320 = vmatpush1.bf16.msra.mxu0 0
  %1321 = vmatprep.subr.bf16.mxu0 0
  %1322 = vmatpush1.bf16.msra.mxu0 0
  %1323 = vmatprep.mubr.bf16.mxu0 0
  %1324 = vmatmul.mubr.bf16.gmra.mrb[0].mxu0 %v1289
  %v1325 = vpop.f32.mrb[0].mxu0
  %v1326 = vadd.f32 0.0, %v1325
  %v1327 = vpop.f32.mrb[0].mxu0
  %v1328 = vpop.f32.mrb[0].mxu0
  %v1329 = vadd.f32 0.0, %v1328
  %v1330 = vpop.f32.mrb[0].mxu0
  %1331 = vdwg.mxu0
  %v1332 = vpack.c.bf16 %v1197, %v1194
  %v1333 = vpack.c.bf16 %v1241, %v1238
  %v1334 = vpack.c.bf16 %v1285, %v1282
  %v1335 = vpack.c.bf16 %v1329, %v1326
  %v1336 = vld [vmem:[%s8] sm:$0xf]
  %v1337 = vld [vmem:[%s8 + $0x4] sm:$0xf]
  %v1338 = vld [vmem:[%s8 + $0x8] sm:$0xf]
  %v1339 = vld [vmem:[%s8 + $0xc] sm:$0xf]
  %v1341 = vsel %vm874, %v1332, 0
  %vm1343 = vcmask 1043456
  %v1345 = vsel %vm1343, %v1336, 0
  %1347 = vmatprep.subr.bf16.mxu0 0
  %1348 = vmatpush1.bf16.msra.mxu0 %v1345
  %1349 = vmatprep.subr.bf16.mxu0 0
  %1350 = vmatpush1.bf16.msra.mxu0 0
  %1351 = vmatprep.subr.bf16.mxu0 0
  %1352 = vmatpush1.bf16.msra.mxu0 0
  %1353 = vmatprep.subr.bf16.mxu0 0
  %1354 = vmatpush1.bf16.msra.mxu0 0
  %1355 = vmatprep.subr.bf16.mxu0 0
  %1356 = vmatpush1.bf16.msra.mxu0 0
  %1357 = vmatprep.subr.bf16.mxu0 0
  %1358 = vmatpush1.bf16.msra.mxu0 0
  %1359 = vmatprep.subr.bf16.mxu0 0
  %1360 = vmatpush1.bf16.msra.mxu0 0
  %1361 = vmatprep.subr.bf16.mxu0 0
  %1362 = vmatpush1.bf16.msra.mxu0 0
  %1363 = vmatprep.subr.bf16.mxu0 0
  %1364 = vmatpush1.bf16.msra.mxu0 0
  %1365 = vmatprep.subr.bf16.mxu0 0
  %1366 = vmatpush1.bf16.msra.mxu0 0
  %1367 = vmatprep.subr.bf16.mxu0 0
  %1368 = vmatpush1.bf16.msra.mxu0 0
  %1369 = vmatprep.subr.bf16.mxu0 0
  %1370 = vmatpush1.bf16.msra.mxu0 0
  %1371 = vmatprep.subr.bf16.mxu0 0
  %1372 = vmatpush1.bf16.msra.mxu0 0
  %1373 = vmatprep.subr.bf16.mxu0 0
  %1374 = vmatpush1.bf16.msra.mxu0 0
  %1375 = vmatprep.subr.bf16.mxu0 0
  %1376 = vmatpush1.bf16.msra.mxu0 0
  %1377 = vmatprep.subr.bf16.mxu0 0
  %1378 = vmatpush1.bf16.msra.mxu0 0
  %1379 = vmatprep.mubr.bf16.mxu0 0
  %1380 = vmatmul.mubr.bf16.gmra.mrb[0].mxu0 %v1341
  %v1381 = vpop.f32.mrb[0].mxu0
  %v1382 = vadd.f32 0.0, %v1381
  %v1383 = vpop.f32.mrb[0].mxu0
  %v1384 = vpop.f32.mrb[0].mxu0
  %v1385 = vadd.f32 0.0, %v1384
  %v1386 = vpop.f32.mrb[0].mxu0
  %1387 = vdwg.mxu0
  %v1389 = vsel %vm874, %v1333, 0
  %v1392 = vsel %vm1343, %v1337, 0
  %1394 = vmatprep.subr.bf16.mxu0 0
  %1395 = vmatpush1.bf16.msra.mxu0 %v1392
  %1396 = vmatprep.subr.bf16.mxu0 0
  %1397 = vmatpush1.bf16.msra.mxu0 0
  %1398 = vmatprep.subr.bf16.mxu0 0
  %1399 = vmatpush1.bf16.msra.mxu0 0
  %1400 = vmatprep.subr.bf16.mxu0 0
  %1401 = vmatpush1.bf16.msra.mxu0 0
  %1402 = vmatprep.subr.bf16.mxu0 0
  %1403 = vmatpush1.bf16.msra.mxu0 0
  %1404 = vmatprep.subr.bf16.mxu0 0
  %1405 = vmatpush1.bf16.msra.mxu0 0
  %1406 = vmatprep.subr.bf16.mxu0 0
  %1407 = vmatpush1.bf16.msra.mxu0 0
  %1408 = vmatprep.subr.bf16.mxu0 0
  %1409 = vmatpush1.bf16.msra.mxu0 0
  %1410 = vmatprep.subr.bf16.mxu0 0
  %1411 = vmatpush1.bf16.msra.mxu0 0
  %1412 = vmatprep.subr.bf16.mxu0 0
  %1413 = vmatpush1.bf16.msra.mxu0 0
  %1414 = vmatprep.subr.bf16.mxu0 0
  %1415 = vmatpush1.bf16.msra.mxu0 0
  %1416 = vmatprep.subr.bf16.mxu0 0
  %1417 = vmatpush1.bf16.msra.mxu0 0
  %1418 = vmatprep.subr.bf16.mxu0 0
  %1419 = vmatpush1.bf16.msra.mxu0 0
  %1420 = vmatprep.subr.bf16.mxu0 0
  %1421 = vmatpush1.bf16.msra.mxu0 0
  %1422 = vmatprep.subr.bf16.mxu0 0
  %1423 = vmatpush1.bf16.msra.mxu0 0
  %1424 = vmatprep.subr.bf16.mxu0 0
  %1425 = vmatpush1.bf16.msra.mxu0 0
  %1426 = vmatprep.mubr.bf16.mxu0 0
  %1427 = vmatmul.mubr.bf16.gmra.mrb[0].mxu0 %v1389
  %v1428 = vpop.f32.mrb[0].mxu0
  %v1429 = vadd.f32 0.0, %v1428
  %v1430 = vpop.f32.mrb[0].mxu0
  %v1431 = vpop.f32.mrb[0].mxu0
  %v1432 = vadd.f32 0.0, %v1431
  %v1433 = vpop.f32.mrb[0].mxu0
  %1434 = vdwg.mxu0
  %v1436 = vsel %vm874, %v1334, 0
  %v1439 = vsel %vm1343, %v1338, 0
  %1441 = vmatprep.subr.bf16.mxu0 0
  %1442 = vmatpush1.bf16.msra.mxu0 %v1439
  %1443 = vmatprep.subr.bf16.mxu0 0
  %1444 = vmatpush1.bf16.msra.mxu0 0
  %1445 = vmatprep.subr.bf16.mxu0 0
  %1446 = vmatpush1.bf16.msra.mxu0 0
  %1447 = vmatprep.subr.bf16.mxu0 0
  %1448 = vmatpush1.bf16.msra.mxu0 0
  %1449 = vmatprep.subr.bf16.mxu0 0
  %1450 = vmatpush1.bf16.msra.mxu0 0
  %1451 = vmatprep.subr.bf16.mxu0 0
  %1452 = vmatpush1.bf16.msra.mxu0 0
  %1453 = vmatprep.subr.bf16.mxu0 0
  %1454 = vmatpush1.bf16.msra.mxu0 0
  %1455 = vmatprep.subr.bf16.mxu0 0
  %1456 = vmatpush1.bf16.msra.mxu0 0
  %1457 = vmatprep.subr.bf16.mxu0 0
  %1458 = vmatpush1.bf16.msra.mxu0 0
  %1459 = vmatprep.subr.bf16.mxu0 0
  %1460 = vmatpush1.bf16.msra.mxu0 0
  %1461 = vmatprep.subr.bf16.mxu0 0
  %1462 = vmatpush1.bf16.msra.mxu0 0
  %1463 = vmatprep.subr.bf16.mxu0 0
  %1464 = vmatpush1.bf16.msra.mxu0 0
  %1465 = vmatprep.subr.bf16.mxu0 0
  %1466 = vmatpush1.bf16.msra.mxu0 0
  %1467 = vmatprep.subr.bf16.mxu0 0
  %1468 = vmatpush1.bf16.msra.mxu0 0
  %1469 = vmatprep.subr.bf16.mxu0 0
  %1470 = vmatpush1.bf16.msra.mxu0 0
  %1471 = vmatprep.subr.bf16.mxu0 0
  %1472 = vmatpush1.bf16.msra.mxu0 0
  %1473 = vmatprep.mubr.bf16.mxu0 0
  %1474 = vmatmul.mubr.bf16.gmra.mrb[0].mxu0 %v1436
  %v1475 = vpop.f32.mrb[0].mxu0
  %v1476 = vadd.f32 0.0, %v1475
  %v1477 = vpop.f32.mrb[0].mxu0
  %v1478 = vpop.f32.mrb[0].mxu0
  %v1479 = vadd.f32 0.0, %v1478
  %v1480 = vpop.f32.mrb[0].mxu0
  %1481 = vdwg.mxu0
  %v1483 = vsel %vm874, %v1335, 0
  %v1486 = vsel %vm1343, %v1339, 0
  %1488 = vmatprep.subr.bf16.mxu0 0
  %1489 = vmatpush1.bf16.msra.mxu0 %v1486
  %1490 = vmatprep.subr.bf16.mxu0 0
  %1491 = vmatpush1.bf16.msra.mxu0 0
  %1492 = vmatprep.subr.bf16.mxu0 0
  %1493 = vmatpush1.bf16.msra.mxu0 0
  %1494 = vmatprep.subr.bf16.mxu0 0
  %1495 = vmatpush1.bf16.msra.mxu0 0
  %1496 = vmatprep.subr.bf16.mxu0 0
  %1497 = vmatpush1.bf16.msra.mxu0 0
  %1498 = vmatprep.subr.bf16.mxu0 0
  %1499 = vmatpush1.bf16.msra.mxu0 0
  %1500 = vmatprep.subr.bf16.mxu0 0
  %1501 = vmatpush1.bf16.msra.mxu0 0
  %1502 = vmatprep.subr.bf16.mxu0 0
  %1503 = vmatpush1.bf16.msra.mxu0 0
  %1504 = vmatprep.subr.bf16.mxu0 0
  %1505 = vmatpush1.bf16.msra.mxu0 0
  %1506 = vmatprep.subr.bf16.mxu0 0
  %1507 = vmatpush1.bf16.msra.mxu0 0
  %1508 = vmatprep.subr.bf16.mxu0 0
  %1509 = vmatpush1.bf16.msra.mxu0 0
  %1510 = vmatprep.subr.bf16.mxu0 0
  %1511 = vmatpush1.bf16.msra.mxu0 0
  %1512 = vmatprep.subr.bf16.mxu0 0
  %1513 = vmatpush1.bf16.msra.mxu0 0
  %1514 = vmatprep.subr.bf16.mxu0 0
  %1515 = vmatpush1.bf16.msra.mxu0 0
  %1516 = vmatprep.subr.bf16.mxu0 0
  %1517 = vmatpush1.bf16.msra.mxu0 0
  %1518 = vmatprep.subr.bf16.mxu0 0
  %1519 = vmatpush1.bf16.msra.mxu0 0
  %1520 = vmatprep.mubr.bf16.mxu0 0
  %1521 = vmatmul.mubr.bf16.gmra.mrb[0].mxu0 %v1483
  %v1522 = vpop.f32.mrb[0].mxu0
  %v1523 = vadd.f32 0.0, %v1522
  %v1524 = vpop.f32.mrb[0].mxu0
  %v1525 = vpop.f32.mrb[0].mxu0
  %v1526 = vadd.f32 0.0, %v1525
  %v1527 = vpop.f32.mrb[0].mxu0
  %1528 = vdwg.mxu0
  %v1529 = vsel %vm151, %v1382, 0.0
  %v1530 = vsel %vm151, %v1429, 0.0
  %v1531 = vadd.f32 %v1529, %v1530
  %v1532 = vsel %vm151, %v1476, 0.0
  %v1533 = vadd.f32 %v1531, %v1532
  %v1534 = vsel %vm151, %v1523, 0.0
  %v1535 = vadd.f32 %v1533, %v1534
  %v1536 = vsel %vm151, %v1385, 0.0
  %v1537 = vsel %vm151, %v1432, 0.0
  %v1538 = vadd.f32 %v1536, %v1537
  %v1539 = vsel %vm151, %v1479, 0.0
  %v1540 = vadd.f32 %v1538, %v1539
  %v1541 = vsel %vm151, %v1526, 0.0
  %v1542 = vadd.f32 %v1540, %v1541
  %v1543 = vadd.f32 %v140, %v1535
  %v1544 = vadd.f32 %v143, %v1542
  %v1545 = vld [vmem:[%s9] sm:$0x1]
  %v1546 = vmul.f32 %v1543, %v1543
  %v1547 = vmul.f32 %v1544, %v1544
  %v1548 = vsel %vm151, %v1546, 0.0
  %1549 = vadd.xlane.f32.xlu0 %v1548
  %v1550 = vpop.xlane.xlu0 %1549
  %v1551 = vsel %vm151, %v1547, 0.0
  %1552 = vadd.xlane.f32.xlu0 %v1551
  %v1553 = vpop.xlane.xlu0 %1552
  %v1554 = vmul.f32 %v1550, %v158
  %v1555 = vmul.f32 %v1553, %v158
  %v1556 = vadd.f32 %v1554, 1e-06
  %v1557 = vadd.f32 %v1555, 1e-06
  %v1558 = vrsqrt.pop %v1556
  %v1559 = vrsqrt.pop %v1557
  %v1560 = vmul.f32 %v1543, %v1558
  %v1561 = vmul.f32 %v1544, %v1559
  %v1562 = vunpack.c.l.bf16 %v1545
  %v1563 = vlaneseq
  %v1564 = vshrl.u32 %v1563, 7
  %v1565 = vsub.s32 0, %v1564
  %v1566 = vrot.slane %v1562, %v1565
  %v1567 = vmul.f32 %v1560, %v1566
  %v1568 = vmul.f32 %v1561, %v1566
  %v1569 = vpack.c.bf16 %v1568, %v1567
  %v1570 = vld [vmem:[%s10] sm:$0xf]
  %v1571 = vld [vmem:[%s10 + $0x4] sm:$0xf]
  %v1572 = vld [vmem:[%s10 + $0x8] sm:$0xf]
  %v1573 = vld [vmem:[%s10 + $0xc] sm:$0xf]
  %v1578 = vunpack.c.l.b16 %v1570
  %v1579 = vunpack.c.l.b16 %v1571
  %v1580 = vunpack.c.l.b16 %v1572
  %v1581 = vunpack.c.l.b16 %v1573
  %v1582 = vpack.c.b16 %v1579, %v1578
  %v1583 = vpack.c.b16 %v1581, %v1580
  %v1587 = vsel %vm151, %v1569, 0
  %1589 = vmatprep.subr.bf16.mxu0 0
  %1590 = vmatpush1.bf16.msra.mxu0 %v1582
  %1591 = vmatprep.subr.bf16.mxu0 0
  %1592 = vmatpush1.bf16.msra.mxu0 %v1583
  %1593 = vmatprep.subr.bf16.mxu0 0
  %1594 = vmatpush1.bf16.msra.mxu0 0
  %1595 = vmatprep.subr.bf16.mxu0 0
  %1596 = vmatpush1.bf16.msra.mxu0 0
  %1597 = vmatprep.subr.bf16.mxu0 0
  %1598 = vmatpush1.bf16.msra.mxu0 0
  %1599 = vmatprep.subr.bf16.mxu0 0
  %1600 = vmatpush1.bf16.msra.mxu0 0
  %1601 = vmatprep.subr.bf16.mxu0 0
  %1602 = vmatpush1.bf16.msra.mxu0 0
  %1603 = vmatprep.subr.bf16.mxu0 0
  %1604 = vmatpush1.bf16.msra.mxu0 0
  %1605 = vmatprep.subr.bf16.mxu0 0
  %1606 = vmatpush1.bf16.msra.mxu0 0
  %1607 = vmatprep.subr.bf16.mxu0 0
  %1608 = vmatpush1.bf16.msra.mxu0 0
  %1609 = vmatprep.subr.bf16.mxu0 0
  %1610 = vmatpush1.bf16.msra.mxu0 0
  %1611 = vmatprep.subr.bf16.mxu0 0
  %1612 = vmatpush1.bf16.msra.mxu0 0
  %1613 = vmatprep.subr.bf16.mxu0 0
  %1614 = vmatpush1.bf16.msra.mxu0 0
  %1615 = vmatprep.subr.bf16.mxu0 0
  %1616 = vmatpush1.bf16.msra.mxu0 0
  %1617 = vmatprep.subr.bf16.mxu0 0
  %1618 = vmatpush1.bf16.msra.mxu0 0
  %1619 = vmatprep.subr.bf16.mxu0 0
  %1620 = vmatpush1.bf16.msra.mxu0 0
  %1621 = vmatprep.mubr.bf16.mxu0 0
  %1622 = vmatmul.mubr.bf16.gmra.mrb[0].mxu0 %v1587
  %v1623 = vpop.f32.mrb[0].mxu0
  %v1624 = vadd.f32 0.0, %v1623
  %v1625 = vpop.f32.mrb[0].mxu0
  %v1626 = vpop.f32.mrb[0].mxu0
  %v1627 = vadd.f32 0.0, %v1626
  %v1628 = vpop.f32.mrb[0].mxu0
  %1629 = vdwg.mxu0
  %v1630 = vxor.u32 %v1624, 2147483648
  %v1631 = vxor.u32 %v1627, 2147483648
  %v1632 = vmul.f32 %v1630, 1.442695
  %v1633 = vpow.pop %v1632
  %v1634 = vmul.f32 %v1631, 1.442695
  %v1635 = vpow.pop %v1634
  %v1636 = vadd.f32 %v1633, 1.0
  %v1637 = vadd.f32 %v1635, 1.0
  %v1638 = vrcp.pop %v1636
  %v1639 = vmul.f32 1.0, %v1638
  %v1640 = vrcp.pop %v1637
  %v1641 = vmul.f32 1.0, %v1640
  %v1642 = vmul.f32 %v1624, %v1639
  %v1643 = vmul.f32 %v1627, %v1641
  %1646 = vrot.lane.b32.xlu0 %v1624, 64
  %v1647 = vpop.permute.xlu0 %1646
  %1648 = vrot.lane.b32.xlu0 %v1627, 64
  %v1649 = vpop.permute.xlu0 %1648
  %v1652 = vmul.f32 %v1642, %v1647
  %v1653 = vmul.f32 %v1643, %v1649
  %v1654 = vpack.c.bf16 %v1653, %v1652
  %v1655 = vld [vmem:[%s11] sm:$0xf]
  %v1656 = vld [vmem:[%s11 + $0x4] sm:$0xf]
  %v1657 = vld [vmem:[%s11 + $0x8] sm:$0xf]
  %v1658 = vld [vmem:[%s11 + $0xc] sm:$0xf]
  %v1659 = vld [vmem:[%s11 + $0x10] sm:$0xf]
  %v1660 = vld [vmem:[%s11 + $0x14] sm:$0xf]
  %v1661 = vld [vmem:[%s11 + $0x18] sm:$0xf]
  %v1662 = vld [vmem:[%s11 + $0x1c] sm:$0xf]
  %v1671 = vunpack.c.l.b16 %v1655
  %v1672 = vunpack.c.l.b16 %v1656
  %v1673 = vunpack.c.l.b16 %v1657
  %v1674 = vunpack.c.l.b16 %v1658
  %v1675 = vunpack.c.l.b16 %v1659
  %v1676 = vunpack.c.l.b16 %v1660
  %v1677 = vunpack.c.l.b16 %v1661
  %v1678 = vunpack.c.l.b16 %v1662
  %v1679 = vpack.c.b16 %v1672, %v1671
  %v1680 = vpack.c.b16 %v1674, %v1673
  %v1681 = vpack.c.b16 %v1676, %v1675
  %v1682 = vpack.c.b16 %v1678, %v1677
  %v1688 = vsel %vm101, %v1654, 0
  %1690 = vmatprep.subr.bf16.mxu0 0
  %1691 = vmatpush1.bf16.msra.mxu0 %v1679
  %1692 = vmatprep.subr.bf16.mxu0 0
  %1693 = vmatpush1.bf16.msra.mxu0 %v1680
  %1694 = vmatprep.subr.bf16.mxu0 0
  %1695 = vmatpush1.bf16.msra.mxu0 %v1681
  %1696 = vmatprep.subr.bf16.mxu0 0
  %1697 = vmatpush1.bf16.msra.mxu0 %v1682
  %1698 = vmatprep.subr.bf16.mxu0 0
  %1699 = vmatpush1.bf16.msra.mxu0 0
  %1700 = vmatprep.subr.bf16.mxu0 0
  %1701 = vmatpush1.bf16.msra.mxu0 0
  %1702 = vmatprep.subr.bf16.mxu0 0
  %1703 = vmatpush1.bf16.msra.mxu0 0
  %1704 = vmatprep.subr.bf16.mxu0 0
  %1705 = vmatpush1.bf16.msra.mxu0 0
  %1706 = vmatprep.subr.bf16.mxu0 0
  %1707 = vmatpush1.bf16.msra.mxu0 0
  %1708 = vmatprep.subr.bf16.mxu0 0
  %1709 = vmatpush1.bf16.msra.mxu0 0
  %1710 = vmatprep.subr.bf16.mxu0 0
  %1711 = vmatpush1.bf16.msra.mxu0 0
  %1712 = vmatprep.subr.bf16.mxu0 0
  %1713 = vmatpush1.bf16.msra.mxu0 0
  %1714 = vmatprep.subr.bf16.mxu0 0
  %1715 = vmatpush1.bf16.msra.mxu0 0
  %1716 = vmatprep.subr.bf16.mxu0 0
  %1717 = vmatpush1.bf16.msra.mxu0 0
  %1718 = vmatprep.subr.bf16.mxu0 0
  %1719 = vmatpush1.bf16.msra.mxu0 0
  %1720 = vmatprep.subr.bf16.mxu0 0
  %1721 = vmatpush1.bf16.msra.mxu0 0
  %1722 = vmatprep.mubr.bf16.mxu0 0
  %1723 = vmatmul.mubr.bf16.gmra.mrb[0].mxu0 %v1688
  %v1724 = vpop.f32.mrb[0].mxu0
  %v1725 = vadd.f32 0.0, %v1724
  %v1726 = vpop.f32.mrb[0].mxu0
  %v1727 = vpop.f32.mrb[0].mxu0
  %v1728 = vadd.f32 0.0, %v1727
  %v1729 = vpop.f32.mrb[0].mxu0
  %1730 = vdwg.mxu0
  %v1731 = vadd.f32 %v1543, %v1725
  %v1732 = vadd.f32 %v1544, %v1728
  %s1733 = scalar_lea.vmem %s4, 1
  %v1734 = vld [vmem:[%s1733] sm:$0x1]
  %v1735 = vmul.f32 %v1731, %v1731
  %v1736 = vmul.f32 %v1732, %v1732
  %v1737 = vsel %vm151, %v1735, 0.0
  %1738 = vadd.xlane.f32.xlu0 %v1737
  %v1739 = vpop.xlane.xlu0 %1738
  %v1740 = vsel %vm151, %v1736, 0.0
  %1741 = vadd.xlane.f32.xlu0 %v1740
  %v1742 = vpop.xlane.xlu0 %1741
  %v1743 = vmul.f32 %v1739, %v158
  %v1744 = vmul.f32 %v1742, %v158
  %v1745 = vadd.f32 %v1743, 1e-06
  %v1746 = vadd.f32 %v1744, 1e-06
  %v1747 = vrsqrt.pop %v1745
  %v1748 = vrsqrt.pop %v1746
  %v1749 = vmul.f32 %v1731, %v1747
  %v1750 = vmul.f32 %v1732, %v1748
  %v1751 = vunpack.c.l.bf16 %v1734
  %v1752 = vlaneseq
  %v1753 = vshrl.u32 %v1752, 7
  %v1754 = vsub.s32 0, %v1753
  %v1755 = vrot.slane %v1751, %v1754
  %v1756 = vmul.f32 %v1749, %v1755
  %v1757 = vmul.f32 %v1750, %v1755
  %v1758 = vpack.c.bf16 %v1757, %v1756
  %s1759 = scalar_lea.vmem %s5, 64
  %v1760 = vld [vmem:[%s1759] sm:$0xf]
  %v1761 = vld [vmem:[%s1759 + $0x4] sm:$0xf]
  %v1762 = vld [vmem:[%s1759 + $0x8] sm:$0xf]
  %v1763 = vld [vmem:[%s1759 + $0xc] sm:$0xf]
  %v1764 = vld [vmem:[%s1759 + $0x10] sm:$0xf]
  %v1765 = vld [vmem:[%s1759 + $0x14] sm:$0xf]
  %v1766 = vld [vmem:[%s1759 + $0x18] sm:$0xf]
  %v1767 = vld [vmem:[%s1759 + $0x1c] sm:$0xf]
  %v1768 = vld [vmem:[%s1759 + $0x20] sm:$0xf]
  %v1769 = vld [vmem:[%s1759 + $0x24] sm:$0xf]
  %v1770 = vld [vmem:[%s1759 + $0x28] sm:$0xf]
  %v1771 = vld [vmem:[%s1759 + $0x2c] sm:$0xf]
  %v1772 = vld [vmem:[%s1759 + $0x30] sm:$0xf]
  %v1773 = vld [vmem:[%s1759 + $0x34] sm:$0xf]
  %v1774 = vld [vmem:[%s1759 + $0x38] sm:$0xf]
  %v1775 = vld [vmem:[%s1759 + $0x3c] sm:$0xf]
  %v1780 = vunpack.c.l.b16 %v1760
  %v1781 = vunpack.c.l.b16 %v1761
  %v1782 = vunpack.c.l.b16 %v1762
  %v1783 = vunpack.c.l.b16 %v1763
  %v1784 = vpack.c.b16 %v1781, %v1780
  %v1785 = vpack.c.b16 %v1783, %v1782
  %v1789 = vsel %vm151, %v1758, 0
  %1791 = vmatprep.subr.bf16.mxu0 0
  %1792 = vmatpush1.bf16.msra.mxu0 %v1784
  %1793 = vmatprep.subr.bf16.mxu0 0
  %1794 = vmatpush1.bf16.msra.mxu0 %v1785
  %1795 = vmatprep.subr.bf16.mxu0 0
  %1796 = vmatpush1.bf16.msra.mxu0 0
  %1797 = vmatprep.subr.bf16.mxu0 0
  %1798 = vmatpush1.bf16.msra.mxu0 0
  %1799 = vmatprep.subr.bf16.mxu0 0
  %1800 = vmatpush1.bf16.msra.mxu0 0
  %1801 = vmatprep.subr.bf16.mxu0 0
  %1802 = vmatpush1.bf16.msra.mxu0 0
  %1803 = vmatprep.subr.bf16.mxu0 0
  %1804 = vmatpush1.bf16.msra.mxu0 0
  %1805 = vmatprep.subr.bf16.mxu0 0
  %1806 = vmatpush1.bf16.msra.mxu0 0
  %1807 = vmatprep.subr.bf16.mxu0 0
  %1808 = vmatpush1.bf16.msra.mxu0 0
  %1809 = vmatprep.subr.bf16.mxu0 0
  %1810 = vmatpush1.bf16.msra.mxu0 0
  %1811 = vmatprep.subr.bf16.mxu0 0
  %1812 = vmatpush1.bf16.msra.mxu0 0
  %1813 = vmatprep.subr.bf16.mxu0 0
  %1814 = vmatpush1.bf16.msra.mxu0 0
  %1815 = vmatprep.subr.bf16.mxu0 0
  %1816 = vmatpush1.bf16.msra.mxu0 0
  %1817 = vmatprep.subr.bf16.mxu0 0
  %1818 = vmatpush1.bf16.msra.mxu0 0
  %1819 = vmatprep.subr.bf16.mxu0 0
  %1820 = vmatpush1.bf16.msra.mxu0 0
  %1821 = vmatprep.subr.bf16.mxu0 0
  %1822 = vmatpush1.bf16.msra.mxu0 0
  %1823 = vmatprep.mubr.bf16.mxu0 0
  %1824 = vmatmul.mubr.bf16.gmra.mrb[0].mxu0 %v1789
  %v1825 = vpop.f32.mrb[0].mxu0
  %v1826 = vadd.f32 0.0, %v1825
  %v1827 = vpop.f32.mrb[0].mxu0
  %v1828 = vpop.f32.mrb[0].mxu0
  %v1829 = vadd.f32 0.0, %v1828
  %v1830 = vpop.f32.mrb[0].mxu0
  %1831 = vdwg.mxu0
  %v1836 = vunpack.c.l.b16 %v1764
  %v1837 = vunpack.c.l.b16 %v1765
  %v1838 = vunpack.c.l.b16 %v1766
  %v1839 = vunpack.c.l.b16 %v1767
  %v1840 = vpack.c.b16 %v1837, %v1836
  %v1841 = vpack.c.b16 %v1839, %v1838
  %1844 = vmatprep.subr.bf16.mxu0 0
  %1845 = vmatpush1.bf16.msra.mxu0 %v1840
  %1846 = vmatprep.subr.bf16.mxu0 0
  %1847 = vmatpush1.bf16.msra.mxu0 %v1841
  %1848 = vmatprep.subr.bf16.mxu0 0
  %1849 = vmatpush1.bf16.msra.mxu0 0
  %1850 = vmatprep.subr.bf16.mxu0 0
  %1851 = vmatpush1.bf16.msra.mxu0 0
  %1852 = vmatprep.subr.bf16.mxu0 0
  %1853 = vmatpush1.bf16.msra.mxu0 0
  %1854 = vmatprep.subr.bf16.mxu0 0
  %1855 = vmatpush1.bf16.msra.mxu0 0
  %1856 = vmatprep.subr.bf16.mxu0 0
  %1857 = vmatpush1.bf16.msra.mxu0 0
  %1858 = vmatprep.subr.bf16.mxu0 0
  %1859 = vmatpush1.bf16.msra.mxu0 0
  %1860 = vmatprep.subr.bf16.mxu0 0
  %1861 = vmatpush1.bf16.msra.mxu0 0
  %1862 = vmatprep.subr.bf16.mxu0 0
  %1863 = vmatpush1.bf16.msra.mxu0 0
  %1864 = vmatprep.subr.bf16.mxu0 0
  %1865 = vmatpush1.bf16.msra.mxu0 0
  %1866 = vmatprep.subr.bf16.mxu0 0
  %1867 = vmatpush1.bf16.msra.mxu0 0
  %1868 = vmatprep.subr.bf16.mxu0 0
  %1869 = vmatpush1.bf16.msra.mxu0 0
  %1870 = vmatprep.subr.bf16.mxu0 0
  %1871 = vmatpush1.bf16.msra.mxu0 0
  %1872 = vmatprep.subr.bf16.mxu0 0
  %1873 = vmatpush1.bf16.msra.mxu0 0
  %1874 = vmatprep.subr.bf16.mxu0 0
  %1875 = vmatpush1.bf16.msra.mxu0 0
  %1876 = vmatprep.mubr.bf16.mxu0 0
  %1877 = vmatmul.mubr.bf16.gmra.mrb[0].mxu0 %v1789
  %v1878 = vpop.f32.mrb[0].mxu0
  %v1879 = vadd.f32 0.0, %v1878
  %v1880 = vpop.f32.mrb[0].mxu0
  %v1881 = vpop.f32.mrb[0].mxu0
  %v1882 = vadd.f32 0.0, %v1881
  %v1883 = vpop.f32.mrb[0].mxu0
  %1884 = vdwg.mxu0
  %v1889 = vunpack.c.l.b16 %v1768
  %v1890 = vunpack.c.l.b16 %v1769
  %v1891 = vunpack.c.l.b16 %v1770
  %v1892 = vunpack.c.l.b16 %v1771
  %v1893 = vpack.c.b16 %v1890, %v1889
  %v1894 = vpack.c.b16 %v1892, %v1891
  %1897 = vmatprep.subr.bf16.mxu0 0
  %1898 = vmatpush1.bf16.msra.mxu0 %v1893
  %1899 = vmatprep.subr.bf16.mxu0 0
  %1900 = vmatpush1.bf16.msra.mxu0 %v1894
  %1901 = vmatprep.subr.bf16.mxu0 0
  %1902 = vmatpush1.bf16.msra.mxu0 0
  %1903 = vmatprep.subr.bf16.mxu0 0
  %1904 = vmatpush1.bf16.msra.mxu0 0
  %1905 = vmatprep.subr.bf16.mxu0 0
  %1906 = vmatpush1.bf16.msra.mxu0 0
  %1907 = vmatprep.subr.bf16.mxu0 0
  %1908 = vmatpush1.bf16.msra.mxu0 0
  %1909 = vmatprep.subr.bf16.mxu0 0
  %1910 = vmatpush1.bf16.msra.mxu0 0
  %1911 = vmatprep.subr.bf16.mxu0 0
  %1912 = vmatpush1.bf16.msra.mxu0 0
  %1913 = vmatprep.subr.bf16.mxu0 0
  %1914 = vmatpush1.bf16.msra.mxu0 0
  %1915 = vmatprep.subr.bf16.mxu0 0
  %1916 = vmatpush1.bf16.msra.mxu0 0
  %1917 = vmatprep.subr.bf16.mxu0 0
  %1918 = vmatpush1.bf16.msra.mxu0 0
  %1919 = vmatprep.subr.bf16.mxu0 0
  %1920 = vmatpush1.bf16.msra.mxu0 0
  %1921 = vmatprep.subr.bf16.mxu0 0
  %1922 = vmatpush1.bf16.msra.mxu0 0
  %1923 = vmatprep.subr.bf16.mxu0 0
  %1924 = vmatpush1.bf16.msra.mxu0 0
  %1925 = vmatprep.subr.bf16.mxu0 0
  %1926 = vmatpush1.bf16.msra.mxu0 0
  %1927 = vmatprep.subr.bf16.mxu0 0
  %1928 = vmatpush1.bf16.msra.mxu0 0
  %1929 = vmatprep.mubr.bf16.mxu0 0
  %1930 = vmatmul.mubr.bf16.gmra.mrb[0].mxu0 %v1789
  %v1931 = vpop.f32.mrb[0].mxu0
  %v1932 = vadd.f32 0.0, %v1931
  %v1933 = vpop.f32.mrb[0].mxu0
  %v1934 = vpop.f32.mrb[0].mxu0
  %v1935 = vadd.f32 0.0, %v1934
  %v1936 = vpop.f32.mrb[0].mxu0
  %1937 = vdwg.mxu0
  %v1942 = vunpack.c.l.b16 %v1772
  %v1943 = vunpack.c.l.b16 %v1773
  %v1944 = vunpack.c.l.b16 %v1774
  %v1945 = vunpack.c.l.b16 %v1775
  %v1946 = vpack.c.b16 %v1943, %v1942
  %v1947 = vpack.c.b16 %v1945, %v1944
  %1950 = vmatprep.subr.bf16.mxu0 0
  %1951 = vmatpush1.bf16.msra.mxu0 %v1946
  %1952 = vmatprep.subr.bf16.mxu0 0
  %1953 = vmatpush1.bf16.msra.mxu0 %v1947
  %1954 = vmatprep.subr.bf16.mxu0 0
  %1955 = vmatpush1.bf16.msra.mxu0 0
  %1956 = vmatprep.subr.bf16.mxu0 0
  %1957 = vmatpush1.bf16.msra.mxu0 0
  %1958 = vmatprep.subr.bf16.mxu0 0
  %1959 = vmatpush1.bf16.msra.mxu0 0
  %1960 = vmatprep.subr.bf16.mxu0 0
  %1961 = vmatpush1.bf16.msra.mxu0 0
  %1962 = vmatprep.subr.bf16.mxu0 0
  %1963 = vmatpush1.bf16.msra.mxu0 0
  %1964 = vmatprep.subr.bf16.mxu0 0
  %1965 = vmatpush1.bf16.msra.mxu0 0
  %1966 = vmatprep.subr.bf16.mxu0 0
  %1967 = vmatpush1.bf16.msra.mxu0 0
  %1968 = vmatprep.subr.bf16.mxu0 0
  %1969 = vmatpush1.bf16.msra.mxu0 0
  %1970 = vmatprep.subr.bf16.mxu0 0
  %1971 = vmatpush1.bf16.msra.mxu0 0
  %1972 = vmatprep.subr.bf16.mxu0 0
  %1973 = vmatpush1.bf16.msra.mxu0 0
  %1974 = vmatprep.subr.bf16.mxu0 0
  %1975 = vmatpush1.bf16.msra.mxu0 0
  %1976 = vmatprep.subr.bf16.mxu0 0
  %1977 = vmatpush1.bf16.msra.mxu0 0
  %1978 = vmatprep.subr.bf16.mxu0 0
  %1979 = vmatpush1.bf16.msra.mxu0 0
  %1980 = vmatprep.subr.bf16.mxu0 0
  %1981 = vmatpush1.bf16.msra.mxu0 0
  %1982 = vmatprep.mubr.bf16.mxu0 0
  %1983 = vmatmul.mubr.bf16.gmra.mrb[0].mxu0 %v1789
  %v1984 = vpop.f32.mrb[0].mxu0
  %v1985 = vadd.f32 0.0, %v1984
  %v1986 = vpop.f32.mrb[0].mxu0
  %v1987 = vpop.f32.mrb[0].mxu0
  %v1988 = vadd.f32 0.0, %v1987
  %v1989 = vpop.f32.mrb[0].mxu0
  %1990 = vdwg.mxu0
  %v1991 = vpack.c.bf16 %v1829, %v1826
  %v1992 = vpack.c.bf16 %v1882, %v1879
  %v1993 = vpack.c.bf16 %v1935, %v1932
  %v1994 = vpack.c.bf16 %v1988, %v1985
  %s1995 = scalar_lea.vmem %s6, 64
  %v1996 = vld [vmem:[%s1995] sm:$0xf]
  %v1997 = vld [vmem:[%s1995 + $0x4] sm:$0xf]
  %v1998 = vld [vmem:[%s1995 + $0x8] sm:$0xf]
  %v1999 = vld [vmem:[%s1995 + $0xc] sm:$0xf]
  %v2000 = vld [vmem:[%s1995 + $0x10] sm:$0xf]
  %v2001 = vld [vmem:[%s1995 + $0x14] sm:$0xf]
  %v2002 = vld [vmem:[%s1995 + $0x18] sm:$0xf]
  %v2003 = vld [vmem:[%s1995 + $0x1c] sm:$0xf]
  %v2004 = vld [vmem:[%s1995 + $0x20] sm:$0xf]
  %v2005 = vld [vmem:[%s1995 + $0x24] sm:$0xf]
  %v2006 = vld [vmem:[%s1995 + $0x28] sm:$0xf]
  %v2007 = vld [vmem:[%s1995 + $0x2c] sm:$0xf]
  %v2008 = vld [vmem:[%s1995 + $0x30] sm:$0xf]
  %v2009 = vld [vmem:[%s1995 + $0x34] sm:$0xf]
  %v2010 = vld [vmem:[%s1995 + $0x38] sm:$0xf]
  %v2011 = vld [vmem:[%s1995 + $0x3c] sm:$0xf]
  %v2016 = vunpack.c.l.b16 %v1996
  %v2017 = vunpack.c.l.b16 %v1997
  %v2018 = vunpack.c.l.b16 %v1998
  %v2019 = vunpack.c.l.b16 %v1999
  %v2020 = vpack.c.b16 %v2017, %v2016
  %v2021 = vpack.c.b16 %v2019, %v2018
  %2024 = vmatprep.subr.bf16.mxu0 0
  %2025 = vmatpush1.bf16.msra.mxu0 %v2020
  %2026 = vmatprep.subr.bf16.mxu0 0
  %2027 = vmatpush1.bf16.msra.mxu0 %v2021
  %2028 = vmatprep.subr.bf16.mxu0 0
  %2029 = vmatpush1.bf16.msra.mxu0 0
  %2030 = vmatprep.subr.bf16.mxu0 0
  %2031 = vmatpush1.bf16.msra.mxu0 0
  %2032 = vmatprep.subr.bf16.mxu0 0
  %2033 = vmatpush1.bf16.msra.mxu0 0
  %2034 = vmatprep.subr.bf16.mxu0 0
  %2035 = vmatpush1.bf16.msra.mxu0 0
  %2036 = vmatprep.subr.bf16.mxu0 0
  %2037 = vmatpush1.bf16.msra.mxu0 0
  %2038 = vmatprep.subr.bf16.mxu0 0
  %2039 = vmatpush1.bf16.msra.mxu0 0
  %2040 = vmatprep.subr.bf16.mxu0 0
  %2041 = vmatpush1.bf16.msra.mxu0 0
  %2042 = vmatprep.subr.bf16.mxu0 0
  %2043 = vmatpush1.bf16.msra.mxu0 0
  %2044 = vmatprep.subr.bf16.mxu0 0
  %2045 = vmatpush1.bf16.msra.mxu0 0
  %2046 = vmatprep.subr.bf16.mxu0 0
  %2047 = vmatpush1.bf16.msra.mxu0 0
  %2048 = vmatprep.subr.bf16.mxu0 0
  %2049 = vmatpush1.bf16.msra.mxu0 0
  %2050 = vmatprep.subr.bf16.mxu0 0
  %2051 = vmatpush1.bf16.msra.mxu0 0
  %2052 = vmatprep.subr.bf16.mxu0 0
  %2053 = vmatpush1.bf16.msra.mxu0 0
  %2054 = vmatprep.subr.bf16.mxu0 0
  %2055 = vmatpush1.bf16.msra.mxu0 0
  %2056 = vmatprep.mubr.bf16.mxu0 0
  %2057 = vmatmul.mubr.bf16.gmra.mrb[0].mxu0 %v1789
  %v2058 = vpop.f32.mrb[0].mxu0
  %v2059 = vadd.f32 0.0, %v2058
  %v2060 = vpop.f32.mrb[0].mxu0
  %v2061 = vpop.f32.mrb[0].mxu0
  %v2062 = vadd.f32 0.0, %v2061
  %v2063 = vpop.f32.mrb[0].mxu0
  %2064 = vdwg.mxu0
  %v2069 = vunpack.c.l.b16 %v2000
  %v2070 = vunpack.c.l.b16 %v2001
  %v2071 = vunpack.c.l.b16 %v2002
  %v2072 = vunpack.c.l.b16 %v2003
  %v2073 = vpack.c.b16 %v2070, %v2069
  %v2074 = vpack.c.b16 %v2072, %v2071
  %2077 = vmatprep.subr.bf16.mxu0 0
  %2078 = vmatpush1.bf16.msra.mxu0 %v2073
  %2079 = vmatprep.subr.bf16.mxu0 0
  %2080 = vmatpush1.bf16.msra.mxu0 %v2074
  %2081 = vmatprep.subr.bf16.mxu0 0
  %2082 = vmatpush1.bf16.msra.mxu0 0
  %2083 = vmatprep.subr.bf16.mxu0 0
  %2084 = vmatpush1.bf16.msra.mxu0 0
  %2085 = vmatprep.subr.bf16.mxu0 0
  %2086 = vmatpush1.bf16.msra.mxu0 0
  %2087 = vmatprep.subr.bf16.mxu0 0
  %2088 = vmatpush1.bf16.msra.mxu0 0
  %2089 = vmatprep.subr.bf16.mxu0 0
  %2090 = vmatpush1.bf16.msra.mxu0 0
  %2091 = vmatprep.subr.bf16.mxu0 0
  %2092 = vmatpush1.bf16.msra.mxu0 0
  %2093 = vmatprep.subr.bf16.mxu0 0
  %2094 = vmatpush1.bf16.msra.mxu0 0
  %2095 = vmatprep.subr.bf16.mxu0 0
  %2096 = vmatpush1.bf16.msra.mxu0 0
  %2097 = vmatprep.subr.bf16.mxu0 0
  %2098 = vmatpush1.bf16.msra.mxu0 0
  %2099 = vmatprep.subr.bf16.mxu0 0
  %2100 = vmatpush1.bf16.msra.mxu0 0
  %2101 = vmatprep.subr.bf16.mxu0 0
  %2102 = vmatpush1.bf16.msra.mxu0 0
  %2103 = vmatprep.subr.bf16.mxu0 0
  %2104 = vmatpush1.bf16.msra.mxu0 0
  %2105 = vmatprep.subr.bf16.mxu0 0
  %2106 = vmatpush1.bf16.msra.mxu0 0
  %2107 = vmatprep.subr.bf16.mxu0 0
  %2108 = vmatpush1.bf16.msra.mxu0 0
  %2109 = vmatprep.mubr.bf16.mxu0 0
  %2110 = vmatmul.mubr.bf16.gmra.mrb[0].mxu0 %v1789
  %v2111 = vpop.f32.mrb[0].mxu0
  %v2112 = vadd.f32 0.0, %v2111
  %v2113 = vpop.f32.mrb[0].mxu0
  %v2114 = vpop.f32.mrb[0].mxu0
  %v2115 = vadd.f32 0.0, %v2114
  %v2116 = vpop.f32.mrb[0].mxu0
  %2117 = vdwg.mxu0
  %v2122 = vunpack.c.l.b16 %v2004
  %v2123 = vunpack.c.l.b16 %v2005
  %v2124 = vunpack.c.l.b16 %v2006
  %v2125 = vunpack.c.l.b16 %v2007
  %v2126 = vpack.c.b16 %v2123, %v2122
  %v2127 = vpack.c.b16 %v2125, %v2124
  %2130 = vmatprep.subr.bf16.mxu0 0
  %2131 = vmatpush1.bf16.msra.mxu0 %v2126
  %2132 = vmatprep.subr.bf16.mxu0 0
  %2133 = vmatpush1.bf16.msra.mxu0 %v2127
  %2134 = vmatprep.subr.bf16.mxu0 0
  %2135 = vmatpush1.bf16.msra.mxu0 0
  %2136 = vmatprep.subr.bf16.mxu0 0
  %2137 = vmatpush1.bf16.msra.mxu0 0
  %2138 = vmatprep.subr.bf16.mxu0 0
  %2139 = vmatpush1.bf16.msra.mxu0 0
  %2140 = vmatprep.subr.bf16.mxu0 0
  %2141 = vmatpush1.bf16.msra.mxu0 0
  %2142 = vmatprep.subr.bf16.mxu0 0
  %2143 = vmatpush1.bf16.msra.mxu0 0
  %2144 = vmatprep.subr.bf16.mxu0 0
  %2145 = vmatpush1.bf16.msra.mxu0 0
  %2146 = vmatprep.subr.bf16.mxu0 0
  %2147 = vmatpush1.bf16.msra.mxu0 0
  %2148 = vmatprep.subr.bf16.mxu0 0
  %2149 = vmatpush1.bf16.msra.mxu0 0
  %2150 = vmatprep.subr.bf16.mxu0 0
  %2151 = vmatpush1.bf16.msra.mxu0 0
  %2152 = vmatprep.subr.bf16.mxu0 0
  %2153 = vmatpush1.bf16.msra.mxu0 0
  %2154 = vmatprep.subr.bf16.mxu0 0
  %2155 = vmatpush1.bf16.msra.mxu0 0
  %2156 = vmatprep.subr.bf16.mxu0 0
  %2157 = vmatpush1.bf16.msra.mxu0 0
  %2158 = vmatprep.subr.bf16.mxu0 0
  %2159 = vmatpush1.bf16.msra.mxu0 0
  %2160 = vmatprep.subr.bf16.mxu0 0
  %2161 = vmatpush1.bf16.msra.mxu0 0
  %2162 = vmatprep.mubr.bf16.mxu0 0
  %2163 = vmatmul.mubr.bf16.gmra.mrb[0].mxu0 %v1789
  %v2164 = vpop.f32.mrb[0].mxu0
  %v2165 = vadd.f32 0.0, %v2164
  %v2166 = vpop.f32.mrb[0].mxu0
  %v2167 = vpop.f32.mrb[0].mxu0
  %v2168 = vadd.f32 0.0, %v2167
  %v2169 = vpop.f32.mrb[0].mxu0
  %2170 = vdwg.mxu0
  %v2175 = vunpack.c.l.b16 %v2008
  %v2176 = vunpack.c.l.b16 %v2009
  %v2177 = vunpack.c.l.b16 %v2010
  %v2178 = vunpack.c.l.b16 %v2011
  %v2179 = vpack.c.b16 %v2176, %v2175
  %v2180 = vpack.c.b16 %v2178, %v2177
  %2183 = vmatprep.subr.bf16.mxu0 0
  %2184 = vmatpush1.bf16.msra.mxu0 %v2179
  %2185 = vmatprep.subr.bf16.mxu0 0
  %2186 = vmatpush1.bf16.msra.mxu0 %v2180
  %2187 = vmatprep.subr.bf16.mxu0 0
  %2188 = vmatpush1.bf16.msra.mxu0 0
  %2189 = vmatprep.subr.bf16.mxu0 0
  %2190 = vmatpush1.bf16.msra.mxu0 0
  %2191 = vmatprep.subr.bf16.mxu0 0
  %2192 = vmatpush1.bf16.msra.mxu0 0
  %2193 = vmatprep.subr.bf16.mxu0 0
  %2194 = vmatpush1.bf16.msra.mxu0 0
  %2195 = vmatprep.subr.bf16.mxu0 0
  %2196 = vmatpush1.bf16.msra.mxu0 0
  %2197 = vmatprep.subr.bf16.mxu0 0
  %2198 = vmatpush1.bf16.msra.mxu0 0
  %2199 = vmatprep.subr.bf16.mxu0 0
  %2200 = vmatpush1.bf16.msra.mxu0 0
  %2201 = vmatprep.subr.bf16.mxu0 0
  %2202 = vmatpush1.bf16.msra.mxu0 0
  %2203 = vmatprep.subr.bf16.mxu0 0
  %2204 = vmatpush1.bf16.msra.mxu0 0
  %2205 = vmatprep.subr.bf16.mxu0 0
  %2206 = vmatpush1.bf16.msra.mxu0 0
  %2207 = vmatprep.subr.bf16.mxu0 0
  %2208 = vmatpush1.bf16.msra.mxu0 0
  %2209 = vmatprep.subr.bf16.mxu0 0
  %2210 = vmatpush1.bf16.msra.mxu0 0
  %2211 = vmatprep.subr.bf16.mxu0 0
  %2212 = vmatpush1.bf16.msra.mxu0 0
  %2213 = vmatprep.subr.bf16.mxu0 0
  %2214 = vmatpush1.bf16.msra.mxu0 0
  %2215 = vmatprep.mubr.bf16.mxu0 0
  %2216 = vmatmul.mubr.bf16.gmra.mrb[0].mxu0 %v1789
  %v2217 = vpop.f32.mrb[0].mxu0
  %v2218 = vadd.f32 0.0, %v2217
  %v2219 = vpop.f32.mrb[0].mxu0
  %v2220 = vpop.f32.mrb[0].mxu0
  %v2221 = vadd.f32 0.0, %v2220
  %v2222 = vpop.f32.mrb[0].mxu0
  %2223 = vdwg.mxu0
  %v2224 = vpack.c.bf16 %v2062, %v2059
  %v2225 = vpack.c.bf16 %v2115, %v2112
  %v2226 = vpack.c.bf16 %v2168, %v2165
  %v2227 = vpack.c.bf16 %v2221, %v2218
  %s2228 = scalar_lea.vmem %s7, 64
  %v2229 = vld [vmem:[%s2228] sm:$0xf]
  %v2230 = vld [vmem:[%s2228 + $0x4] sm:$0xf]
  %v2231 = vld [vmem:[%s2228 + $0x8] sm:$0xf]
  %v2232 = vld [vmem:[%s2228 + $0xc] sm:$0xf]
  %v2233 = vld [vmem:[%s2228 + $0x10] sm:$0xf]
  %v2234 = vld [vmem:[%s2228 + $0x14] sm:$0xf]
  %v2235 = vld [vmem:[%s2228 + $0x18] sm:$0xf]
  %v2236 = vld [vmem:[%s2228 + $0x1c] sm:$0xf]
  %v2237 = vld [vmem:[%s2228 + $0x20] sm:$0xf]
  %v2238 = vld [vmem:[%s2228 + $0x24] sm:$0xf]
  %v2239 = vld [vmem:[%s2228 + $0x28] sm:$0xf]
  %v2240 = vld [vmem:[%s2228 + $0x2c] sm:$0xf]
  %v2241 = vld [vmem:[%s2228 + $0x30] sm:$0xf]
  %v2242 = vld [vmem:[%s2228 + $0x34] sm:$0xf]
  %v2243 = vld [vmem:[%s2228 + $0x38] sm:$0xf]
  %v2244 = vld [vmem:[%s2228 + $0x3c] sm:$0xf]
  %v2249 = vunpack.c.l.b16 %v2229
  %v2250 = vunpack.c.l.b16 %v2230
  %v2251 = vunpack.c.l.b16 %v2231
  %v2252 = vunpack.c.l.b16 %v2232
  %v2253 = vpack.c.b16 %v2250, %v2249
  %v2254 = vpack.c.b16 %v2252, %v2251
  %2257 = vmatprep.subr.bf16.mxu0 0
  %2258 = vmatpush1.bf16.msra.mxu0 %v2253
  %2259 = vmatprep.subr.bf16.mxu0 0
  %2260 = vmatpush1.bf16.msra.mxu0 %v2254
  %2261 = vmatprep.subr.bf16.mxu0 0
  %2262 = vmatpush1.bf16.msra.mxu0 0
  %2263 = vmatprep.subr.bf16.mxu0 0
  %2264 = vmatpush1.bf16.msra.mxu0 0
  %2265 = vmatprep.subr.bf16.mxu0 0
  %2266 = vmatpush1.bf16.msra.mxu0 0
  %2267 = vmatprep.subr.bf16.mxu0 0
  %2268 = vmatpush1.bf16.msra.mxu0 0
  %2269 = vmatprep.subr.bf16.mxu0 0
  %2270 = vmatpush1.bf16.msra.mxu0 0
  %2271 = vmatprep.subr.bf16.mxu0 0
  %2272 = vmatpush1.bf16.msra.mxu0 0
  %2273 = vmatprep.subr.bf16.mxu0 0
  %2274 = vmatpush1.bf16.msra.mxu0 0
  %2275 = vmatprep.subr.bf16.mxu0 0
  %2276 = vmatpush1.bf16.msra.mxu0 0
  %2277 = vmatprep.subr.bf16.mxu0 0
  %2278 = vmatpush1.bf16.msra.mxu0 0
  %2279 = vmatprep.subr.bf16.mxu0 0
  %2280 = vmatpush1.bf16.msra.mxu0 0
  %2281 = vmatprep.subr.bf16.mxu0 0
  %2282 = vmatpush1.bf16.msra.mxu0 0
  %2283 = vmatprep.subr.bf16.mxu0 0
  %2284 = vmatpush1.bf16.msra.mxu0 0
  %2285 = vmatprep.subr.bf16.mxu0 0
  %2286 = vmatpush1.bf16.msra.mxu0 0
  %2287 = vmatprep.subr.bf16.mxu0 0
  %2288 = vmatpush1.bf16.msra.mxu0 0
  %2289 = vmatprep.mubr.bf16.mxu0 0
  %2290 = vmatmul.mubr.bf16.gmra.mrb[0].mxu0 %v1789
  %v2291 = vpop.f32.mrb[0].mxu0
  %v2292 = vadd.f32 0.0, %v2291
  %v2293 = vpop.f32.mrb[0].mxu0
  %v2294 = vpop.f32.mrb[0].mxu0
  %v2295 = vadd.f32 0.0, %v2294
  %v2296 = vpop.f32.mrb[0].mxu0
  %2297 = vdwg.mxu0
  %v2302 = vunpack.c.l.b16 %v2233
  %v2303 = vunpack.c.l.b16 %v2234
  %v2304 = vunpack.c.l.b16 %v2235
  %v2305 = vunpack.c.l.b16 %v2236
  %v2306 = vpack.c.b16 %v2303, %v2302
  %v2307 = vpack.c.b16 %v2305, %v2304
  %2310 = vmatprep.subr.bf16.mxu0 0
  %2311 = vmatpush1.bf16.msra.mxu0 %v2306
  %2312 = vmatprep.subr.bf16.mxu0 0
  %2313 = vmatpush1.bf16.msra.mxu0 %v2307
  %2314 = vmatprep.subr.bf16.mxu0 0
  %2315 = vmatpush1.bf16.msra.mxu0 0
  %2316 = vmatprep.subr.bf16.mxu0 0
  %2317 = vmatpush1.bf16.msra.mxu0 0
  %2318 = vmatprep.subr.bf16.mxu0 0
  %2319 = vmatpush1.bf16.msra.mxu0 0
  %2320 = vmatprep.subr.bf16.mxu0 0
  %2321 = vmatpush1.bf16.msra.mxu0 0
  %2322 = vmatprep.subr.bf16.mxu0 0
  %2323 = vmatpush1.bf16.msra.mxu0 0
  %2324 = vmatprep.subr.bf16.mxu0 0
  %2325 = vmatpush1.bf16.msra.mxu0 0
  %2326 = vmatprep.subr.bf16.mxu0 0
  %2327 = vmatpush1.bf16.msra.mxu0 0
  %2328 = vmatprep.subr.bf16.mxu0 0
  %2329 = vmatpush1.bf16.msra.mxu0 0
  %2330 = vmatprep.subr.bf16.mxu0 0
  %2331 = vmatpush1.bf16.msra.mxu0 0
  %2332 = vmatprep.subr.bf16.mxu0 0
  %2333 = vmatpush1.bf16.msra.mxu0 0
  %2334 = vmatprep.subr.bf16.mxu0 0
  %2335 = vmatpush1.bf16.msra.mxu0 0
  %2336 = vmatprep.subr.bf16.mxu0 0
  %2337 = vmatpush1.bf16.msra.mxu0 0
  %2338 = vmatprep.subr.bf16.mxu0 0
  %2339 = vmatpush1.bf16.msra.mxu0 0
  %2340 = vmatprep.subr.bf16.mxu0 0
  %2341 = vmatpush1.bf16.msra.mxu0 0
  %2342 = vmatprep.mubr.bf16.mxu0 0
  %2343 = vmatmul.mubr.bf16.gmra.mrb[0].mxu0 %v1789
  %v2344 = vpop.f32.mrb[0].mxu0
  %v2345 = vadd.f32 0.0, %v2344
  %v2346 = vpop.f32.mrb[0].mxu0
  %v2347 = vpop.f32.mrb[0].mxu0
  %v2348 = vadd.f32 0.0, %v2347
  %v2349 = vpop.f32.mrb[0].mxu0
  %2350 = vdwg.mxu0
  %v2355 = vunpack.c.l.b16 %v2237
  %v2356 = vunpack.c.l.b16 %v2238
  %v2357 = vunpack.c.l.b16 %v2239
  %v2358 = vunpack.c.l.b16 %v2240
  %v2359 = vpack.c.b16 %v2356, %v2355
  %v2360 = vpack.c.b16 %v2358, %v2357
  %2363 = vmatprep.subr.bf16.mxu0 0
  %2364 = vmatpush1.bf16.msra.mxu0 %v2359
  %2365 = vmatprep.subr.bf16.mxu0 0
  %2366 = vmatpush1.bf16.msra.mxu0 %v2360
  %2367 = vmatprep.subr.bf16.mxu0 0
  %2368 = vmatpush1.bf16.msra.mxu0 0
  %2369 = vmatprep.subr.bf16.mxu0 0
  %2370 = vmatpush1.bf16.msra.mxu0 0
  %2371 = vmatprep.subr.bf16.mxu0 0
  %2372 = vmatpush1.bf16.msra.mxu0 0
  %2373 = vmatprep.subr.bf16.mxu0 0
  %2374 = vmatpush1.bf16.msra.mxu0 0
  %2375 = vmatprep.subr.bf16.mxu0 0
  %2376 = vmatpush1.bf16.msra.mxu0 0
  %2377 = vmatprep.subr.bf16.mxu0 0
  %2378 = vmatpush1.bf16.msra.mxu0 0
  %2379 = vmatprep.subr.bf16.mxu0 0
  %2380 = vmatpush1.bf16.msra.mxu0 0
  %2381 = vmatprep.subr.bf16.mxu0 0
  %2382 = vmatpush1.bf16.msra.mxu0 0
  %2383 = vmatprep.subr.bf16.mxu0 0
  %2384 = vmatpush1.bf16.msra.mxu0 0
  %2385 = vmatprep.subr.bf16.mxu0 0
  %2386 = vmatpush1.bf16.msra.mxu0 0
  %2387 = vmatprep.subr.bf16.mxu0 0
  %2388 = vmatpush1.bf16.msra.mxu0 0
  %2389 = vmatprep.subr.bf16.mxu0 0
  %2390 = vmatpush1.bf16.msra.mxu0 0
  %2391 = vmatprep.subr.bf16.mxu0 0
  %2392 = vmatpush1.bf16.msra.mxu0 0
  %2393 = vmatprep.subr.bf16.mxu0 0
  %2394 = vmatpush1.bf16.msra.mxu0 0
  %2395 = vmatprep.mubr.bf16.mxu0 0
  %2396 = vmatmul.mubr.bf16.gmra.mrb[0].mxu0 %v1789
  %v2397 = vpop.f32.mrb[0].mxu0
  %v2398 = vadd.f32 0.0, %v2397
  %v2399 = vpop.f32.mrb[0].mxu0
  %v2400 = vpop.f32.mrb[0].mxu0
  %v2401 = vadd.f32 0.0, %v2400
  %v2402 = vpop.f32.mrb[0].mxu0
  %2403 = vdwg.mxu0
  %v2408 = vunpack.c.l.b16 %v2241
  %v2409 = vunpack.c.l.b16 %v2242
  %v2410 = vunpack.c.l.b16 %v2243
  %v2411 = vunpack.c.l.b16 %v2244
  %v2412 = vpack.c.b16 %v2409, %v2408
  %v2413 = vpack.c.b16 %v2411, %v2410
  %2416 = vmatprep.subr.bf16.mxu0 0
  %2417 = vmatpush1.bf16.msra.mxu0 %v2412
  %2418 = vmatprep.subr.bf16.mxu0 0
  %2419 = vmatpush1.bf16.msra.mxu0 %v2413
  %2420 = vmatprep.subr.bf16.mxu0 0
  %2421 = vmatpush1.bf16.msra.mxu0 0
  %2422 = vmatprep.subr.bf16.mxu0 0
  %2423 = vmatpush1.bf16.msra.mxu0 0
  %2424 = vmatprep.subr.bf16.mxu0 0
  %2425 = vmatpush1.bf16.msra.mxu0 0
  %2426 = vmatprep.subr.bf16.mxu0 0
  %2427 = vmatpush1.bf16.msra.mxu0 0
  %2428 = vmatprep.subr.bf16.mxu0 0
  %2429 = vmatpush1.bf16.msra.mxu0 0
  %2430 = vmatprep.subr.bf16.mxu0 0
  %2431 = vmatpush1.bf16.msra.mxu0 0
  %2432 = vmatprep.subr.bf16.mxu0 0
  %2433 = vmatpush1.bf16.msra.mxu0 0
  %2434 = vmatprep.subr.bf16.mxu0 0
  %2435 = vmatpush1.bf16.msra.mxu0 0
  %2436 = vmatprep.subr.bf16.mxu0 0
  %2437 = vmatpush1.bf16.msra.mxu0 0
  %2438 = vmatprep.subr.bf16.mxu0 0
  %2439 = vmatpush1.bf16.msra.mxu0 0
  %2440 = vmatprep.subr.bf16.mxu0 0
  %2441 = vmatpush1.bf16.msra.mxu0 0
  %2442 = vmatprep.subr.bf16.mxu0 0
  %2443 = vmatpush1.bf16.msra.mxu0 0
  %2444 = vmatprep.subr.bf16.mxu0 0
  %2445 = vmatpush1.bf16.msra.mxu0 0
  %2446 = vmatprep.subr.bf16.mxu0 0
  %2447 = vmatpush1.bf16.msra.mxu0 0
  %2448 = vmatprep.mubr.bf16.mxu0 0
  %2449 = vmatmul.mubr.bf16.gmra.mrb[0].mxu0 %v1789
  %v2450 = vpop.f32.mrb[0].mxu0
  %v2451 = vadd.f32 0.0, %v2450
  %v2452 = vpop.f32.mrb[0].mxu0
  %v2453 = vpop.f32.mrb[0].mxu0
  %v2454 = vadd.f32 0.0, %v2453
  %v2455 = vpop.f32.mrb[0].mxu0
  %2456 = vdwg.mxu0
  %v2457 = vpack.c.bf16 %v2295, %v2292
  %v2458 = vpack.c.bf16 %v2348, %v2345
  %v2459 = vpack.c.bf16 %v2401, %v2398
  %v2460 = vpack.c.bf16 %v2454, %v2451
  %v2462 = vsel %vm874, %v1991, 0
  %v2465 = vsel %vm874, %v2224, 0
  %2467 = vmatprep.subr.bf16.mxu0 0
  %2468 = vmatpush1.bf16.xpose.msra.mxu0 %v2465
  %2469 = vmatprep.subr.bf16.mxu0 0
  %2470 = vmatpush1.bf16.xpose.msra.mxu0 0
  %2471 = vmatprep.subr.bf16.mxu0 0
  %2472 = vmatpush1.bf16.xpose.msra.mxu0 0
  %2473 = vmatprep.subr.bf16.mxu0 0
  %2474 = vmatpush1.bf16.xpose.msra.mxu0 0
  %2475 = vmatprep.subr.bf16.mxu0 0
  %2476 = vmatpush1.bf16.xpose.msra.mxu0 0
  %2477 = vmatprep.subr.bf16.mxu0 0
  %2478 = vmatpush1.bf16.xpose.msra.mxu0 0
  %2479 = vmatprep.subr.bf16.mxu0 0
  %2480 = vmatpush1.bf16.xpose.msra.mxu0 0
  %2481 = vmatprep.subr.bf16.mxu0 0
  %2482 = vmatpush1.bf16.xpose.msra.mxu0 0
  %2483 = vmatprep.subr.bf16.mxu0 0
  %2484 = vmatpush1.bf16.xpose.msra.mxu0 0
  %2485 = vmatprep.subr.bf16.mxu0 0
  %2486 = vmatpush1.bf16.xpose.msra.mxu0 0
  %2487 = vmatprep.subr.bf16.mxu0 0
  %2488 = vmatpush1.bf16.xpose.msra.mxu0 0
  %2489 = vmatprep.subr.bf16.mxu0 0
  %2490 = vmatpush1.bf16.xpose.msra.mxu0 0
  %2491 = vmatprep.subr.bf16.mxu0 0
  %2492 = vmatpush1.bf16.xpose.msra.mxu0 0
  %2493 = vmatprep.subr.bf16.mxu0 0
  %2494 = vmatpush1.bf16.xpose.msra.mxu0 0
  %2495 = vmatprep.subr.bf16.mxu0 0
  %2496 = vmatpush1.bf16.xpose.msra.mxu0 0
  %2497 = vmatprep.subr.bf16.mxu0 0
  %2498 = vmatpush1.bf16.xpose.msra.mxu0 0
  %2499 = vmatprep.mubr.bf16.mxu0 0
  %2500 = vmatmul.mubr.bf16.gmra.mrb[0].mxu0 %v2462
  %v2501 = vpop.f32.mrb[0].mxu0
  %v2502 = vadd.f32 %v146, %v2501
  %v2503 = vpop.f32.mrb[0].mxu0
  %v2504 = vpop.f32.mrb[0].mxu0
  %v2505 = vadd.f32 %v147, %v2504
  %v2506 = vpop.f32.mrb[0].mxu0
  %2507 = vdwg.mxu0
  %v2509 = vsel %vm874, %v1992, 0
  %v2512 = vsel %vm874, %v2225, 0
  %2514 = vmatprep.subr.bf16.mxu0 0
  %2515 = vmatpush1.bf16.xpose.msra.mxu0 %v2512
  %2516 = vmatprep.subr.bf16.mxu0 0
  %2517 = vmatpush1.bf16.xpose.msra.mxu0 0
  %2518 = vmatprep.subr.bf16.mxu0 0
  %2519 = vmatpush1.bf16.xpose.msra.mxu0 0
  %2520 = vmatprep.subr.bf16.mxu0 0
  %2521 = vmatpush1.bf16.xpose.msra.mxu0 0
  %2522 = vmatprep.subr.bf16.mxu0 0
  %2523 = vmatpush1.bf16.xpose.msra.mxu0 0
  %2524 = vmatprep.subr.bf16.mxu0 0
  %2525 = vmatpush1.bf16.xpose.msra.mxu0 0
  %2526 = vmatprep.subr.bf16.mxu0 0
  %2527 = vmatpush1.bf16.xpose.msra.mxu0 0
  %2528 = vmatprep.subr.bf16.mxu0 0
  %2529 = vmatpush1.bf16.xpose.msra.mxu0 0
  %2530 = vmatprep.subr.bf16.mxu0 0
  %2531 = vmatpush1.bf16.xpose.msra.mxu0 0
  %2532 = vmatprep.subr.bf16.mxu0 0
  %2533 = vmatpush1.bf16.xpose.msra.mxu0 0
  %2534 = vmatprep.subr.bf16.mxu0 0
  %2535 = vmatpush1.bf16.xpose.msra.mxu0 0
  %2536 = vmatprep.subr.bf16.mxu0 0
  %2537 = vmatpush1.bf16.xpose.msra.mxu0 0
  %2538 = vmatprep.subr.bf16.mxu0 0
  %2539 = vmatpush1.bf16.xpose.msra.mxu0 0
  %2540 = vmatprep.subr.bf16.mxu0 0
  %2541 = vmatpush1.bf16.xpose.msra.mxu0 0
  %2542 = vmatprep.subr.bf16.mxu0 0
  %2543 = vmatpush1.bf16.xpose.msra.mxu0 0
  %2544 = vmatprep.subr.bf16.mxu0 0
  %2545 = vmatpush1.bf16.xpose.msra.mxu0 0
  %2546 = vmatprep.mubr.bf16.mxu0 0
  %2547 = vmatmul.mubr.bf16.gmra.mrb[0].mxu0 %v2509
  %v2548 = vpop.f32.mrb[0].mxu0
  %v2549 = vadd.f32 %v146, %v2548
  %v2550 = vpop.f32.mrb[0].mxu0
  %v2551 = vpop.f32.mrb[0].mxu0
  %v2552 = vadd.f32 %v147, %v2551
  %v2553 = vpop.f32.mrb[0].mxu0
  %2554 = vdwg.mxu0
  %v2556 = vsel %vm874, %v1993, 0
  %v2559 = vsel %vm874, %v2226, 0
  %2561 = vmatprep.subr.bf16.mxu0 0
  %2562 = vmatpush1.bf16.xpose.msra.mxu0 %v2559
  %2563 = vmatprep.subr.bf16.mxu0 0
  %2564 = vmatpush1.bf16.xpose.msra.mxu0 0
  %2565 = vmatprep.subr.bf16.mxu0 0
  %2566 = vmatpush1.bf16.xpose.msra.mxu0 0
  %2567 = vmatprep.subr.bf16.mxu0 0
  %2568 = vmatpush1.bf16.xpose.msra.mxu0 0
  %2569 = vmatprep.subr.bf16.mxu0 0
  %2570 = vmatpush1.bf16.xpose.msra.mxu0 0
  %2571 = vmatprep.subr.bf16.mxu0 0
  %2572 = vmatpush1.bf16.xpose.msra.mxu0 0
  %2573 = vmatprep.subr.bf16.mxu0 0
  %2574 = vmatpush1.bf16.xpose.msra.mxu0 0
  %2575 = vmatprep.subr.bf16.mxu0 0
  %2576 = vmatpush1.bf16.xpose.msra.mxu0 0
  %2577 = vmatprep.subr.bf16.mxu0 0
  %2578 = vmatpush1.bf16.xpose.msra.mxu0 0
  %2579 = vmatprep.subr.bf16.mxu0 0
  %2580 = vmatpush1.bf16.xpose.msra.mxu0 0
  %2581 = vmatprep.subr.bf16.mxu0 0
  %2582 = vmatpush1.bf16.xpose.msra.mxu0 0
  %2583 = vmatprep.subr.bf16.mxu0 0
  %2584 = vmatpush1.bf16.xpose.msra.mxu0 0
  %2585 = vmatprep.subr.bf16.mxu0 0
  %2586 = vmatpush1.bf16.xpose.msra.mxu0 0
  %2587 = vmatprep.subr.bf16.mxu0 0
  %2588 = vmatpush1.bf16.xpose.msra.mxu0 0
  %2589 = vmatprep.subr.bf16.mxu0 0
  %2590 = vmatpush1.bf16.xpose.msra.mxu0 0
  %2591 = vmatprep.subr.bf16.mxu0 0
  %2592 = vmatpush1.bf16.xpose.msra.mxu0 0
  %2593 = vmatprep.mubr.bf16.mxu0 0
  %2594 = vmatmul.mubr.bf16.gmra.mrb[0].mxu0 %v2556
  %v2595 = vpop.f32.mrb[0].mxu0
  %v2596 = vadd.f32 %v146, %v2595
  %v2597 = vpop.f32.mrb[0].mxu0
  %v2598 = vpop.f32.mrb[0].mxu0
  %v2599 = vadd.f32 %v147, %v2598
  %v2600 = vpop.f32.mrb[0].mxu0
  %2601 = vdwg.mxu0
  %v2603 = vsel %vm874, %v1994, 0
  %v2606 = vsel %vm874, %v2227, 0
  %2608 = vmatprep.subr.bf16.mxu0 0
  %2609 = vmatpush1.bf16.xpose.msra.mxu0 %v2606
  %2610 = vmatprep.subr.bf16.mxu0 0
  %2611 = vmatpush1.bf16.xpose.msra.mxu0 0
  %2612 = vmatprep.subr.bf16.mxu0 0
  %2613 = vmatpush1.bf16.xpose.msra.mxu0 0
  %2614 = vmatprep.subr.bf16.mxu0 0
  %2615 = vmatpush1.bf16.xpose.msra.mxu0 0
  %2616 = vmatprep.subr.bf16.mxu0 0
  %2617 = vmatpush1.bf16.xpose.msra.mxu0 0
  %2618 = vmatprep.subr.bf16.mxu0 0
  %2619 = vmatpush1.bf16.xpose.msra.mxu0 0
  %2620 = vmatprep.subr.bf16.mxu0 0
  %2621 = vmatpush1.bf16.xpose.msra.mxu0 0
  %2622 = vmatprep.subr.bf16.mxu0 0
  %2623 = vmatpush1.bf16.xpose.msra.mxu0 0
  %2624 = vmatprep.subr.bf16.mxu0 0
  %2625 = vmatpush1.bf16.xpose.msra.mxu0 0
  %2626 = vmatprep.subr.bf16.mxu0 0
  %2627 = vmatpush1.bf16.xpose.msra.mxu0 0
  %2628 = vmatprep.subr.bf16.mxu0 0
  %2629 = vmatpush1.bf16.xpose.msra.mxu0 0
  %2630 = vmatprep.subr.bf16.mxu0 0
  %2631 = vmatpush1.bf16.xpose.msra.mxu0 0
  %2632 = vmatprep.subr.bf16.mxu0 0
  %2633 = vmatpush1.bf16.xpose.msra.mxu0 0
  %2634 = vmatprep.subr.bf16.mxu0 0
  %2635 = vmatpush1.bf16.xpose.msra.mxu0 0
  %2636 = vmatprep.subr.bf16.mxu0 0
  %2637 = vmatpush1.bf16.xpose.msra.mxu0 0
  %2638 = vmatprep.subr.bf16.mxu0 0
  %2639 = vmatpush1.bf16.xpose.msra.mxu0 0
  %2640 = vmatprep.mubr.bf16.mxu0 0
  %2641 = vmatmul.mubr.bf16.gmra.mrb[0].mxu0 %v2603
  %v2642 = vpop.f32.mrb[0].mxu0
  %v2643 = vadd.f32 %v146, %v2642
  %v2644 = vpop.f32.mrb[0].mxu0
  %v2645 = vpop.f32.mrb[0].mxu0
  %v2646 = vadd.f32 %v147, %v2645
  %v2647 = vpop.f32.mrb[0].mxu0
  %2648 = vdwg.mxu0
  %v2649 = vsel %vm1063, %v2502, -inf
  %2650 = vmax.xlane.f32.xlu0 %v2649
  %v2651 = vpop.xlane.xlu0 %2650
  %v2652 = vsel %vm1063, %v2505, -inf
  %2653 = vmax.xlane.f32.xlu0 %v2652
  %v2654 = vpop.xlane.xlu0 %2653
  %v2655 = vsel %vm1063, %v2549, -inf
  %2656 = vmax.xlane.f32.xlu0 %v2655
  %v2657 = vpop.xlane.xlu0 %2656
  %v2658 = vsel %vm1063, %v2552, -inf
  %2659 = vmax.xlane.f32.xlu0 %v2658
  %v2660 = vpop.xlane.xlu0 %2659
  %v2661 = vsel %vm1063, %v2596, -inf
  %2662 = vmax.xlane.f32.xlu0 %v2661
  %v2663 = vpop.xlane.xlu0 %2662
  %v2664 = vsel %vm1063, %v2599, -inf
  %2665 = vmax.xlane.f32.xlu0 %v2664
  %v2666 = vpop.xlane.xlu0 %2665
  %v2667 = vsel %vm1063, %v2643, -inf
  %2668 = vmax.xlane.f32.xlu0 %v2667
  %v2669 = vpop.xlane.xlu0 %2668
  %v2670 = vsel %vm1063, %v2646, -inf
  %2671 = vmax.xlane.f32.xlu0 %v2670
  %v2672 = vpop.xlane.xlu0 %2671
  %v2673 = vsub.f32 %v2502, %v2651
  %v2674 = vsub.f32 %v2505, %v2654
  %v2675 = vsub.f32 %v2549, %v2657
  %v2676 = vsub.f32 %v2552, %v2660
  %v2677 = vsub.f32 %v2596, %v2663
  %v2678 = vsub.f32 %v2599, %v2666
  %v2679 = vsub.f32 %v2643, %v2669
  %v2680 = vsub.f32 %v2646, %v2672
  %v2681 = vmul.f32 %v2673, 1.442695
  %v2682 = vpow.pop %v2681
  %v2683 = vmul.f32 %v2674, 1.442695
  %v2684 = vpow.pop %v2683
  %v2685 = vmul.f32 %v2675, 1.442695
  %v2686 = vpow.pop %v2685
  %v2687 = vmul.f32 %v2676, 1.442695
  %v2688 = vpow.pop %v2687
  %v2689 = vmul.f32 %v2677, 1.442695
  %v2690 = vpow.pop %v2689
  %v2691 = vmul.f32 %v2678, 1.442695
  %v2692 = vpow.pop %v2691
  %v2693 = vmul.f32 %v2679, 1.442695
  %v2694 = vpow.pop %v2693
  %v2695 = vmul.f32 %v2680, 1.442695
  %v2696 = vpow.pop %v2695
  %v2697 = vsel %vm1063, %v2682, 0.0
  %2698 = vadd.xlane.f32.xlu0 %v2697
  %v2699 = vpop.xlane.xlu0 %2698
  %v2700 = vsel %vm1063, %v2684, 0.0
  %2701 = vadd.xlane.f32.xlu0 %v2700
  %v2702 = vpop.xlane.xlu0 %2701
  %v2703 = vsel %vm1063, %v2686, 0.0
  %2704 = vadd.xlane.f32.xlu0 %v2703
  %v2705 = vpop.xlane.xlu0 %2704
  %v2706 = vsel %vm1063, %v2688, 0.0
  %2707 = vadd.xlane.f32.xlu0 %v2706
  %v2708 = vpop.xlane.xlu0 %2707
  %v2709 = vsel %vm1063, %v2690, 0.0
  %2710 = vadd.xlane.f32.xlu0 %v2709
  %v2711 = vpop.xlane.xlu0 %2710
  %v2712 = vsel %vm1063, %v2692, 0.0
  %2713 = vadd.xlane.f32.xlu0 %v2712
  %v2714 = vpop.xlane.xlu0 %2713
  %v2715 = vsel %vm1063, %v2694, 0.0
  %2716 = vadd.xlane.f32.xlu0 %v2715
  %v2717 = vpop.xlane.xlu0 %2716
  %v2718 = vsel %vm1063, %v2696, 0.0
  %2719 = vadd.xlane.f32.xlu0 %v2718
  %v2720 = vpop.xlane.xlu0 %2719
  %v2721 = vrcp.pop %v2699
  %v2722 = vrcp.pop %v2702
  %v2723 = vrcp.pop %v2705
  %v2724 = vrcp.pop %v2708
  %v2725 = vrcp.pop %v2711
  %v2726 = vrcp.pop %v2714
  %v2727 = vrcp.pop %v2717
  %v2728 = vrcp.pop %v2720
  %v2729 = vmul.f32 %v2682, %v2721
  %v2730 = vmul.f32 %v2684, %v2722
  %v2731 = vmul.f32 %v2686, %v2723
  %v2732 = vmul.f32 %v2688, %v2724
  %v2733 = vmul.f32 %v2690, %v2725
  %v2734 = vmul.f32 %v2692, %v2726
  %v2735 = vmul.f32 %v2694, %v2727
  %v2736 = vmul.f32 %v2696, %v2728
  %v2737 = vpack.c.bf16 %v2730, %v2729
  %v2738 = vpack.c.bf16 %v2732, %v2731
  %v2739 = vpack.c.bf16 %v2734, %v2733
  %v2740 = vpack.c.bf16 %v2736, %v2735
  %v2742 = vsel %vm1063, %v2737, 0
  %2744 = vmatprep.subr.bf16.mxu0 0
  %2745 = vmatpush1.bf16.msra.mxu0 %v2457
  %2746 = vmatprep.subr.bf16.mxu0 0
  %2747 = vmatpush1.bf16.msra.mxu0 0
  %2748 = vmatprep.subr.bf16.mxu0 0
  %2749 = vmatpush1.bf16.msra.mxu0 0
  %2750 = vmatprep.subr.bf16.mxu0 0
  %2751 = vmatpush1.bf16.msra.mxu0 0
  %2752 = vmatprep.subr.bf16.mxu0 0
  %2753 = vmatpush1.bf16.msra.mxu0 0
  %2754 = vmatprep.subr.bf16.mxu0 0
  %2755 = vmatpush1.bf16.msra.mxu0 0
  %2756 = vmatprep.subr.bf16.mxu0 0
  %2757 = vmatpush1.bf16.msra.mxu0 0
  %2758 = vmatprep.subr.bf16.mxu0 0
  %2759 = vmatpush1.bf16.msra.mxu0 0
  %2760 = vmatprep.subr.bf16.mxu0 0
  %2761 = vmatpush1.bf16.msra.mxu0 0
  %2762 = vmatprep.subr.bf16.mxu0 0
  %2763 = vmatpush1.bf16.msra.mxu0 0
  %2764 = vmatprep.subr.bf16.mxu0 0
  %2765 = vmatpush1.bf16.msra.mxu0 0
  %2766 = vmatprep.subr.bf16.mxu0 0
  %2767 = vmatpush1.bf16.msra.mxu0 0
  %2768 = vmatprep.subr.bf16.mxu0 0
  %2769 = vmatpush1.bf16.msra.mxu0 0
  %2770 = vmatprep.subr.bf16.mxu0 0
  %2771 = vmatpush1.bf16.msra.mxu0 0
  %2772 = vmatprep.subr.bf16.mxu0 0
  %2773 = vmatpush1.bf16.msra.mxu0 0
  %2774 = vmatprep.subr.bf16.mxu0 0
  %2775 = vmatpush1.bf16.msra.mxu0 0
  %2776 = vmatprep.mubr.bf16.mxu0 0
  %2777 = vmatmul.mubr.bf16.gmra.mrb[0].mxu0 %v2742
  %v2778 = vpop.f32.mrb[0].mxu0
  %v2779 = vadd.f32 0.0, %v2778
  %v2780 = vpop.f32.mrb[0].mxu0
  %v2781 = vpop.f32.mrb[0].mxu0
  %v2782 = vadd.f32 0.0, %v2781
  %v2783 = vpop.f32.mrb[0].mxu0
  %2784 = vdwg.mxu0
  %v2786 = vsel %vm1063, %v2738, 0
  %2788 = vmatprep.subr.bf16.mxu0 0
  %2789 = vmatpush1.bf16.msra.mxu0 %v2458
  %2790 = vmatprep.subr.bf16.mxu0 0
  %2791 = vmatpush1.bf16.msra.mxu0 0
  %2792 = vmatprep.subr.bf16.mxu0 0
  %2793 = vmatpush1.bf16.msra.mxu0 0
  %2794 = vmatprep.subr.bf16.mxu0 0
  %2795 = vmatpush1.bf16.msra.mxu0 0
  %2796 = vmatprep.subr.bf16.mxu0 0
  %2797 = vmatpush1.bf16.msra.mxu0 0
  %2798 = vmatprep.subr.bf16.mxu0 0
  %2799 = vmatpush1.bf16.msra.mxu0 0
  %2800 = vmatprep.subr.bf16.mxu0 0
  %2801 = vmatpush1.bf16.msra.mxu0 0
  %2802 = vmatprep.subr.bf16.mxu0 0
  %2803 = vmatpush1.bf16.msra.mxu0 0
  %2804 = vmatprep.subr.bf16.mxu0 0
  %2805 = vmatpush1.bf16.msra.mxu0 0
  %2806 = vmatprep.subr.bf16.mxu0 0
  %2807 = vmatpush1.bf16.msra.mxu0 0
  %2808 = vmatprep.subr.bf16.mxu0 0
  %2809 = vmatpush1.bf16.msra.mxu0 0
  %2810 = vmatprep.subr.bf16.mxu0 0
  %2811 = vmatpush1.bf16.msra.mxu0 0
  %2812 = vmatprep.subr.bf16.mxu0 0
  %2813 = vmatpush1.bf16.msra.mxu0 0
  %2814 = vmatprep.subr.bf16.mxu0 0
  %2815 = vmatpush1.bf16.msra.mxu0 0
  %2816 = vmatprep.subr.bf16.mxu0 0
  %2817 = vmatpush1.bf16.msra.mxu0 0
  %2818 = vmatprep.subr.bf16.mxu0 0
  %2819 = vmatpush1.bf16.msra.mxu0 0
  %2820 = vmatprep.mubr.bf16.mxu0 0
  %2821 = vmatmul.mubr.bf16.gmra.mrb[0].mxu0 %v2786
  %v2822 = vpop.f32.mrb[0].mxu0
  %v2823 = vadd.f32 0.0, %v2822
  %v2824 = vpop.f32.mrb[0].mxu0
  %v2825 = vpop.f32.mrb[0].mxu0
  %v2826 = vadd.f32 0.0, %v2825
  %v2827 = vpop.f32.mrb[0].mxu0
  %2828 = vdwg.mxu0
  %v2830 = vsel %vm1063, %v2739, 0
  %2832 = vmatprep.subr.bf16.mxu0 0
  %2833 = vmatpush1.bf16.msra.mxu0 %v2459
  %2834 = vmatprep.subr.bf16.mxu0 0
  %2835 = vmatpush1.bf16.msra.mxu0 0
  %2836 = vmatprep.subr.bf16.mxu0 0
  %2837 = vmatpush1.bf16.msra.mxu0 0
  %2838 = vmatprep.subr.bf16.mxu0 0
  %2839 = vmatpush1.bf16.msra.mxu0 0
  %2840 = vmatprep.subr.bf16.mxu0 0
  %2841 = vmatpush1.bf16.msra.mxu0 0
  %2842 = vmatprep.subr.bf16.mxu0 0
  %2843 = vmatpush1.bf16.msra.mxu0 0
  %2844 = vmatprep.subr.bf16.mxu0 0
  %2845 = vmatpush1.bf16.msra.mxu0 0
  %2846 = vmatprep.subr.bf16.mxu0 0
  %2847 = vmatpush1.bf16.msra.mxu0 0
  %2848 = vmatprep.subr.bf16.mxu0 0
  %2849 = vmatpush1.bf16.msra.mxu0 0
  %2850 = vmatprep.subr.bf16.mxu0 0
  %2851 = vmatpush1.bf16.msra.mxu0 0
  %2852 = vmatprep.subr.bf16.mxu0 0
  %2853 = vmatpush1.bf16.msra.mxu0 0
  %2854 = vmatprep.subr.bf16.mxu0 0
  %2855 = vmatpush1.bf16.msra.mxu0 0
  %2856 = vmatprep.subr.bf16.mxu0 0
  %2857 = vmatpush1.bf16.msra.mxu0 0
  %2858 = vmatprep.subr.bf16.mxu0 0
  %2859 = vmatpush1.bf16.msra.mxu0 0
  %2860 = vmatprep.subr.bf16.mxu0 0
  %2861 = vmatpush1.bf16.msra.mxu0 0
  %2862 = vmatprep.subr.bf16.mxu0 0
  %2863 = vmatpush1.bf16.msra.mxu0 0
  %2864 = vmatprep.mubr.bf16.mxu0 0
  %2865 = vmatmul.mubr.bf16.gmra.mrb[0].mxu0 %v2830
  %v2866 = vpop.f32.mrb[0].mxu0
  %v2867 = vadd.f32 0.0, %v2866
  %v2868 = vpop.f32.mrb[0].mxu0
  %v2869 = vpop.f32.mrb[0].mxu0
  %v2870 = vadd.f32 0.0, %v2869
  %v2871 = vpop.f32.mrb[0].mxu0
  %2872 = vdwg.mxu0
  %v2874 = vsel %vm1063, %v2740, 0
  %2876 = vmatprep.subr.bf16.mxu0 0
  %2877 = vmatpush1.bf16.msra.mxu0 %v2460
  %2878 = vmatprep.subr.bf16.mxu0 0
  %2879 = vmatpush1.bf16.msra.mxu0 0
  %2880 = vmatprep.subr.bf16.mxu0 0
  %2881 = vmatpush1.bf16.msra.mxu0 0
  %2882 = vmatprep.subr.bf16.mxu0 0
  %2883 = vmatpush1.bf16.msra.mxu0 0
  %2884 = vmatprep.subr.bf16.mxu0 0
  %2885 = vmatpush1.bf16.msra.mxu0 0
  %2886 = vmatprep.subr.bf16.mxu0 0
  %2887 = vmatpush1.bf16.msra.mxu0 0
  %2888 = vmatprep.subr.bf16.mxu0 0
  %2889 = vmatpush1.bf16.msra.mxu0 0
  %2890 = vmatprep.subr.bf16.mxu0 0
  %2891 = vmatpush1.bf16.msra.mxu0 0
  %2892 = vmatprep.subr.bf16.mxu0 0
  %2893 = vmatpush1.bf16.msra.mxu0 0
  %2894 = vmatprep.subr.bf16.mxu0 0
  %2895 = vmatpush1.bf16.msra.mxu0 0
  %2896 = vmatprep.subr.bf16.mxu0 0
  %2897 = vmatpush1.bf16.msra.mxu0 0
  %2898 = vmatprep.subr.bf16.mxu0 0
  %2899 = vmatpush1.bf16.msra.mxu0 0
  %2900 = vmatprep.subr.bf16.mxu0 0
  %2901 = vmatpush1.bf16.msra.mxu0 0
  %2902 = vmatprep.subr.bf16.mxu0 0
  %2903 = vmatpush1.bf16.msra.mxu0 0
  %2904 = vmatprep.subr.bf16.mxu0 0
  %2905 = vmatpush1.bf16.msra.mxu0 0
  %2906 = vmatprep.subr.bf16.mxu0 0
  %2907 = vmatpush1.bf16.msra.mxu0 0
  %2908 = vmatprep.mubr.bf16.mxu0 0
  %2909 = vmatmul.mubr.bf16.gmra.mrb[0].mxu0 %v2874
  %v2910 = vpop.f32.mrb[0].mxu0
  %v2911 = vadd.f32 0.0, %v2910
  %v2912 = vpop.f32.mrb[0].mxu0
  %v2913 = vpop.f32.mrb[0].mxu0
  %v2914 = vadd.f32 0.0, %v2913
  %v2915 = vpop.f32.mrb[0].mxu0
  %2916 = vdwg.mxu0
  %v2917 = vpack.c.bf16 %v2782, %v2779
  %v2918 = vpack.c.bf16 %v2826, %v2823
  %v2919 = vpack.c.bf16 %v2870, %v2867
  %v2920 = vpack.c.bf16 %v2914, %v2911
  %s2921 = scalar_lea.vmem %s8, 16
  %v2922 = vld [vmem:[%s2921] sm:$0xf]
  %v2923 = vld [vmem:[%s2921 + $0x4] sm:$0xf]
  %v2924 = vld [vmem:[%s2921 + $0x8] sm:$0xf]
  %v2925 = vld [vmem:[%s2921 + $0xc] sm:$0xf]
  %v2927 = vsel %vm874, %v2917, 0
  %v2930 = vsel %vm1343, %v2922, 0
  %2932 = vmatprep.subr.bf16.mxu0 0
  %2933 = vmatpush1.bf16.msra.mxu0 %v2930
  %2934 = vmatprep.subr.bf16.mxu0 0
  %2935 = vmatpush1.bf16.msra.mxu0 0
  %2936 = vmatprep.subr.bf16.mxu0 0
  %2937 = vmatpush1.bf16.msra.mxu0 0
  %2938 = vmatprep.subr.bf16.mxu0 0
  %2939 = vmatpush1.bf16.msra.mxu0 0
  %2940 = vmatprep.subr.bf16.mxu0 0
  %2941 = vmatpush1.bf16.msra.mxu0 0
  %2942 = vmatprep.subr.bf16.mxu0 0
  %2943 = vmatpush1.bf16.msra.mxu0 0
  %2944 = vmatprep.subr.bf16.mxu0 0
  %2945 = vmatpush1.bf16.msra.mxu0 0
  %2946 = vmatprep.subr.bf16.mxu0 0
  %2947 = vmatpush1.bf16.msra.mxu0 0
  %2948 = vmatprep.subr.bf16.mxu0 0
  %2949 = vmatpush1.bf16.msra.mxu0 0
  %2950 = vmatprep.subr.bf16.mxu0 0
  %2951 = vmatpush1.bf16.msra.mxu0 0
  %2952 = vmatprep.subr.bf16.mxu0 0
  %2953 = vmatpush1.bf16.msra.mxu0 0
  %2954 = vmatprep.subr.bf16.mxu0 0
  %2955 = vmatpush1.bf16.msra.mxu0 0
  %2956 = vmatprep.subr.bf16.mxu0 0
  %2957 = vmatpush1.bf16.msra.mxu0 0
  %2958 = vmatprep.subr.bf16.mxu0 0
  %2959 = vmatpush1.bf16.msra.mxu0 0
  %2960 = vmatprep.subr.bf16.mxu0 0
  %2961 = vmatpush1.bf16.msra.mxu0 0
  %2962 = vmatprep.subr.bf16.mxu0 0
  %2963 = vmatpush1.bf16.msra.mxu0 0
  %2964 = vmatprep.mubr.bf16.mxu0 0
  %2965 = vmatmul.mubr.bf16.gmra.mrb[0].mxu0 %v2927
  %v2966 = vpop.f32.mrb[0].mxu0
  %v2967 = vadd.f32 0.0, %v2966
  %v2968 = vpop.f32.mrb[0].mxu0
  %v2969 = vpop.f32.mrb[0].mxu0
  %v2970 = vadd.f32 0.0, %v2969
  %v2971 = vpop.f32.mrb[0].mxu0
  %2972 = vdwg.mxu0
  %v2974 = vsel %vm874, %v2918, 0
  %v2977 = vsel %vm1343, %v2923, 0
  %2979 = vmatprep.subr.bf16.mxu0 0
  %2980 = vmatpush1.bf16.msra.mxu0 %v2977
  %2981 = vmatprep.subr.bf16.mxu0 0
  %2982 = vmatpush1.bf16.msra.mxu0 0
  %2983 = vmatprep.subr.bf16.mxu0 0
  %2984 = vmatpush1.bf16.msra.mxu0 0
  %2985 = vmatprep.subr.bf16.mxu0 0
  %2986 = vmatpush1.bf16.msra.mxu0 0
  %2987 = vmatprep.subr.bf16.mxu0 0
  %2988 = vmatpush1.bf16.msra.mxu0 0
  %2989 = vmatprep.subr.bf16.mxu0 0
  %2990 = vmatpush1.bf16.msra.mxu0 0
  %2991 = vmatprep.subr.bf16.mxu0 0
  %2992 = vmatpush1.bf16.msra.mxu0 0
  %2993 = vmatprep.subr.bf16.mxu0 0
  %2994 = vmatpush1.bf16.msra.mxu0 0
  %2995 = vmatprep.subr.bf16.mxu0 0
  %2996 = vmatpush1.bf16.msra.mxu0 0
  %2997 = vmatprep.subr.bf16.mxu0 0
  %2998 = vmatpush1.bf16.msra.mxu0 0
  %2999 = vmatprep.subr.bf16.mxu0 0
  %3000 = vmatpush1.bf16.msra.mxu0 0
  %3001 = vmatprep.subr.bf16.mxu0 0
  %3002 = vmatpush1.bf16.msra.mxu0 0
  %3003 = vmatprep.subr.bf16.mxu0 0
  %3004 = vmatpush1.bf16.msra.mxu0 0
  %3005 = vmatprep.subr.bf16.mxu0 0
  %3006 = vmatpush1.bf16.msra.mxu0 0
  %3007 = vmatprep.subr.bf16.mxu0 0
  %3008 = vmatpush1.bf16.msra.mxu0 0
  %3009 = vmatprep.subr.bf16.mxu0 0
  %3010 = vmatpush1.bf16.msra.mxu0 0
  %3011 = vmatprep.mubr.bf16.mxu0 0
  %3012 = vmatmul.mubr.bf16.gmra.mrb[0].mxu0 %v2974
  %v3013 = vpop.f32.mrb[0].mxu0
  %v3014 = vadd.f32 0.0, %v3013
  %v3015 = vpop.f32.mrb[0].mxu0
  %v3016 = vpop.f32.mrb[0].mxu0
  %v3017 = vadd.f32 0.0, %v3016
  %v3018 = vpop.f32.mrb[0].mxu0
  %3019 = vdwg.mxu0
  %v3021 = vsel %vm874, %v2919, 0
  %v3024 = vsel %vm1343, %v2924, 0
  %3026 = vmatprep.subr.bf16.mxu0 0
  %3027 = vmatpush1.bf16.msra.mxu0 %v3024
  %3028 = vmatprep.subr.bf16.mxu0 0
  %3029 = vmatpush1.bf16.msra.mxu0 0
  %3030 = vmatprep.subr.bf16.mxu0 0
  %3031 = vmatpush1.bf16.msra.mxu0 0
  %3032 = vmatprep.subr.bf16.mxu0 0
  %3033 = vmatpush1.bf16.msra.mxu0 0
  %3034 = vmatprep.subr.bf16.mxu0 0
  %3035 = vmatpush1.bf16.msra.mxu0 0
  %3036 = vmatprep.subr.bf16.mxu0 0
  %3037 = vmatpush1.bf16.msra.mxu0 0
  %3038 = vmatprep.subr.bf16.mxu0 0
  %3039 = vmatpush1.bf16.msra.mxu0 0
  %3040 = vmatprep.subr.bf16.mxu0 0
  %3041 = vmatpush1.bf16.msra.mxu0 0
  %3042 = vmatprep.subr.bf16.mxu0 0
  %3043 = vmatpush1.bf16.msra.mxu0 0
  %3044 = vmatprep.subr.bf16.mxu0 0
  %3045 = vmatpush1.bf16.msra.mxu0 0
  %3046 = vmatprep.subr.bf16.mxu0 0
  %3047 = vmatpush1.bf16.msra.mxu0 0
  %3048 = vmatprep.subr.bf16.mxu0 0
  %3049 = vmatpush1.bf16.msra.mxu0 0
  %3050 = vmatprep.subr.bf16.mxu0 0
  %3051 = vmatpush1.bf16.msra.mxu0 0
  %3052 = vmatprep.subr.bf16.mxu0 0
  %3053 = vmatpush1.bf16.msra.mxu0 0
  %3054 = vmatprep.subr.bf16.mxu0 0
  %3055 = vmatpush1.bf16.msra.mxu0 0
  %3056 = vmatprep.subr.bf16.mxu0 0
  %3057 = vmatpush1.bf16.msra.mxu0 0
  %3058 = vmatprep.mubr.bf16.mxu0 0
  %3059 = vmatmul.mubr.bf16.gmra.mrb[0].mxu0 %v3021
  %v3060 = vpop.f32.mrb[0].mxu0
  %v3061 = vadd.f32 0.0, %v3060
  %v3062 = vpop.f32.mrb[0].mxu0
  %v3063 = vpop.f32.mrb[0].mxu0
  %v3064 = vadd.f32 0.0, %v3063
  %v3065 = vpop.f32.mrb[0].mxu0
  %3066 = vdwg.mxu0
  %v3068 = vsel %vm874, %v2920, 0
  %v3071 = vsel %vm1343, %v2925, 0
  %3073 = vmatprep.subr.bf16.mxu0 0
  %3074 = vmatpush1.bf16.msra.mxu0 %v3071
  %3075 = vmatprep.subr.bf16.mxu0 0
  %3076 = vmatpush1.bf16.msra.mxu0 0
  %3077 = vmatprep.subr.bf16.mxu0 0
  %3078 = vmatpush1.bf16.msra.mxu0 0
  %3079 = vmatprep.subr.bf16.mxu0 0
  %3080 = vmatpush1.bf16.msra.mxu0 0
  %3081 = vmatprep.subr.bf16.mxu0 0
  %3082 = vmatpush1.bf16.msra.mxu0 0
  %3083 = vmatprep.subr.bf16.mxu0 0
  %3084 = vmatpush1.bf16.msra.mxu0 0
  %3085 = vmatprep.subr.bf16.mxu0 0
  %3086 = vmatpush1.bf16.msra.mxu0 0
  %3087 = vmatprep.subr.bf16.mxu0 0
  %3088 = vmatpush1.bf16.msra.mxu0 0
  %3089 = vmatprep.subr.bf16.mxu0 0
  %3090 = vmatpush1.bf16.msra.mxu0 0
  %3091 = vmatprep.subr.bf16.mxu0 0
  %3092 = vmatpush1.bf16.msra.mxu0 0
  %3093 = vmatprep.subr.bf16.mxu0 0
  %3094 = vmatpush1.bf16.msra.mxu0 0
  %3095 = vmatprep.subr.bf16.mxu0 0
  %3096 = vmatpush1.bf16.msra.mxu0 0
  %3097 = vmatprep.subr.bf16.mxu0 0
  %3098 = vmatpush1.bf16.msra.mxu0 0
  %3099 = vmatprep.subr.bf16.mxu0 0
  %3100 = vmatpush1.bf16.msra.mxu0 0
  %3101 = vmatprep.subr.bf16.mxu0 0
  %3102 = vmatpush1.bf16.msra.mxu0 0
  %3103 = vmatprep.subr.bf16.mxu0 0
  %3104 = vmatpush1.bf16.msra.mxu0 0
  %3105 = vmatprep.mubr.bf16.mxu0 0
  %3106 = vmatmul.mubr.bf16.gmra.mrb[0].mxu0 %v3068
  %v3107 = vpop.f32.mrb[0].mxu0
  %v3108 = vadd.f32 0.0, %v3107
  %v3109 = vpop.f32.mrb[0].mxu0
  %v3110 = vpop.f32.mrb[0].mxu0
  %v3111 = vadd.f32 0.0, %v3110
  %v3112 = vpop.f32.mrb[0].mxu0
  %3113 = vdwg.mxu0
  %v3114 = vsel %vm151, %v2967, 0.0
  %v3115 = vsel %vm151, %v3014, 0.0
  %v3116 = vadd.f32 %v3114, %v3115
  %v3117 = vsel %vm151, %v3061, 0.0
  %v3118 = vadd.f32 %v3116, %v3117
  %v3119 = vsel %vm151, %v3108, 0.0
  %v3120 = vadd.f32 %v3118, %v3119
  %v3121 = vsel %vm151, %v2970, 0.0
  %v3122 = vsel %vm151, %v3017, 0.0
  %v3123 = vadd.f32 %v3121, %v3122
  %v3124 = vsel %vm151, %v3064, 0.0
  %v3125 = vadd.f32 %v3123, %v3124
  %v3126 = vsel %vm151, %v3111, 0.0
  %v3127 = vadd.f32 %v3125, %v3126
  %v3128 = vadd.f32 %v1731, %v3120
  %v3129 = vadd.f32 %v1732, %v3127
  %s3130 = scalar_lea.vmem %s9, 1
  %v3131 = vld [vmem:[%s3130] sm:$0x1]
  %v3132 = vmul.f32 %v3128, %v3128
  %v3133 = vmul.f32 %v3129, %v3129
  %v3134 = vsel %vm151, %v3132, 0.0
  %3135 = vadd.xlane.f32.xlu0 %v3134
  %v3136 = vpop.xlane.xlu0 %3135
  %v3137 = vsel %vm151, %v3133, 0.0
  %3138 = vadd.xlane.f32.xlu0 %v3137
  %v3139 = vpop.xlane.xlu0 %3138
  %v3140 = vmul.f32 %v3136, %v158
  %v3141 = vmul.f32 %v3139, %v158
  %v3142 = vadd.f32 %v3140, 1e-06
  %v3143 = vadd.f32 %v3141, 1e-06
  %v3144 = vrsqrt.pop %v3142
  %v3145 = vrsqrt.pop %v3143
  %v3146 = vmul.f32 %v3128, %v3144
  %v3147 = vmul.f32 %v3129, %v3145
  %v3148 = vunpack.c.l.bf16 %v3131
  %v3149 = vlaneseq
  %v3150 = vshrl.u32 %v3149, 7
  %v3151 = vsub.s32 0, %v3150
  %v3152 = vrot.slane %v3148, %v3151
  %v3153 = vmul.f32 %v3146, %v3152
  %v3154 = vmul.f32 %v3147, %v3152
  %v3155 = vpack.c.bf16 %v3154, %v3153
  %s3156 = scalar_lea.vmem %s10, 16
  %v3157 = vld [vmem:[%s3156] sm:$0xf]
  %v3158 = vld [vmem:[%s3156 + $0x4] sm:$0xf]
  %v3159 = vld [vmem:[%s3156 + $0x8] sm:$0xf]
  %v3160 = vld [vmem:[%s3156 + $0xc] sm:$0xf]
  %v3165 = vunpack.c.l.b16 %v3157
  %v3166 = vunpack.c.l.b16 %v3158
  %v3167 = vunpack.c.l.b16 %v3159
  %v3168 = vunpack.c.l.b16 %v3160
  %v3169 = vpack.c.b16 %v3166, %v3165
  %v3170 = vpack.c.b16 %v3168, %v3167
  %v3174 = vsel %vm151, %v3155, 0
  %3176 = vmatprep.subr.bf16.mxu0 0
  %3177 = vmatpush1.bf16.msra.mxu0 %v3169
  %3178 = vmatprep.subr.bf16.mxu0 0
  %3179 = vmatpush1.bf16.msra.mxu0 %v3170
  %3180 = vmatprep.subr.bf16.mxu0 0
  %3181 = vmatpush1.bf16.msra.mxu0 0
  %3182 = vmatprep.subr.bf16.mxu0 0
  %3183 = vmatpush1.bf16.msra.mxu0 0
  %3184 = vmatprep.subr.bf16.mxu0 0
  %3185 = vmatpush1.bf16.msra.mxu0 0
  %3186 = vmatprep.subr.bf16.mxu0 0
  %3187 = vmatpush1.bf16.msra.mxu0 0
  %3188 = vmatprep.subr.bf16.mxu0 0
  %3189 = vmatpush1.bf16.msra.mxu0 0
  %3190 = vmatprep.subr.bf16.mxu0 0
  %3191 = vmatpush1.bf16.msra.mxu0 0
  %3192 = vmatprep.subr.bf16.mxu0 0
  %3193 = vmatpush1.bf16.msra.mxu0 0
  %3194 = vmatprep.subr.bf16.mxu0 0
  %3195 = vmatpush1.bf16.msra.mxu0 0
  %3196 = vmatprep.subr.bf16.mxu0 0
  %3197 = vmatpush1.bf16.msra.mxu0 0
  %3198 = vmatprep.subr.bf16.mxu0 0
  %3199 = vmatpush1.bf16.msra.mxu0 0
  %3200 = vmatprep.subr.bf16.mxu0 0
  %3201 = vmatpush1.bf16.msra.mxu0 0
  %3202 = vmatprep.subr.bf16.mxu0 0
  %3203 = vmatpush1.bf16.msra.mxu0 0
  %3204 = vmatprep.subr.bf16.mxu0 0
  %3205 = vmatpush1.bf16.msra.mxu0 0
  %3206 = vmatprep.subr.bf16.mxu0 0
  %3207 = vmatpush1.bf16.msra.mxu0 0
  %3208 = vmatprep.mubr.bf16.mxu0 0
  %3209 = vmatmul.mubr.bf16.gmra.mrb[0].mxu0 %v3174
  %v3210 = vpop.f32.mrb[0].mxu0
  %v3211 = vadd.f32 0.0, %v3210
  %v3212 = vpop.f32.mrb[0].mxu0
  %v3213 = vpop.f32.mrb[0].mxu0
  %v3214 = vadd.f32 0.0, %v3213
  %v3215 = vpop.f32.mrb[0].mxu0
  %3216 = vdwg.mxu0
  %v3217 = vxor.u32 %v3211, 2147483648
  %v3218 = vxor.u32 %v3214, 2147483648
  %v3219 = vmul.f32 %v3217, 1.442695
  %v3220 = vpow.pop %v3219
  %v3221 = vmul.f32 %v3218, 1.442695
  %v3222 = vpow.pop %v3221
  %v3223 = vadd.f32 %v3220, 1.0
  %v3224 = vadd.f32 %v3222, 1.0
  %v3225 = vrcp.pop %v3223
  %v3226 = vmul.f32 1.0, %v3225
  %v3227 = vrcp.pop %v3224
  %v3228 = vmul.f32 1.0, %v3227
  %v3229 = vmul.f32 %v3211, %v3226
  %v3230 = vmul.f32 %v3214, %v3228
  %3233 = vrot.lane.b32.xlu0 %v3211, 64
  %v3234 = vpop.permute.xlu0 %3233
  %3235 = vrot.lane.b32.xlu0 %v3214, 64
  %v3236 = vpop.permute.xlu0 %3235
  %v3239 = vmul.f32 %v3229, %v3234
  %v3240 = vmul.f32 %v3230, %v3236
  %v3241 = vpack.c.bf16 %v3240, %v3239
  %s3242 = scalar_lea.vmem %s11, 32
  %v3243 = vld [vmem:[%s3242] sm:$0xf]
  %v3244 = vld [vmem:[%s3242 + $0x4] sm:$0xf]
  %v3245 = vld [vmem:[%s3242 + $0x8] sm:$0xf]
  %v3246 = vld [vmem:[%s3242 + $0xc] sm:$0xf]
  %v3247 = vld [vmem:[%s3242 + $0x10] sm:$0xf]
  %v3248 = vld [vmem:[%s3242 + $0x14] sm:$0xf]
  %v3249 = vld [vmem:[%s3242 + $0x18] sm:$0xf]
  %v3250 = vld [vmem:[%s3242 + $0x1c] sm:$0xf]
  %v3259 = vunpack.c.l.b16 %v3243
  %v3260 = vunpack.c.l.b16 %v3244
  %v3261 = vunpack.c.l.b16 %v3245
  %v3262 = vunpack.c.l.b16 %v3246
  %v3263 = vunpack.c.l.b16 %v3247
  %v3264 = vunpack.c.l.b16 %v3248
  %v3265 = vunpack.c.l.b16 %v3249
  %v3266 = vunpack.c.l.b16 %v3250
  %v3267 = vpack.c.b16 %v3260, %v3259
  %v3268 = vpack.c.b16 %v3262, %v3261
  %v3269 = vpack.c.b16 %v3264, %v3263
  %v3270 = vpack.c.b16 %v3266, %v3265
  %v3276 = vsel %vm101, %v3241, 0
  %3278 = vmatprep.subr.bf16.mxu0 0
  %3279 = vmatpush1.bf16.msra.mxu0 %v3267
  %3280 = vmatprep.subr.bf16.mxu0 0
  %3281 = vmatpush1.bf16.msra.mxu0 %v3268
  %3282 = vmatprep.subr.bf16.mxu0 0
  %3283 = vmatpush1.bf16.msra.mxu0 %v3269
  %3284 = vmatprep.subr.bf16.mxu0 0
  %3285 = vmatpush1.bf16.msra.mxu0 %v3270
  %3286 = vmatprep.subr.bf16.mxu0 0
  %3287 = vmatpush1.bf16.msra.mxu0 0
  %3288 = vmatprep.subr.bf16.mxu0 0
  %3289 = vmatpush1.bf16.msra.mxu0 0
  %3290 = vmatprep.subr.bf16.mxu0 0
  %3291 = vmatpush1.bf16.msra.mxu0 0
  %3292 = vmatprep.subr.bf16.mxu0 0
  %3293 = vmatpush1.bf16.msra.mxu0 0
  %3294 = vmatprep.subr.bf16.mxu0 0
  %3295 = vmatpush1.bf16.msra.mxu0 0
  %3296 = vmatprep.subr.bf16.mxu0 0
  %3297 = vmatpush1.bf16.msra.mxu0 0
  %3298 = vmatprep.subr.bf16.mxu0 0
  %3299 = vmatpush1.bf16.msra.mxu0 0
  %3300 = vmatprep.subr.bf16.mxu0 0
  %3301 = vmatpush1.bf16.msra.mxu0 0
  %3302 = vmatprep.subr.bf16.mxu0 0
  %3303 = vmatpush1.bf16.msra.mxu0 0
  %3304 = vmatprep.subr.bf16.mxu0 0
  %3305 = vmatpush1.bf16.msra.mxu0 0
  %3306 = vmatprep.subr.bf16.mxu0 0
  %3307 = vmatpush1.bf16.msra.mxu0 0
  %3308 = vmatprep.subr.bf16.mxu0 0
  %3309 = vmatpush1.bf16.msra.mxu0 0
  %3310 = vmatprep.mubr.bf16.mxu0 0
  %3311 = vmatmul.mubr.bf16.gmra.mrb[0].mxu0 %v3276
  %v3312 = vpop.f32.mrb[0].mxu0
  %v3313 = vadd.f32 0.0, %v3312
  %v3314 = vpop.f32.mrb[0].mxu0
  %v3315 = vpop.f32.mrb[0].mxu0
  %v3316 = vadd.f32 0.0, %v3315
  %v3317 = vpop.f32.mrb[0].mxu0
  %3318 = vdwg.mxu0
  %v3319 = vadd.f32 %v3128, %v3313
  %v3320 = vadd.f32 %v3129, %v3316
  %v3321 = vld [vmem:[%s12] sm:$0x1]
  %v3322 = vmul.f32 %v3319, %v3319
  %v3323 = vmul.f32 %v3320, %v3320
  %v3324 = vsel %vm151, %v3322, 0.0
  %3325 = vadd.xlane.f32.xlu0 %v3324
  %v3326 = vpop.xlane.xlu0 %3325
  %v3327 = vsel %vm151, %v3323, 0.0
  %3328 = vadd.xlane.f32.xlu0 %v3327
  %v3329 = vpop.xlane.xlu0 %3328
  %v3330 = vmul.f32 %v3326, %v158
  %v3331 = vmul.f32 %v3329, %v158
  %v3332 = vadd.f32 %v3330, 1e-06
  %v3333 = vadd.f32 %v3331, 1e-06
  %v3334 = vrsqrt.pop %v3332
  %v3335 = vrsqrt.pop %v3333
  %v3336 = vmul.f32 %v3319, %v3334
  %v3337 = vmul.f32 %v3320, %v3335
  %v3338 = vunpack.c.l.bf16 %v3321
  %v3339 = vlaneseq
  %v3340 = vshrl.u32 %v3339, 7
  %v3341 = vsub.s32 0, %v3340
  %v3342 = vrot.slane %v3338, %v3341
  %v3343 = vmul.f32 %v3336, %v3342
  %v3344 = vmul.f32 %v3337, %v3342
  %v3345 = vpack.c.bf16 %v3344, %v3343
  %v3346 = vld [vmem:[%s13] sm:$0xf]
  %v3347 = vld [vmem:[%s13 + $0x4] sm:$0xf]
  %v3348 = vld [vmem:[%s13 + $0x8] sm:$0xf]
  %v3349 = vld [vmem:[%s13 + $0xc] sm:$0xf]
  %v3354 = vunpack.c.l.b16 %v3346
  %v3355 = vunpack.c.l.b16 %v3347
  %v3356 = vunpack.c.l.b16 %v3348
  %v3357 = vunpack.c.l.b16 %v3349
  %v3358 = vpack.c.b16 %v3355, %v3354
  %v3359 = vpack.c.b16 %v3357, %v3356
  %v3363 = vsel %vm151, %v3345, 0
  %3365 = vmatprep.subr.bf16.mxu0 0
  %3366 = vmatpush1.bf16.msra.mxu0 %v3358
  %3367 = vmatprep.subr.bf16.mxu0 0
  %3368 = vmatpush1.bf16.msra.mxu0 %v3359
  %3369 = vmatprep.subr.bf16.mxu0 0
  %3370 = vmatpush1.bf16.msra.mxu0 0
  %3371 = vmatprep.subr.bf16.mxu0 0
  %3372 = vmatpush1.bf16.msra.mxu0 0
  %3373 = vmatprep.subr.bf16.mxu0 0
  %3374 = vmatpush1.bf16.msra.mxu0 0
  %3375 = vmatprep.subr.bf16.mxu0 0
  %3376 = vmatpush1.bf16.msra.mxu0 0
  %3377 = vmatprep.subr.bf16.mxu0 0
  %3378 = vmatpush1.bf16.msra.mxu0 0
  %3379 = vmatprep.subr.bf16.mxu0 0
  %3380 = vmatpush1.bf16.msra.mxu0 0
  %3381 = vmatprep.subr.bf16.mxu0 0
  %3382 = vmatpush1.bf16.msra.mxu0 0
  %3383 = vmatprep.subr.bf16.mxu0 0
  %3384 = vmatpush1.bf16.msra.mxu0 0
  %3385 = vmatprep.subr.bf16.mxu0 0
  %3386 = vmatpush1.bf16.msra.mxu0 0
  %3387 = vmatprep.subr.bf16.mxu0 0
  %3388 = vmatpush1.bf16.msra.mxu0 0
  %3389 = vmatprep.subr.bf16.mxu0 0
  %3390 = vmatpush1.bf16.msra.mxu0 0
  %3391 = vmatprep.subr.bf16.mxu0 0
  %3392 = vmatpush1.bf16.msra.mxu0 0
  %3393 = vmatprep.subr.bf16.mxu0 0
  %3394 = vmatpush1.bf16.msra.mxu0 0
  %3395 = vmatprep.subr.bf16.mxu0 0
  %3396 = vmatpush1.bf16.msra.mxu0 0
  %3397 = vmatprep.mubr.bf16.mxu0 0
  %3398 = vmatmul.mubr.bf16.gmra.mrb[0].mxu0 %v3363
  %v3399 = vpop.f32.mrb[0].mxu0
  %v3400 = vadd.f32 0.0, %v3399
  %v3401 = vpop.f32.mrb[0].mxu0
  %v3402 = vpop.f32.mrb[0].mxu0
  %v3403 = vadd.f32 0.0, %v3402
  %v3404 = vpop.f32.mrb[0].mxu0
  %3405 = vdwg.mxu0
  %v3406 = vpack.c.bf16 %v3403, %v3400
  %v3408 = vunpack.c.l.b16 %v3406
  %v3409 = vunpack.c.h.b16 %v3406
  %v3410 = vpack.c.b16 %v3408, %v3408
  %v3411 = vpack.c.b16 %v3409, %v3409
  %3414 = vst [vmem:[%s14] sm:$0xf] %v3410
  %3415 = vst [vmem:[%s14 + $0x4] sm:$0xf] %v3411
  // Predicated region
  $region58: #{hf_wrapper_forward.1} parent=0 // pred_check
    _
  $region59: #{hf_wrapper_forward.1} parent=0 // pred_check_branch
    %3417 = sbr.rel (0) target = $region61
  $region60: #{hf_wrapper_forward.1} parent=0 // pred_region
    _
  $region61: #{hf_wrapper_forward.1} parent=0 // pred_fallthru
    _
  // Predicated region
  $region62: #{hf_wrapper_forward.1} parent=0 // pred_check
    _
  $region63: #{hf_wrapper_forward.1} parent=0 // pred_check_branch
    %3419 = sbr.rel (0) target = $region65
  $region64: #{hf_wrapper_forward.1} parent=0 // pred_region
    _
  $region65: #{hf_wrapper_forward.1} parent=0 // pred_fallthru
    _

</llo_original>
